<compile_context>
chip_gen: v7x
topology: tpu7x:2x2x1
jax: 0.10.0
libtpu: 0.0.40
codegen_flags: <defaults>
</compile_context>

<pallas_src>
import jax
import jax.numpy as jnp
from jax.experimental import pallas as pl
from jax.experimental.pallas import tpu as pltpu

LANE = 128
SUBLANE = 8


def _round_up(x, m):
    return (x + m - 1) // m * m


# ----------------------------------------------------------------------------
# Pallas kernel (grid = (batch_tiles, k_tiles), k is the streamed reduction):
#   acc      += img_tile @ W_fused_tile                  (W_fused = w_img @ w1_img)
#   (last k) : text_feat = tanh(cls @ Wpool + bpool)     ~ bert(...).pooler_output
#              h   = relu(acc + text_feat @ W1_txt + b1')   (concat fused via split W1)
#              out = h @ W2_pad + b2_pad                 (lane-dense, 128-wide slab)
# ----------------------------------------------------------------------------
def hybrid_kernel(img_ref, wfused_ref, cls_ref, wpool_ref, bpool_ref,
                  w1t_ref, b1_ref, w2_ref, b2_ref, out_ref, acc_ref):
    k = pl.program_id(1)

    @pl.when(k == 0)
    def _():
        acc_ref[...] = jnp.zeros_like(acc_ref)

    # Streamed, fused image path (bf16 in, f32 accumulate on the MXU).
    acc_ref[...] += jnp.dot(img_ref[...], wfused_ref[...],
                            preferred_element_type=jnp.float32)

    @pl.when(k == pl.num_programs(1) - 1)
    def _():
        # BERT-pooler stand-in: tanh(dense(CLS)) in f32 (EUP), 768 dims.
        text_feat = jnp.tanh(
            jnp.dot(cls_ref[...], wpool_ref[...],
                    preferred_element_type=jnp.float32) + bpool_ref[...])
        # torch.cat + Linear(1280, 512): image half already in acc (fused), add text half.
        h = (acc_ref[...]
             + jnp.dot(text_feat.astype(jnp.bfloat16), w1t_ref[...],
                       preferred_element_type=jnp.float32)
             + b1_ref[...])
        h = jnp.maximum(h, 0.0)                                   # nn.ReLU()
        # Linear(512, num_classes) -> lane-dense padded slab.
        out_ref[...] = (jnp.dot(h.astype(jnp.bfloat16), w2_ref[...],
                                preferred_element_type=jnp.float32)
                        + b2_ref[...]).astype(out_ref.dtype)


def hybrid_document_classifier(image, input_ids, attention_mask, params,
                               *, tk=256, tb=8):
    """JAX wrapper: glue (flatten, embedding lookup, weight fusion/padding) + Pallas call."""
    B = image.shape[0]
    num_classes = params["b2"].shape[-1]
    cnn_out, bert_out, hidden = 512, 768, 512

    # --- glue (plain JAX) ---
    img_flat = image.reshape(B, -1).astype(jnp.float32)              # (B, 3*H*W)
    emb = jnp.take(params["embedding"], input_ids, axis=0)           # (B, S, 768)
    _ = attention_mask  # TODO(synk): mask feeds the untranslated encoder; pooler uses CLS only.
    cls_emb = emb[:, 0, :].astype(jnp.float32)                       # (B, 768)

    K = img_flat.shape[1]
    K_pad = _round_up(K, tk)
    B_pad = _round_up(B, tb)
    nc_pad = _round_up(num_classes, LANE)

    # --- algebraic fusion of the image path (no nonlinearity between w_img and w1_img) ---
    w_fused = params["w_img"] @ params["w1_img"]                     # (K, 512) f32
    b1_fused = params["b1"] + params["b_img"] @ params["w1_img"]     # (1, 512) f32

    # --- pad + cast: weights/activations to bf16 (halves HBM traffic), biases stay f32 ---
    img_p = jnp.zeros((B_pad, K_pad), jnp.bfloat16).at[:B, :K].set(
        img_flat.astype(jnp.bfloat16))
    cls_p = jnp.zeros((B_pad, bert_out), jnp.bfloat16).at[:B].set(
        cls_emb.astype(jnp.bfloat16))
    wf_p = jnp.zeros((K_pad, hidden), jnp.bfloat16).at[:K].set(
        w_fused.astype(jnp.bfloat16))
    wpool = params["w_pool"].astype(jnp.bfloat16)                    # (768, 768)
    w1t = params["w1_txt"].astype(jnp.bfloat16)                      # (768, 512)
    w2_p = jnp.zeros((hidden, nc_pad), jnp.bfloat16).at[:, :num_classes].set(
        params["w2"].astype(jnp.bfloat16))
    b2_p = jnp.zeros((1, nc_pad), jnp.float32).at[:, :num_classes].set(params["b2"])

    grid = (B_pad // tb, K_pad // tk)
    out = pl.pallas_call(
        hybrid_kernel,
        out_shape=jax.ShapeDtypeStruct((B_pad, nc_pad), jnp.float32),
        grid_spec=pltpu.PrefetchScalarGridSpec(
            num_scalar_prefetch=0,
            grid=grid,
            in_specs=[
                pl.BlockSpec((tb, tk), lambda b, k: (b, k)),            # img tile (streamed)
                pl.BlockSpec((tk, hidden), lambda b, k: (k, 0)),        # W_fused tile (streamed)
                pl.BlockSpec((tb, bert_out), lambda b, k: (b, 0)),      # CLS emb (per-batch resident)
                pl.BlockSpec((bert_out, bert_out), lambda b, k: (0, 0)),  # Wpool (resident)
                pl.BlockSpec((1, bert_out), lambda b, k: (0, 0)),       # bpool
                pl.BlockSpec((bert_out, hidden), lambda b, k: (0, 0)),  # W1 text half (resident)
                pl.BlockSpec((1, hidden), lambda b, k: (0, 0)),         # fused b1
                pl.BlockSpec((hidden, nc_pad), lambda b, k: (0, 0)),    # W2 (padded, resident)
                pl.BlockSpec((1, nc_pad), lambda b, k: (0, 0)),         # b2 (padded)
            ],
            out_specs=pl.BlockSpec((tb, nc_pad), lambda b, k: (b, 0)),
            scratch_shapes=[pltpu.VMEM((tb, hidden), jnp.float32)],     # img-path accumulator
        ),
        compiler_params=pltpu.CompilerParams(
            dimension_semantics=("parallel", "arbitrary")),
    )(img_p, wf_p, cls_p, wpool, params["b_pool"], w1t, b1_fused, w2_p, b2_p)

    return out[:B, :num_classes]


def init_params(key, *, img_flat_dim, vocab_size, num_classes,
                cnn_out=512, bert_out=768, hidden=512):
    ks = jax.random.split(key, 8)
    s = 0.02
    w1 = s * jax.random.normal(ks[4], (cnn_out + bert_out, hidden), jnp.float32)
    return {
        "embedding": s * jax.random.normal(ks[0], (vocab_size, bert_out), jnp.float32),
        "w_img":  s * jax.random.normal(ks[1], (img_flat_dim, cnn_out), jnp.float32),
        "b_img":  jnp.zeros((1, cnn_out), jnp.float32),
        "w_pool": s * jax.random.normal(ks[2], (bert_out, bert_out), jnp.float32),
        "b_pool": jnp.zeros((1, bert_out), jnp.float32),
        "w1_img": w1[:cnn_out],                    # rows matching img_feat in the concat
        "w1_txt": w1[cnn_out:],                    # rows matching text_feat in the concat
        "b1":     jnp.zeros((1, hidden), jnp.float32),
        "w2":     s * jax.random.normal(ks[5], (hidden, num_classes), jnp.float32),
        "b2":     jnp.zeros((1, num_classes), jnp.float32),
    }


def reference_forward(image, input_ids, attention_mask, params):
    """Pure-JAX f32 reference of the same math (unfused), for a numerical sanity check."""
    B = image.shape[0]
    img_flat = image.reshape(B, -1).astype(jnp.float32)
    emb = jnp.take(params["embedding"], input_ids, axis=0)
    cls_emb = emb[:, 0, :].astype(jnp.float32)
    img_feat = img_flat @ params["w_img"] + params["b_img"]
    text_feat = jnp.tanh(cls_emb @ params["w_pool"] + params["b_pool"])
    combined = jnp.concatenate([img_feat, text_feat], axis=1)
    w1 = jnp.concatenate([params["w1_img"], params["w1_txt"]], axis=0)
    h = jnp.maximum(combined @ w1 + params["b1"], 0.0)
    return h @ params["w2"] + params["b2"]


if __name__ == "__main__":
    key = jax.random.PRNGKey(0)
    k_img, k_ids, k_param = jax.random.split(key, 3)

    B, C, H, W = 2, 3, 16, 16          # image: (2, 3, 16, 16)  NCHW
    S = 8                              # sequence length
    vocab_size = 1000
    num_classes = 16

    image = jax.random.normal(k_img, (B, C, H, W), jnp.float32)
    input_ids = jax.random.randint(k_ids, (B, S), 0, vocab_size, jnp.int32)
    attention_mask = jnp.ones((B, S), jnp.int32)

    params = init_params(k_param, img_flat_dim=C * H * W,
                         vocab_size=vocab_size, num_classes=num_classes)

    out = hybrid_document_classifier(image, input_ids, attention_mask, params)
    out = jax.block_until_ready(out)

    ref = reference_forward(image, input_ids, attention_mask, params)
    assert out.shape == (B, num_classes)
    # bf16 weight/activation streaming with f32 accumulation -> loose-but-tight tolerance.
    assert jnp.allclose(out, ref, atol=2e-2, rtol=2e-2), "mismatch vs JAX reference"

    print("KERNEL_OK")
</pallas_src>

<mosaic_0001>
module attributes {stable_mosaic.version = 11 : i64} {
  func.func @hybrid_kernel(%arg0: i32, %arg1: i32, %arg2: memref<8x256xbf16, #tpu.memory_space<vmem>>, %arg3: memref<256x512xbf16, #tpu.memory_space<vmem>>, %arg4: memref<8x768xbf16, #tpu.memory_space<vmem>>, %arg5: memref<768x768xbf16, #tpu.memory_space<vmem>>, %arg6: memref<1x768xf32, #tpu.memory_space<vmem>>, %arg7: memref<768x512xbf16, #tpu.memory_space<vmem>>, %arg8: memref<1x512xf32, #tpu.memory_space<vmem>>, %arg9: memref<512x128xbf16, #tpu.memory_space<vmem>>, %arg10: memref<1x128xf32, #tpu.memory_space<vmem>>, %arg11: memref<8x128xf32, #tpu.memory_space<vmem>>, %arg12: memref<8x512xf32, #tpu.memory_space<vmem>>) attributes {dimension_semantics = [#tpu.dimension_semantics<parallel>, #tpu.dimension_semantics<arbitrary>], iteration_bounds = array<i64: 1, 3>, scalar_prefetch = 0 : i64, scratch_operands = 1 : i64, tpu.core_type = #tpu.core_type<tc>, window_params = [{transform_indices = @transform_0, window_bounds = array<i64: 8, 256>}, {transform_indices = @transform_1, window_bounds = array<i64: 256, 512>}, {transform_indices = @transform_2, window_bounds = array<i64: 8, 768>}, {pipeline_mode = #tpu.pipeline_mode<synchronous>, transform_indices = @transform_3, window_bounds = array<i64: 768, 768>}, {pipeline_mode = #tpu.pipeline_mode<synchronous>, transform_indices = @transform_4, window_bounds = array<i64: 1, 768>}, {pipeline_mode = #tpu.pipeline_mode<synchronous>, transform_indices = @transform_5, window_bounds = array<i64: 768, 512>}, {pipeline_mode = #tpu.pipeline_mode<synchronous>, transform_indices = @transform_6, window_bounds = array<i64: 1, 512>}, {pipeline_mode = #tpu.pipeline_mode<synchronous>, transform_indices = @transform_7, window_bounds = array<i64: 512, 128>}, {pipeline_mode = #tpu.pipeline_mode<synchronous>, transform_indices = @transform_8, window_bounds = array<i64: 1, 128>}, {transform_indices = @transform_9, window_bounds = array<i64: 8, 128>}]} {
    %c0_i32 = arith.constant 0 : i32
    %0 = arith.cmpi eq, %arg1, %c0_i32 : i32
    %1 = arith.extui %0 : i1 to i32
    %c0_i32_0 = arith.constant 0 : i32
    %2 = arith.cmpi ne, %1, %c0_i32_0 : i32
    scf.if %2 {
      %cst_9 = arith.constant 0.000000e+00 : f32
      %12 = vector.broadcast %cst_9 : f32 to vector<8x512xf32>
      %c0_10 = arith.constant 0 : index
      %c0_11 = arith.constant 0 : index
      %13 = vector.load %arg12[%c0_10, %c0_11] : memref<8x512xf32, #tpu.memory_space<vmem>>, vector<8x512xf32>
      tpu.vector_store %arg12[%c0_10, %c0_11], %12 {strides = array<i32>} : memref<8x512xf32, #tpu.memory_space<vmem>>, vector<8x512xf32>,
    } else {
    }
    %c0 = arith.constant 0 : index
    %c0_1 = arith.constant 0 : index
    %3 = vector.load %arg12[%c0, %c0_1] : memref<8x512xf32, #tpu.memory_space<vmem>>, vector<8x512xf32>
    %c0_2 = arith.constant 0 : index
    %c0_3 = arith.constant 0 : index
    %4 = vector.load %arg2[%c0_2, %c0_3] : memref<8x256xbf16, #tpu.memory_space<vmem>>, vector<8x256xbf16>
    %c0_4 = arith.constant 0 : index
    %c0_5 = arith.constant 0 : index
    %5 = vector.load %arg3[%c0_4, %c0_5] : memref<256x512xbf16, #tpu.memory_space<vmem>>, vector<256x512xbf16>
    %cst = arith.constant dense<0.000000e+00> : vector<8x512xf32>
    %6 = tpu.matmul %4, %5, %cst {dimension_numbers = #tpu.dot_dimension_numbers<[1], [0], [0], [1], [0, 0, 1, 1], [], []>} : vector<8x256xbf16>, vector<256x512xbf16>, vector<8x512xf32> -> vector<8x512xf32>
    %7 = arith.addf %3, %6 : vector<8x512xf32>
    %c0_6 = arith.constant 0 : index
    %c0_7 = arith.constant 0 : index
    %8 = vector.load %arg12[%c0_6, %c0_7] : memref<8x512xf32, #tpu.memory_space<vmem>>, vector<8x512xf32>
    tpu.vector_store %arg12[%c0_6, %c0_7], %7 {strides = array<i32>} : memref<8x512xf32, #tpu.memory_space<vmem>>, vector<8x512xf32>,
    %c2_i32 = arith.constant 2 : i32
    %9 = arith.cmpi eq, %arg1, %c2_i32 : i32
    %10 = arith.extui %9 : i1 to i32
    %c0_i32_8 = arith.constant 0 : i32
    %11 = arith.cmpi ne, %10, %c0_i32_8 : i32
    scf.if %11 {
      %c0_9 = arith.constant 0 : index
      %c0_10 = arith.constant 0 : index
      %12 = vector.load %arg4[%c0_9, %c0_10] : memref<8x768xbf16, #tpu.memory_space<vmem>>, vector<8x768xbf16>
      %c0_11 = arith.constant 0 : index
      %c0_12 = arith.constant 0 : index
      %13 = vector.load %arg5[%c0_11, %c0_12] : memref<768x768xbf16, #tpu.memory_space<vmem>>, vector<768x768xbf16>
      %cst_13 = arith.constant dense<0.000000e+00> : vector<8x768xf32>
      %14 = tpu.matmul %12, %13, %cst_13 {dimension_numbers = #tpu.dot_dimension_numbers<[1], [0], [0], [1], [0, 0, 1, 1], [], []>} : vector<8x768xbf16>, vector<768x768xbf16>, vector<8x768xf32> -> vector<8x768xf32>
      %c0_14 = arith.constant 0 : index
      %c0_15 = arith.constant 0 : index
      %15 = vector.load %arg6[%c0_14, %c0_15] : memref<1x768xf32, #tpu.memory_space<vmem>>, vector<1x768xf32>
      %16 = vector.broadcast %15 : vector<1x768xf32> to vector<8x768xf32>
      %17 = arith.addf %14, %16 : vector<8x768xf32>
      %18 = math.tanh %17 : vector<8x768xf32>
      %c0_16 = arith.constant 0 : index
      %c0_17 = arith.constant 0 : index
      %19 = vector.load %arg12[%c0_16, %c0_17] : memref<8x512xf32, #tpu.memory_space<vmem>>, vector<8x512xf32>
      %20 = arith.truncf %18 : vector<8x768xf32> to vector<8x768xbf16>
      %c0_18 = arith.constant 0 : index
      %c0_19 = arith.constant 0 : index
      %21 = vector.load %arg7[%c0_18, %c0_19] : memref<768x512xbf16, #tpu.memory_space<vmem>>, vector<768x512xbf16>
      %cst_20 = arith.constant dense<0.000000e+00> : vector<8x512xf32>
      %22 = tpu.matmul %20, %21, %cst_20 {dimension_numbers = #tpu.dot_dimension_numbers<[1], [0], [0], [1], [0, 0, 1, 1], [], []>} : vector<8x768xbf16>, vector<768x512xbf16>, vector<8x512xf32> -> vector<8x512xf32>
      %23 = arith.addf %19, %22 : vector<8x512xf32>
      %c0_21 = arith.constant 0 : index
      %c0_22 = arith.constant 0 : index
      %24 = vector.load %arg8[%c0_21, %c0_22] : memref<1x512xf32, #tpu.memory_space<vmem>>, vector<1x512xf32>
      %25 = vector.broadcast %24 : vector<1x512xf32> to vector<8x512xf32>
      %26 = arith.addf %23, %25 : vector<8x512xf32>
      %cst_23 = arith.constant 0.000000e+00 : f32
      %27 = vector.broadcast %cst_23 : f32 to vector<8x512xf32>
      %28 = arith.maximumf %26, %27 : vector<8x512xf32>
      %29 = arith.truncf %28 : vector<8x512xf32> to vector<8x512xbf16>
      %c0_24 = arith.constant 0 : index
      %c0_25 = arith.constant 0 : index
      %30 = vector.load %arg9[%c0_24, %c0_25] : memref<512x128xbf16, #tpu.memory_space<vmem>>, vector<512x128xbf16>
      %cst_26 = arith.constant dense<0.000000e+00> : vector<8x128xf32>
      %31 = tpu.matmul %29, %30, %cst_26 {dimension_numbers = #tpu.dot_dimension_numbers<[1], [0], [0], [1], [0, 0, 1, 1], [], []>} : vector<8x512xbf16>, vector<512x128xbf16>, vector<8x128xf32> -> vector<8x128xf32>
      %c0_27 = arith.constant 0 : index
      %c0_28 = arith.constant 0 : index
      %32 = vector.load %arg10[%c0_27, %c0_28] : memref<1x128xf32, #tpu.memory_space<vmem>>, vector<1x128xf32>
      %33 = vector.broadcast %32 : vector<1x128xf32> to vector<8x128xf32>
      %34 = arith.addf %31, %33 : vector<8x128xf32>
      %c0_29 = arith.constant 0 : index
      %c0_30 = arith.constant 0 : index
      %35 = vector.load %arg11[%c0_29, %c0_30] : memref<8x128xf32, #tpu.memory_space<vmem>>, vector<8x128xf32>
      tpu.vector_store %arg11[%c0_29, %c0_30], %34 {strides = array<i32>} : memref<8x128xf32, #tpu.memory_space<vmem>>, vector<8x128xf32>,
    } else {
    }
    return
  }
  func.func @transform_0(%arg0: i32, %arg1: i32) -> (i32, i32) {
    %c0_i32 = arith.constant 0 : i32
    return %arg0, %arg1 : i32, i32
  }
  func.func @transform_1(%arg0: i32, %arg1: i32) -> (i32, i32) {
    %c0_i32 = arith.constant 0 : i32
    %c0_i32_0 = arith.constant 0 : i32
    return %arg1, %c0_i32 : i32, i32
  }
  func.func @transform_2(%arg0: i32, %arg1: i32) -> (i32, i32) {
    %c0_i32 = arith.constant 0 : i32
    %c0_i32_0 = arith.constant 0 : i32
    return %arg0, %c0_i32 : i32, i32
  }
  func.func @transform_3(%arg0: i32, %arg1: i32) -> (i32, i32) {
    %c0_i32 = arith.constant 0 : i32
    %c0_i32_0 = arith.constant 0 : i32
    %c0_i32_1 = arith.constant 0 : i32
    return %c0_i32, %c0_i32_0 : i32, i32
  }
  func.func @transform_4(%arg0: i32, %arg1: i32) -> (i32, i32) {
    %c0_i32 = arith.constant 0 : i32
    %c0_i32_0 = arith.constant 0 : i32
    %c0_i32_1 = arith.constant 0 : i32
    return %c0_i32, %c0_i32_0 : i32, i32
  }
  func.func @transform_5(%arg0: i32, %arg1: i32) -> (i32, i32) {
    %c0_i32 = arith.constant 0 : i32
    %c0_i32_0 = arith.constant 0 : i32
    %c0_i32_1 = arith.constant 0 : i32
    return %c0_i32, %c0_i32_0 : i32, i32
  }
  func.func @transform_6(%arg0: i32, %arg1: i32) -> (i32, i32) {
    %c0_i32 = arith.constant 0 : i32
    %c0_i32_0 = arith.constant 0 : i32
    %c0_i32_1 = arith.constant 0 : i32
    return %c0_i32, %c0_i32_0 : i32, i32
  }
  func.func @transform_7(%arg0: i32, %arg1: i32) -> (i32, i32) {
    %c0_i32 = arith.constant 0 : i32
    %c0_i32_0 = arith.constant 0 : i32
    %c0_i32_1 = arith.constant 0 : i32
    return %c0_i32, %c0_i32_0 : i32, i32
  }
  func.func @transform_8(%arg0: i32, %arg1: i32) -> (i32, i32) {
    %c0_i32 = arith.constant 0 : i32
    %c0_i32_0 = arith.constant 0 : i32
    %c0_i32_1 = arith.constant 0 : i32
    return %c0_i32, %c0_i32_0 : i32, i32
  }
  func.func @transform_9(%arg0: i32, %arg1: i32) -> (i32, i32) {
    %c0_i32 = arith.constant 0 : i32
    %c0_i32_0 = arith.constant 0 : i32
    return %arg0, %c0_i32 : i32, i32
  }
}

</mosaic_0001>

<llo_original>
// kernel: tpu_custom_call.1
$region0: #{tpu_custom_call.1}
  #allocation0 [shape = 'u32[]', space=smem, size = 0x4, offset = 0x4, fixed_abs, tag = 'smem constant byte address 0x4 - core index']
  #allocation1 [shape = 'u32[144,128]{1,0:T(1,128)}', space=vmem, size = 0x12000, scoped, tag = 'internal scratch']
  #allocation2 [shape = 'f32[8,512]{1,0:T(8,128)}', space=vmem, size = 0x4000, scoped, tag = 'scratch operand']
  %s0 = inlined_call_operand.hbm [shape: bf16[8,768], index: 0, kind: input, shape index: {}]
  %s1 = inlined_call_operand.hbm [shape: bf16[768,512], index: 1, kind: input, shape index: {}]
  %s2 = inlined_call_operand.hbm [shape: bf16[8,768], index: 2, kind: input, shape index: {}]
  %s3 = inlined_call_operand.hbm [shape: bf16[768,768], index: 3, kind: input, shape index: {}]
  %s4 = inlined_call_operand.hbm [shape: f32[1,768], index: 4, kind: input, shape index: {}]
  %s5 = inlined_call_operand.hbm [shape: bf16[768,512], index: 5, kind: input, shape index: {}]
  %s6 = inlined_call_operand.hbm [shape: f32[1,512], index: 6, kind: input, shape index: {}]
  %s7 = inlined_call_operand.hbm [shape: bf16[512,128], index: 7, kind: input, shape index: {}]
  %s8 = inlined_call_operand.hbm [shape: f32[1,128], index: 8, kind: input, shape index: {}]
  %s9 = inlined_call_operand.hbm [shape: f32[8,128], index: 9, kind: output, shape index: {}]
  %s10 = sld [smem:[#allocation0]]
  $region113: #{tpu_custom_call.1} parent=0
    _
  %s12 = ssub.s32 1, %s10
  %s13 = scalar_select 0, %s12, %s10
  $region1: #{tpu_custom_call.1} parent=0
    #allocation3 [shape = 'u8[8192]{0}', space=vmem, size = 0x2000, scoped, tag = 'input window, operand 0']
    #allocation4 [shape = 's32[2]{0}', space=sflag, size = 0x8, scoped, tag = 'scoped memory for tpu_custom_call.1']
    #allocation5 [shape = 's32[2]{0}', space=sflag, size = 0x8, scoped, tag = 'scoped memory for tpu_custom_call.1']
    #allocation6 [shape = 'u8[524288]{0}', space=vmem, size = 0x80000, scoped, tag = 'input window, operand 1']
    #allocation7 [shape = 's32[2]{0}', space=sflag, size = 0x8, scoped, tag = 'scoped memory for tpu_custom_call.1']
    #allocation8 [shape = 'u8[12288]{0}', space=vmem, size = 0x3000, scoped, tag = 'input window, operand 2, single buffered']
    #allocation9 [shape = 'u8[1179648]{0}', space=vmem, size = 0x120000, scoped, tag = 'input window, operand 3, single buffered']
    #allocation10 [shape = 's32[1]{0}', space=sflag, size = 0x4, scoped, tag = 'scoped memory for tpu_custom_call.1']
    #allocation11 [shape = 'u8[3072]{0}', space=vmem, size = 0xc00, scoped, tag = 'input window, operand 4, single buffered']
    #allocation12 [shape = 'u8[786432]{0}', space=vmem, size = 0xc0000, scoped, tag = 'input window, operand 5, single buffered']
    #allocation13 [shape = 's32[1]{0}', space=sflag, size = 0x4, scoped, tag = 'scoped memory for tpu_custom_call.1']
    #allocation14 [shape = 'u8[2048]{0}', space=vmem, size = 0x800, scoped, tag = 'input window, operand 6, single buffered']
    #allocation15 [shape = 'u8[131072]{0}', space=vmem, size = 0x20000, scoped, tag = 'input window, operand 7, single buffered']
    #allocation16 [shape = 's32[1]{0}', space=sflag, size = 0x4, scoped, tag = 'scoped memory for tpu_custom_call.1']
    #allocation17 [shape = 'u8[512]{0}', space=vmem, size = 0x400, scoped, tag = 'input window, operand 8, single buffered']
    #allocation18 [shape = 'u8[4096]{0}', space=vmem, size = 0x1000, scoped, tag = 'output window, operand 0, single buffered']
    %14 = vsyncpa [#allocation4], 0
    %s15 = scalar_lea.sflag [#allocation4], 1
    %16 = vsyncpa %s15, 0
    %17 = vsyncpa [#allocation7], 0
    %s18 = scalar_lea.sflag [#allocation7], 1
    %19 = vsyncpa %s18, 0
    %20 = vsyncpa [#allocation10], 0
    %21 = vsyncpa [#allocation13], 0
    %22 = vsyncpa [#allocation16], 0
    %23 = vsyncpa [#allocation5], 0
    loop: start=0, step=1, limit=5
    $region2: #{tpu_custom_call.1} parent=1 // loop_pre_header
      _
    $region3: #{tpu_custom_call.1} parent=1 // loop_header
      %s25 = sphi 0, %s29
      %p26 = scmp.ge.s32.totalorder %s25, 5
      %s32 = sphi 0, %s44
      %s33 = sphi 0, %s40
      %s34 = sphi 0, %s32
      %s35 = sphi 0, %s33
      %s36 = sphi 0, %s34
      %s37 = sphi 0, %s35
      %s49 = sphi 0, %s51
      %s52 = sphi 0, %s49
      %s53 = sphi 0, %s52
      %s69 = sphi 0, %s53
      %s75 = sphi 0, %s77
      %s78 = sphi 0, %s75
      %s79 = sphi 0, %s78
      %s95 = sphi 0, %s79
      %s101 = sphi 0, %s103
      %s104 = sphi 0, %s101
      %s105 = sphi 0, %s104
      %s121 = sphi 0, %s105
      %s125 = sphi 0, %s125
      %s127 = sphi 0, %s125
      %s128 = sphi 0, %s127
      %s142 = sphi 0, %s128
      %s146 = sphi 0, %s146
      %s148 = sphi 0, %s146
      %s149 = sphi 0, %s148
      %s163 = sphi 0, %s149
      %s167 = sphi 0, %s167
      %s169 = sphi 0, %s167
      %s170 = sphi 0, %s169
      %s184 = sphi 0, %s170
      %s188 = sphi 0, %s188
      %s190 = sphi 0, %s188
      %s191 = sphi 0, %s190
      %s205 = sphi 0, %s191
      %s209 = sphi 0, %s209
      %s211 = sphi 0, %s209
      %s212 = sphi 0, %s211
      %s226 = sphi 0, %s212
      %s230 = sphi 0, %s230
      %s232 = sphi 0, %s230
      %s233 = sphi 0, %s232
      %s247 = sphi 0, %s233
      %s253 = sphi 0, %s255
      %s256 = sphi 0, %s253
      %s257 = sphi 0, %s256
      %s273 = sphi 0, %s257
    $region4: #{tpu_custom_call.1} parent=1 // loop_header_branch
      %28 = sbr.rel (%p26) target = $region8
    $region5: #{tpu_custom_call.1} parent=1 // loop_body
      %s30 = ssub.s32 %s25, 1
      %s31 = ssub.s32 %s25, 2
      %s38 = sadd.s32 1, %s33
      %p39 = scmp.ge.s32.totalorder %s38, 3
      %s40 = scalar_select %p39, 0, %s38
      %s41 = sadd.s32 1, %s32
      %s42 = scalar_select %p39, %s41, %s32
      %p43 = scmp.ge.s32.totalorder %s42, 1
      %s44 = scalar_select %p43, 0, %s42
      %s45 = ssub.s32 %s32, %s44
      %s46 = ssub.s32 %s33, %s40
      %s47 = sor.u32 %s45, %s46
      %p48 = scmp.eq.s32.totalorder %s47, 0
      %s50 = sadd.s32 %s49, 1
      %s51 = scalar_select %p48, %s49, %s50
      %p54 = pneg %p48
      %p55 = scmp.eq.s32.totalorder %s25, 2
      %p56 = por %p54, %p55
      %p57 = scmp.ne.s32.totalorder %s49, %s52
      %p58 = scmp.eq.s32.totalorder %s25, 0
      %p59 = por %p57, %p58
      %p60 = scmp.ne.s32.totalorder %s49, %s52
      %p61 = scmp.eq.s32.totalorder %s30, 2
      %p62 = por %p60, %p61
      %p63 = scmp.ne.s32.totalorder %s52, %s53
      %p64 = scmp.eq.s32.totalorder %s30, 0
      %p65 = por %p63, %p64
      %p66 = scmp.ne.s32.totalorder %s52, %s53
      %p67 = scmp.eq.s32.totalorder %s31, 2
      %p68 = por %p66, %p67
      %p70 = scmp.ne.s32.totalorder %s53, %s69
      %p71 = scmp.eq.s32.totalorder %s31, 0
      %p72 = por %p70, %p71
      %s73 = ssub.s32 %s33, %s40
      %p74 = scmp.eq.s32.totalorder %s73, 0
      %s76 = sadd.s32 %s75, 1
      %s77 = scalar_select %p74, %s75, %s76
      %p80 = pneg %p74
      %p81 = scmp.eq.s32.totalorder %s25, 2
      %p82 = por %p80, %p81
      %p83 = scmp.ne.s32.totalorder %s75, %s78
      %p84 = scmp.eq.s32.totalorder %s25, 0
      %p85 = por %p83, %p84
      %p86 = scmp.ne.s32.totalorder %s75, %s78
      %p87 = scmp.eq.s32.totalorder %s30, 2
      %p88 = por %p86, %p87
      %p89 = scmp.ne.s32.totalorder %s78, %s79
      %p90 = scmp.eq.s32.totalorder %s30, 0
      %p91 = por %p89, %p90
      %p92 = scmp.ne.s32.totalorder %s78, %s79
      %p93 = scmp.eq.s32.totalorder %s31, 2
      %p94 = por %p92, %p93
      %p96 = scmp.ne.s32.totalorder %s79, %s95
      %p97 = scmp.eq.s32.totalorder %s31, 0
      %p98 = por %p96, %p97
      %s99 = ssub.s32 %s32, %s44
      %p100 = scmp.eq.s32.totalorder %s99, 0
      %s102 = sadd.s32 %s101, 1
      %s103 = scalar_select %p100, %s101, %s102
      %p106 = pneg %p100
      %p107 = scmp.eq.s32.totalorder %s25, 2
      %p108 = por %p106, %p107
      %p109 = scmp.ne.s32.totalorder %s101, %s104
      %p110 = scmp.eq.s32.totalorder %s25, 0
      %p111 = por %p109, %p110
      %p112 = scmp.ne.s32.totalorder %s101, %s104
      %p113 = scmp.eq.s32.totalorder %s30, 2
      %p114 = por %p112, %p113
      %p115 = scmp.ne.s32.totalorder %s104, %s105
      %p116 = scmp.eq.s32.totalorder %s30, 0
      %p117 = por %p115, %p116
      %p118 = scmp.ne.s32.totalorder %s104, %s105
      %p119 = scmp.eq.s32.totalorder %s31, 2
      %p120 = por %p118, %p119
      %p122 = scmp.ne.s32.totalorder %s105, %s121
      %p123 = scmp.eq.s32.totalorder %s31, 0
      %p124 = por %p122, %p123
      %s126 = sadd.s32 %s125, 1
      %p129 = scmp.eq.s32.totalorder %s25, 2
      %p130 = scmp.ne.s32.totalorder %s125, %s127
      %p131 = scmp.eq.s32.totalorder %s25, 0
      %p132 = por %p130, %p131
      %p133 = scmp.ne.s32.totalorder %s125, %s127
      %p134 = scmp.eq.s32.totalorder %s30, 2
      %p135 = por %p133, %p134
      %p136 = scmp.ne.s32.totalorder %s127, %s128
      %p137 = scmp.eq.s32.totalorder %s30, 0
      %p138 = por %p136, %p137
      %p139 = scmp.ne.s32.totalorder %s127, %s128
      %p140 = scmp.eq.s32.totalorder %s31, 2
      %p141 = por %p139, %p140
      %p143 = scmp.ne.s32.totalorder %s128, %s142
      %p144 = scmp.eq.s32.totalorder %s31, 0
      %p145 = por %p143, %p144
      %s147 = sadd.s32 %s146, 1
      %p150 = scmp.eq.s32.totalorder %s25, 2
      %p151 = scmp.ne.s32.totalorder %s146, %s148
      %p152 = scmp.eq.s32.totalorder %s25, 0
      %p153 = por %p151, %p152
      %p154 = scmp.ne.s32.totalorder %s146, %s148
      %p155 = scmp.eq.s32.totalorder %s30, 2
      %p156 = por %p154, %p155
      %p157 = scmp.ne.s32.totalorder %s148, %s149
      %p158 = scmp.eq.s32.totalorder %s30, 0
      %p159 = por %p157, %p158
      %p160 = scmp.ne.s32.totalorder %s148, %s149
      %p161 = scmp.eq.s32.totalorder %s31, 2
      %p162 = por %p160, %p161
      %p164 = scmp.ne.s32.totalorder %s149, %s163
      %p165 = scmp.eq.s32.totalorder %s31, 0
      %p166 = por %p164, %p165
      %s168 = sadd.s32 %s167, 1
      %p171 = scmp.eq.s32.totalorder %s25, 2
      %p172 = scmp.ne.s32.totalorder %s167, %s169
      %p173 = scmp.eq.s32.totalorder %s25, 0
      %p174 = por %p172, %p173
      %p175 = scmp.ne.s32.totalorder %s167, %s169
      %p176 = scmp.eq.s32.totalorder %s30, 2
      %p177 = por %p175, %p176
      %p178 = scmp.ne.s32.totalorder %s169, %s170
      %p179 = scmp.eq.s32.totalorder %s30, 0
      %p180 = por %p178, %p179
      %p181 = scmp.ne.s32.totalorder %s169, %s170
      %p182 = scmp.eq.s32.totalorder %s31, 2
      %p183 = por %p181, %p182
      %p185 = scmp.ne.s32.totalorder %s170, %s184
      %p186 = scmp.eq.s32.totalorder %s31, 0
      %p187 = por %p185, %p186
      %s189 = sadd.s32 %s188, 1
      %p192 = scmp.eq.s32.totalorder %s25, 2
      %p193 = scmp.ne.s32.totalorder %s188, %s190
      %p194 = scmp.eq.s32.totalorder %s25, 0
      %p195 = por %p193, %p194
      %p196 = scmp.ne.s32.totalorder %s188, %s190
      %p197 = scmp.eq.s32.totalorder %s30, 2
      %p198 = por %p196, %p197
      %p199 = scmp.ne.s32.totalorder %s190, %s191
      %p200 = scmp.eq.s32.totalorder %s30, 0
      %p201 = por %p199, %p200
      %p202 = scmp.ne.s32.totalorder %s190, %s191
      %p203 = scmp.eq.s32.totalorder %s31, 2
      %p204 = por %p202, %p203
      %p206 = scmp.ne.s32.totalorder %s191, %s205
      %p207 = scmp.eq.s32.totalorder %s31, 0
      %p208 = por %p206, %p207
      %s210 = sadd.s32 %s209, 1
      %p213 = scmp.eq.s32.totalorder %s25, 2
      %p214 = scmp.ne.s32.totalorder %s209, %s211
      %p215 = scmp.eq.s32.totalorder %s25, 0
      %p216 = por %p214, %p215
      %p217 = scmp.ne.s32.totalorder %s209, %s211
      %p218 = scmp.eq.s32.totalorder %s30, 2
      %p219 = por %p217, %p218
      %p220 = scmp.ne.s32.totalorder %s211, %s212
      %p221 = scmp.eq.s32.totalorder %s30, 0
      %p222 = por %p220, %p221
      %p223 = scmp.ne.s32.totalorder %s211, %s212
      %p224 = scmp.eq.s32.totalorder %s31, 2
      %p225 = por %p223, %p224
      %p227 = scmp.ne.s32.totalorder %s212, %s226
      %p228 = scmp.eq.s32.totalorder %s31, 0
      %p229 = por %p227, %p228
      %s231 = sadd.s32 %s230, 1
      %p234 = scmp.eq.s32.totalorder %s25, 2
      %p235 = scmp.ne.s32.totalorder %s230, %s232
      %p236 = scmp.eq.s32.totalorder %s25, 0
      %p237 = por %p235, %p236
      %p238 = scmp.ne.s32.totalorder %s230, %s232
      %p239 = scmp.eq.s32.totalorder %s30, 2
      %p240 = por %p238, %p239
      %p241 = scmp.ne.s32.totalorder %s232, %s233
      %p242 = scmp.eq.s32.totalorder %s30, 0
      %p243 = por %p241, %p242
      %p244 = scmp.ne.s32.totalorder %s232, %s233
      %p245 = scmp.eq.s32.totalorder %s31, 2
      %p246 = por %p244, %p245
      %p248 = scmp.ne.s32.totalorder %s233, %s247
      %p249 = scmp.eq.s32.totalorder %s31, 0
      %p250 = por %p248, %p249
      %s251 = ssub.s32 %s32, %s44
      %p252 = scmp.eq.s32.totalorder %s251, 0
      %s254 = sadd.s32 %s253, 1
      %s255 = scalar_select %p252, %s253, %s254
      %p258 = pneg %p252
      %p259 = scmp.eq.s32.totalorder %s25, 2
      %p260 = por %p258, %p259
      %p261 = scmp.ne.s32.totalorder %s253, %s256
      %p262 = scmp.eq.s32.totalorder %s25, 0
      %p263 = por %p261, %p262
      %p264 = scmp.ne.s32.totalorder %s253, %s256
      %p265 = scmp.eq.s32.totalorder %s30, 2
      %p266 = por %p264, %p265
      %p267 = scmp.ne.s32.totalorder %s256, %s257
      %p268 = scmp.eq.s32.totalorder %s30, 0
      %p269 = por %p267, %p268
      %p270 = scmp.ne.s32.totalorder %s256, %s257
      %p271 = scmp.eq.s32.totalorder %s31, 2
      %p272 = por %p270, %p271
      %p274 = scmp.ne.s32.totalorder %s257, %s273
      %p275 = scmp.eq.s32.totalorder %s31, 0
      %p276 = por %p274, %p275
      %p277 = scmp.le.s32.totalorder 1, %s25
      %p278 = scmp.lt.s32.totalorder %s25, 4
      %p279 = pnand %p277, %p278
      %p280 = pneg %p279
      // Predicated region
      $region9: #{tpu_custom_call.1} parent=5 // pred_check
        _
      $region10: #{tpu_custom_call.1} parent=5 // pred_check_branch
        %282 = sbr.rel (%p279) target = $region12
      $region11: #{tpu_custom_call.1} parent=5 // pred_region
        %s283 = ssub.s32 %s25, 1
        // Predicated region
        $region13: #{tpu_custom_call.1} parent=11 // pred_check
          %p284 = pneg %p117
        $region14: #{tpu_custom_call.1} parent=11 // pred_check_branch
          %286 = sbr.rel (%p284) target = $region16
        $region15: #{tpu_custom_call.1} parent=11 // pred_region
          %s288 = ssub.s32 384, 384
          %289 = vsyncadd [#allocation7], %s288
          %s290 = smul.addr %s34, 6
          %s291 = smul.addr %s290, 64
          %s292 = scalar_lea.hbm %s2, %s291
          %s294 = sshll.u32 [#allocation8], 4
          %s295 = int_to_ptr.vmem [resolvable:$true] %s294
          %297 = dma.hbm_to_vmem [thread:$0]  %s292, 384, %s295, [#allocation7]
        $region16: #{tpu_custom_call.1} parent=11 // pred_fallthru
          _
        // Predicated region
        $region17: #{tpu_custom_call.1} parent=11 // pred_check
          %p298 = pneg %p138
        $region18: #{tpu_custom_call.1} parent=11 // pred_check_branch
          %300 = sbr.rel (%p298) target = $region20
        $region19: #{tpu_custom_call.1} parent=11 // pred_region
          %s302 = ssub.s32 36864, 36864
          %303 = vsyncadd [#allocation10], %s302
          %s304 = sshll.u32 [#allocation9], 4
          %s305 = int_to_ptr.vmem [resolvable:$true] %s304
          %310 = dma.hbm_to_vmem [thread:$0]  %s3, 36864, %s305, [#allocation10], 384, 384, 24
        $region20: #{tpu_custom_call.1} parent=11 // pred_fallthru
          _
        // Predicated region
        $region21: #{tpu_custom_call.1} parent=11 // pred_check
          %p311 = pneg %p159
        $region22: #{tpu_custom_call.1} parent=11 // pred_check_branch
          %313 = sbr.rel (%p311) target = $region24
        $region23: #{tpu_custom_call.1} parent=11 // pred_region
          %s315 = ssub.s32 96, 96
          %316 = vsyncadd [#allocation10], %s315
          %s318 = sshll.u32 [#allocation11], 4
          %s319 = int_to_ptr.vmem [resolvable:$true] %s318
          %321 = dma.hbm_to_vmem [thread:$0]  %s4, 96, %s319, [#allocation10]
        $region24: #{tpu_custom_call.1} parent=11 // pred_fallthru
          _
        // Predicated region
        $region25: #{tpu_custom_call.1} parent=11 // pred_check
          %p322 = pneg %p180
        $region26: #{tpu_custom_call.1} parent=11 // pred_check_branch
          %324 = sbr.rel (%p322) target = $region28
        $region27: #{tpu_custom_call.1} parent=11 // pred_region
          %s326 = ssub.s32 24576, 24576
          %327 = vsyncadd [#allocation13], %s326
          %s328 = sshll.u32 [#allocation12], 4
          %s329 = int_to_ptr.vmem [resolvable:$true] %s328
          %334 = dma.hbm_to_vmem [thread:$0]  %s5, 24576, %s329, [#allocation13], 256, 256, 16
        $region28: #{tpu_custom_call.1} parent=11 // pred_fallthru
          _
        // Predicated region
        $region29: #{tpu_custom_call.1} parent=11 // pred_check
          %p335 = pneg %p201
        $region30: #{tpu_custom_call.1} parent=11 // pred_check_branch
          %337 = sbr.rel (%p335) target = $region32
        $region31: #{tpu_custom_call.1} parent=11 // pred_region
          %s339 = ssub.s32 64, 64
          %340 = vsyncadd [#allocation13], %s339
          %s342 = sshll.u32 [#allocation14], 4
          %s343 = int_to_ptr.vmem [resolvable:$true] %s342
          %345 = dma.hbm_to_vmem [thread:$0]  %s6, 64, %s343, [#allocation13]
        $region32: #{tpu_custom_call.1} parent=11 // pred_fallthru
          _
        // Predicated region
        $region33: #{tpu_custom_call.1} parent=11 // pred_check
          %p346 = pneg %p222
        $region34: #{tpu_custom_call.1} parent=11 // pred_check_branch
          %348 = sbr.rel (%p346) target = $region36
        $region35: #{tpu_custom_call.1} parent=11 // pred_region
          %s350 = ssub.s32 4096, 4096
          %351 = vsyncadd [#allocation16], %s350
          %s352 = sshll.u32 [#allocation15], 4
          %s353 = int_to_ptr.vmem [resolvable:$true] %s352
          %358 = dma.hbm_to_vmem [thread:$0]  %s7, 4096, %s353, [#allocation16], 64, 64, 4
        $region36: #{tpu_custom_call.1} parent=11 // pred_fallthru
          _
        // Predicated region
        $region37: #{tpu_custom_call.1} parent=11 // pred_check
          %p359 = pneg %p243
        $region38: #{tpu_custom_call.1} parent=11 // pred_check_branch
          %361 = sbr.rel (%p359) target = $region40
        $region39: #{tpu_custom_call.1} parent=11 // pred_region
          %s363 = ssub.s32 16, 16
          %364 = vsyncadd [#allocation16], %s363
          %s366 = sshll.u32 [#allocation17], 4
          %s367 = int_to_ptr.vmem [resolvable:$true] %s366
          %369 = dma.hbm_to_vmem [thread:$0]  %s8, 16, %s367, [#allocation16]
        $region40: #{tpu_custom_call.1} parent=11 // pred_fallthru
          _
      $region12: #{tpu_custom_call.1} parent=5 // pred_fallthru
        _
      %p370 = scmp.lt.s32.totalorder %s25, 3
      // Predicated region
      $region41: #{tpu_custom_call.1} parent=5 // pred_check
        %p371 = pneg %p370
      $region42: #{tpu_custom_call.1} parent=5 // pred_check_branch
        %373 = sbr.rel (%p371) target = $region44
      $region43: #{tpu_custom_call.1} parent=5 // pred_region
        // Predicated region
        $region45: #{tpu_custom_call.1} parent=43 // pred_check
          %p374 = pneg %p59
        $region46: #{tpu_custom_call.1} parent=43 // pred_check_branch
          %376 = sbr.rel (%p374) target = $region48
        $region47: #{tpu_custom_call.1} parent=43 // pred_region
          %s377 = sand.u32 %s49, 1
          %s378 = scalar_lea.sflag [#allocation4], %s377
          %s379 = sand.u32 %s49, 1
          %s380 = smul.addr %s379, 8
          %s381 = scalar_lea.vmem [#allocation3], %s380
          %s382 = smul.u32 2, %s33
          %s384 = ssub.s32 128, 128
          %385 = vsyncadd %s378, %s384
          %s386 = smul.addr %s32, 6
          %s387 = sadd.s32 %s382, %s386
          %s388 = smul.addr %s387, 64
          %s389 = scalar_lea.hbm %s0, %s388
          %s391 = sshll.u32 %s381, 4
          %s392 = int_to_ptr.vmem [resolvable:$true] %s391
          %394 = dma.hbm_to_vmem [thread:$0]  %s389, 128, %s392, %s378
        $region48: #{tpu_custom_call.1} parent=43 // pred_fallthru
          _
        // Predicated region
        $region49: #{tpu_custom_call.1} parent=43 // pred_check
          %p395 = pneg %p85
        $region50: #{tpu_custom_call.1} parent=43 // pred_check_branch
          %397 = sbr.rel (%p395) target = $region52
        $region51: #{tpu_custom_call.1} parent=43 // pred_region
          %s398 = sand.u32 %s25, 1
          %s399 = scalar_lea.sflag [#allocation7], %s398
          %s400 = sand.u32 %s75, 1
          %s401 = smul.addr %s400, 512
          %s402 = scalar_lea.vmem [#allocation6], %s401
          %s403 = smul.u32 32, %s33
          %s405 = ssub.s32 8192, 8192
          %406 = vsyncadd %s399, %s405
          %s407 = smul.addr %s403, 4
          %s408 = smul.addr %s407, 64
          %s409 = scalar_lea.hbm %s1, %s408
          %s410 = sshll.u32 %s402, 4
          %s411 = int_to_ptr.vmem [resolvable:$true] %s410
          %416 = dma.hbm_to_vmem [thread:$0]  %s409, 8192, %s411, %s399, 256, 256, 16
        $region52: #{tpu_custom_call.1} parent=43 // pred_fallthru
          _
      $region44: #{tpu_custom_call.1} parent=5 // pred_fallthru
        _
      %p417 = scmp.le.s32.totalorder 1, %s25
      %p418 = scmp.lt.s32.totalorder %s25, 4
      %p419 = pnand %p417, %p418
      %p420 = pneg %p419
      // Predicated region
      $region53: #{tpu_custom_call.1} parent=5 // pred_check
        _
      $region54: #{tpu_custom_call.1} parent=5 // pred_check_branch
        %422 = sbr.rel (%p419) target = $region56
      $region55: #{tpu_custom_call.1} parent=5 // pred_region
        %s423 = ssub.s32 %s25, 1
        %s424 = sand.u32 %s52, 1
        %s425 = scalar_lea.sflag [#allocation4], %s424
        %s426 = sand.u32 %s52, 1
        %s427 = smul.addr %s426, 8
        %s428 = scalar_lea.vmem [#allocation3], %s427
        // Predicated region
        $region57: #{tpu_custom_call.1} parent=55 // pred_check
          %p429 = pneg %p65
        $region58: #{tpu_custom_call.1} parent=55 // pred_check_branch
          %431 = sbr.rel (%p429) target = $region60
        $region59: #{tpu_custom_call.1} parent=55 // pred_region
          %432 = dma.done %s425, 128
        $region60: #{tpu_custom_call.1} parent=55 // pred_fallthru
          _
        %s433 = sand.u32 %s30, 1
        %s434 = scalar_lea.sflag [#allocation7], %s433
        %s435 = sand.u32 %s78, 1
        %s436 = smul.addr %s435, 512
        %s437 = scalar_lea.vmem [#allocation6], %s436
        // Predicated region
        $region61: #{tpu_custom_call.1} parent=55 // pred_check
          %p438 = pneg %p91
        $region62: #{tpu_custom_call.1} parent=55 // pred_check_branch
          %440 = sbr.rel (%p438) target = $region64
        $region63: #{tpu_custom_call.1} parent=55 // pred_region
          %441 = dma.done %s434, 8192
        $region64: #{tpu_custom_call.1} parent=55 // pred_fallthru
          _
        // Predicated region
        $region65: #{tpu_custom_call.1} parent=55 // pred_check
          %p442 = pneg %p117
        $region66: #{tpu_custom_call.1} parent=55 // pred_check_branch
          %444 = sbr.rel (%p442) target = $region68
        $region67: #{tpu_custom_call.1} parent=55 // pred_region
          %445 = dma.done [#allocation7], 384
        $region68: #{tpu_custom_call.1} parent=55 // pred_fallthru
          _
        // Predicated region
        $region69: #{tpu_custom_call.1} parent=55 // pred_check
          %p446 = pneg %p138
        $region70: #{tpu_custom_call.1} parent=55 // pred_check_branch
          %448 = sbr.rel (%p446) target = $region72
        $region71: #{tpu_custom_call.1} parent=55 // pred_region
          %449 = dma.done [#allocation10], 36864
        $region72: #{tpu_custom_call.1} parent=55 // pred_fallthru
          _
        // Predicated region
        $region73: #{tpu_custom_call.1} parent=55 // pred_check
          %p450 = pneg %p159
        $region74: #{tpu_custom_call.1} parent=55 // pred_check_branch
          %452 = sbr.rel (%p450) target = $region76
        $region75: #{tpu_custom_call.1} parent=55 // pred_region
          %453 = dma.done [#allocation10], 96
        $region76: #{tpu_custom_call.1} parent=55 // pred_fallthru
          _
        // Predicated region
        $region77: #{tpu_custom_call.1} parent=55 // pred_check
          %p454 = pneg %p180
        $region78: #{tpu_custom_call.1} parent=55 // pred_check_branch
          %456 = sbr.rel (%p454) target = $region80
        $region79: #{tpu_custom_call.1} parent=55 // pred_region
          %457 = dma.done [#allocation13], 24576
        $region80: #{tpu_custom_call.1} parent=55 // pred_fallthru
          _
        // Predicated region
        $region81: #{tpu_custom_call.1} parent=55 // pred_check
          %p458 = pneg %p201
        $region82: #{tpu_custom_call.1} parent=55 // pred_check_branch
          %460 = sbr.rel (%p458) target = $region84
        $region83: #{tpu_custom_call.1} parent=55 // pred_region
          %461 = dma.done [#allocation13], 64
        $region84: #{tpu_custom_call.1} parent=55 // pred_fallthru
          _
        // Predicated region
        $region85: #{tpu_custom_call.1} parent=55 // pred_check
          %p462 = pneg %p222
        $region86: #{tpu_custom_call.1} parent=55 // pred_check_branch
          %464 = sbr.rel (%p462) target = $region88
        $region87: #{tpu_custom_call.1} parent=55 // pred_region
          %465 = dma.done [#allocation16], 4096
        $region88: #{tpu_custom_call.1} parent=55 // pred_fallthru
          _
        // Predicated region
        $region89: #{tpu_custom_call.1} parent=55 // pred_check
          %p466 = pneg %p243
        $region90: #{tpu_custom_call.1} parent=55 // pred_check_branch
          %468 = sbr.rel (%p466) target = $region92
        $region91: #{tpu_custom_call.1} parent=55 // pred_region
          %469 = dma.done [#allocation16], 16
        $region92: #{tpu_custom_call.1} parent=55 // pred_fallthru
          _
        %s470 = sand.u32 %s52, 1
        %s471 = scalar_lea.sflag [#allocation4], %s470
        %s472 = sand.u32 %s52, 1
        %s473 = smul.addr %s472, 8
        %s474 = scalar_lea.vmem [#allocation3], %s473
        %p475 = pneg %p65
        %p476 = pneg %p62
        %s477 = sand.u32 %s30, 1
        %s478 = scalar_lea.sflag [#allocation7], %s477
        %s479 = sand.u32 %s78, 1
        %s480 = smul.addr %s479, 512
        %s481 = scalar_lea.vmem [#allocation6], %s480
        %p482 = pneg %p91
        %p483 = pneg %p88
        %p484 = pneg %p117
        %p485 = pneg %p114
        %p486 = pneg %p138
        %p487 = pneg %p135
        %p488 = pneg %p159
        %p489 = pneg %p156
        %p490 = pneg %p180
        %p491 = pneg %p177
        %p492 = pneg %p201
        %p493 = pneg %p198
        %p494 = pneg %p222
        %p495 = pneg %p219
        %p496 = pneg %p243
        %p497 = pneg %p240
        %p498 = pneg %p269
        %p499 = pneg %p266
        %s500 = smul.u32 2, %s35
        %s501 = smul.u32 32, %s35
        %p503 = scmp.eq.s32.totalorder %s35, 0
        // Predicated region
        $region93: #{tpu_custom_call.1} parent=55 // pred_check
          %p504 = pneg %p503
        $region94: #{tpu_custom_call.1} parent=55 // pred_check_branch
          %506 = sbr.rel (%p504) target = $region96
        $region95: #{tpu_custom_call.1} parent=55 // pred_region
          %507 = vst [vmem:[#allocation2] sm:$0xff] 0.0
          %508 = vst [vmem:[#allocation2 + $0x8] sm:$0xff] 0.0
          %509 = vst [vmem:[#allocation2 + $0x10] sm:$0xff] 0.0
          %510 = vst [vmem:[#allocation2 + $0x18] sm:$0xff] 0.0
        $region96: #{tpu_custom_call.1} parent=55 // pred_fallthru
          _
        %v511 = vld [vmem:[#allocation2] sm:$0xff]
        %v512 = vld [vmem:[#allocation2 + $0x8] sm:$0xff]
        %v513 = vld [vmem:[#allocation2 + $0x10] sm:$0xff]
        %v514 = vld [vmem:[#allocation2 + $0x18] sm:$0xff]
        %v515 = vld [vmem:[%s428] sm:$0xff]
        %v516 = vld [vmem:[%s437] sm:$0xff]
        %v517 = vld [vmem:[%s437 + $0x8] sm:$0xff]
        %v518 = vld [vmem:[%s437 + $0x10] sm:$0xff]
        %v519 = vld [vmem:[%s437 + $0x18] sm:$0xff]
        %v520 = vld [vmem:[%s437 + $0x20] sm:$0xff]
        %v521 = vld [vmem:[%s437 + $0x28] sm:$0xff]
        %v522 = vld [vmem:[%s437 + $0x30] sm:$0xff]
        %v523 = vld [vmem:[%s437 + $0x38] sm:$0xff]
        %v524 = vld [vmem:[%s437 + $0x40] sm:$0xff]
        %v525 = vld [vmem:[%s437 + $0x48] sm:$0xff]
        %v526 = vld [vmem:[%s437 + $0x50] sm:$0xff]
        %v527 = vld [vmem:[%s437 + $0x58] sm:$0xff]
        %v528 = vld [vmem:[%s437 + $0x60] sm:$0xff]
        %v529 = vld [vmem:[%s437 + $0x68] sm:$0xff]
        %v530 = vld [vmem:[%s437 + $0x70] sm:$0xff]
        %v531 = vld [vmem:[%s437 + $0x78] sm:$0xff]
        %v532 = vld [vmem:[%s437 + $0x80] sm:$0xff]
        %v533 = vld [vmem:[%s437 + $0x88] sm:$0xff]
        %v534 = vld [vmem:[%s437 + $0x90] sm:$0xff]
        %v535 = vld [vmem:[%s437 + $0x98] sm:$0xff]
        %v536 = vld [vmem:[%s437 + $0xa0] sm:$0xff]
        %v537 = vld [vmem:[%s437 + $0xa8] sm:$0xff]
        %v538 = vld [vmem:[%s437 + $0xb0] sm:$0xff]
        %v539 = vld [vmem:[%s437 + $0xb8] sm:$0xff]
        %v540 = vld [vmem:[%s437 + $0xc0] sm:$0xff]
        %v541 = vld [vmem:[%s437 + $0xc8] sm:$0xff]
        %v542 = vld [vmem:[%s437 + $0xd0] sm:$0xff]
        %v543 = vld [vmem:[%s437 + $0xd8] sm:$0xff]
        %v544 = vld [vmem:[%s437 + $0xe0] sm:$0xff]
        %v545 = vld [vmem:[%s437 + $0xe8] sm:$0xff]
        %v546 = vld [vmem:[%s437 + $0xf0] sm:$0xff]
        %v547 = vld [vmem:[%s437 + $0xf8] sm:$0xff]
        %v548 = vld [vmem:[%s437 + $0x100] sm:$0xff]
        %v549 = vld [vmem:[%s437 + $0x108] sm:$0xff]
        %v550 = vld [vmem:[%s437 + $0x110] sm:$0xff]
        %v551 = vld [vmem:[%s437 + $0x118] sm:$0xff]
        %v552 = vld [vmem:[%s437 + $0x120] sm:$0xff]
        %v553 = vld [vmem:[%s437 + $0x128] sm:$0xff]
        %v554 = vld [vmem:[%s437 + $0x130] sm:$0xff]
        %v555 = vld [vmem:[%s437 + $0x138] sm:$0xff]
        %v556 = vld [vmem:[%s437 + $0x140] sm:$0xff]
        %v557 = vld [vmem:[%s437 + $0x148] sm:$0xff]
        %v558 = vld [vmem:[%s437 + $0x150] sm:$0xff]
        %v559 = vld [vmem:[%s437 + $0x158] sm:$0xff]
        %v560 = vld [vmem:[%s437 + $0x160] sm:$0xff]
        %v561 = vld [vmem:[%s437 + $0x168] sm:$0xff]
        %v562 = vld [vmem:[%s437 + $0x170] sm:$0xff]
        %v563 = vld [vmem:[%s437 + $0x178] sm:$0xff]
        %v564 = vld [vmem:[%s437 + $0x180] sm:$0xff]
        %v565 = vld [vmem:[%s437 + $0x188] sm:$0xff]
        %v566 = vld [vmem:[%s437 + $0x190] sm:$0xff]
        %v567 = vld [vmem:[%s437 + $0x198] sm:$0xff]
        %v568 = vld [vmem:[%s437 + $0x1a0] sm:$0xff]
        %v569 = vld [vmem:[%s437 + $0x1a8] sm:$0xff]
        %v570 = vld [vmem:[%s437 + $0x1b0] sm:$0xff]
        %v571 = vld [vmem:[%s437 + $0x1b8] sm:$0xff]
        %v572 = vld [vmem:[%s437 + $0x1c0] sm:$0xff]
        %v573 = vld [vmem:[%s437 + $0x1c8] sm:$0xff]
        %v574 = vld [vmem:[%s437 + $0x1d0] sm:$0xff]
        %v575 = vld [vmem:[%s437 + $0x1d8] sm:$0xff]
        %v576 = vld [vmem:[%s437 + $0x1e0] sm:$0xff]
        %v577 = vld [vmem:[%s437 + $0x1e8] sm:$0xff]
        %v578 = vld [vmem:[%s437 + $0x1f0] sm:$0xff]
        %v579 = vld [vmem:[%s437 + $0x1f8] sm:$0xff]
        %v581 = vunpack.c.l.b16 %v515
        %v582 = vunpack.c.h.b16 %v515
        %v583 = vpack.c.b16 %v581, %v581
        %v584 = vpack.c.b16 %v582, %v582
        %v651 = vunpack.c.l.b16 %v516
        %v652 = vunpack.c.h.b16 %v516
        %v653 = vunpack.c.l.b16 %v517
        %v654 = vunpack.c.h.b16 %v517
        %v655 = vunpack.c.l.b16 %v518
        %v656 = vunpack.c.h.b16 %v518
        %v657 = vunpack.c.l.b16 %v519
        %v658 = vunpack.c.h.b16 %v519
        %v659 = vunpack.c.l.b16 %v520
        %v660 = vunpack.c.h.b16 %v520
        %v661 = vunpack.c.l.b16 %v521
        %v662 = vunpack.c.h.b16 %v521
        %v663 = vunpack.c.l.b16 %v522
        %v664 = vunpack.c.h.b16 %v522
        %v665 = vunpack.c.l.b16 %v523
        %v666 = vunpack.c.h.b16 %v523
        %v667 = vunpack.c.l.b16 %v524
        %v668 = vunpack.c.h.b16 %v524
        %v669 = vunpack.c.l.b16 %v525
        %v670 = vunpack.c.h.b16 %v525
        %v671 = vunpack.c.l.b16 %v526
        %v672 = vunpack.c.h.b16 %v526
        %v673 = vunpack.c.l.b16 %v527
        %v674 = vunpack.c.h.b16 %v527
        %v675 = vunpack.c.l.b16 %v528
        %v676 = vunpack.c.h.b16 %v528
        %v677 = vunpack.c.l.b16 %v529
        %v678 = vunpack.c.h.b16 %v529
        %v679 = vunpack.c.l.b16 %v530
        %v680 = vunpack.c.h.b16 %v530
        %v681 = vunpack.c.l.b16 %v531
        %v682 = vunpack.c.h.b16 %v531
        %v683 = vunpack.c.l.b16 %v532
        %v684 = vunpack.c.h.b16 %v532
        %v685 = vunpack.c.l.b16 %v533
        %v686 = vunpack.c.h.b16 %v533
        %v687 = vunpack.c.l.b16 %v534
        %v688 = vunpack.c.h.b16 %v534
        %v689 = vunpack.c.l.b16 %v535
        %v690 = vunpack.c.h.b16 %v535
        %v691 = vunpack.c.l.b16 %v536
        %v692 = vunpack.c.h.b16 %v536
        %v693 = vunpack.c.l.b16 %v537
        %v694 = vunpack.c.h.b16 %v537
        %v695 = vunpack.c.l.b16 %v538
        %v696 = vunpack.c.h.b16 %v538
        %v697 = vunpack.c.l.b16 %v539
        %v698 = vunpack.c.h.b16 %v539
        %v699 = vunpack.c.l.b16 %v540
        %v700 = vunpack.c.h.b16 %v540
        %v701 = vunpack.c.l.b16 %v541
        %v702 = vunpack.c.h.b16 %v541
        %v703 = vunpack.c.l.b16 %v542
        %v704 = vunpack.c.h.b16 %v542
        %v705 = vunpack.c.l.b16 %v543
        %v706 = vunpack.c.h.b16 %v543
        %v707 = vunpack.c.l.b16 %v544
        %v708 = vunpack.c.h.b16 %v544
        %v709 = vunpack.c.l.b16 %v545
        %v710 = vunpack.c.h.b16 %v545
        %v711 = vunpack.c.l.b16 %v546
        %v712 = vunpack.c.h.b16 %v546
        %v713 = vunpack.c.l.b16 %v547
        %v714 = vunpack.c.h.b16 %v547
        %v715 = vunpack.c.l.b16 %v548
        %v716 = vunpack.c.h.b16 %v548
        %v717 = vunpack.c.l.b16 %v549
        %v718 = vunpack.c.h.b16 %v549
        %v719 = vunpack.c.l.b16 %v550
        %v720 = vunpack.c.h.b16 %v550
        %v721 = vunpack.c.l.b16 %v551
        %v722 = vunpack.c.h.b16 %v551
        %v723 = vunpack.c.l.b16 %v552
        %v724 = vunpack.c.h.b16 %v552
        %v725 = vunpack.c.l.b16 %v553
        %v726 = vunpack.c.h.b16 %v553
        %v727 = vunpack.c.l.b16 %v554
        %v728 = vunpack.c.h.b16 %v554
        %v729 = vunpack.c.l.b16 %v555
        %v730 = vunpack.c.h.b16 %v555
        %v731 = vunpack.c.l.b16 %v556
        %v732 = vunpack.c.h.b16 %v556
        %v733 = vunpack.c.l.b16 %v557
        %v734 = vunpack.c.h.b16 %v557
        %v735 = vunpack.c.l.b16 %v558
        %v736 = vunpack.c.h.b16 %v558
        %v737 = vunpack.c.l.b16 %v559
        %v738 = vunpack.c.h.b16 %v559
        %v739 = vunpack.c.l.b16 %v560
        %v740 = vunpack.c.h.b16 %v560
        %v741 = vunpack.c.l.b16 %v561
        %v742 = vunpack.c.h.b16 %v561
        %v743 = vunpack.c.l.b16 %v562
        %v744 = vunpack.c.h.b16 %v562
        %v745 = vunpack.c.l.b16 %v563
        %v746 = vunpack.c.h.b16 %v563
        %v747 = vunpack.c.l.b16 %v564
        %v748 = vunpack.c.h.b16 %v564
        %v749 = vunpack.c.l.b16 %v565
        %v750 = vunpack.c.h.b16 %v565
        %v751 = vunpack.c.l.b16 %v566
        %v752 = vunpack.c.h.b16 %v566
        %v753 = vunpack.c.l.b16 %v567
        %v754 = vunpack.c.h.b16 %v567
        %v755 = vunpack.c.l.b16 %v568
        %v756 = vunpack.c.h.b16 %v568
        %v757 = vunpack.c.l.b16 %v569
        %v758 = vunpack.c.h.b16 %v569
        %v759 = vunpack.c.l.b16 %v570
        %v760 = vunpack.c.h.b16 %v570
        %v761 = vunpack.c.l.b16 %v571
        %v762 = vunpack.c.h.b16 %v571
        %v763 = vunpack.c.l.b16 %v572
        %v764 = vunpack.c.h.b16 %v572
        %v765 = vunpack.c.l.b16 %v573
        %v766 = vunpack.c.h.b16 %v573
        %v767 = vunpack.c.l.b16 %v574
        %v768 = vunpack.c.h.b16 %v574
        %v769 = vunpack.c.l.b16 %v575
        %v770 = vunpack.c.h.b16 %v575
        %v771 = vunpack.c.l.b16 %v576
        %v772 = vunpack.c.h.b16 %v576
        %v773 = vunpack.c.l.b16 %v577
        %v774 = vunpack.c.h.b16 %v577
        %v775 = vunpack.c.l.b16 %v578
        %v776 = vunpack.c.h.b16 %v578
        %v777 = vunpack.c.l.b16 %v579
        %v778 = vunpack.c.h.b16 %v579
        %v779 = vpack.c.b16 %v655, %v651
        %v780 = vpack.c.b16 %v656, %v652
        %v781 = vpack.c.b16 %v657, %v653
        %v782 = vpack.c.b16 %v658, %v654
        %v783 = vpack.c.b16 %v663, %v659
        %v784 = vpack.c.b16 %v664, %v660
        %v785 = vpack.c.b16 %v665, %v661
        %v786 = vpack.c.b16 %v666, %v662
        %v787 = vpack.c.b16 %v671, %v667
        %v788 = vpack.c.b16 %v672, %v668
        %v789 = vpack.c.b16 %v673, %v669
        %v790 = vpack.c.b16 %v674, %v670
        %v791 = vpack.c.b16 %v679, %v675
        %v792 = vpack.c.b16 %v680, %v676
        %v793 = vpack.c.b16 %v681, %v677
        %v794 = vpack.c.b16 %v682, %v678
        %v795 = vpack.c.b16 %v687, %v683
        %v796 = vpack.c.b16 %v688, %v684
        %v797 = vpack.c.b16 %v689, %v685
        %v798 = vpack.c.b16 %v690, %v686
        %v799 = vpack.c.b16 %v695, %v691
        %v800 = vpack.c.b16 %v696, %v692
        %v801 = vpack.c.b16 %v697, %v693
        %v802 = vpack.c.b16 %v698, %v694
        %v803 = vpack.c.b16 %v703, %v699
        %v804 = vpack.c.b16 %v704, %v700
        %v805 = vpack.c.b16 %v705, %v701
        %v806 = vpack.c.b16 %v706, %v702
        %v807 = vpack.c.b16 %v711, %v707
        %v808 = vpack.c.b16 %v712, %v708
        %v809 = vpack.c.b16 %v713, %v709
        %v810 = vpack.c.b16 %v714, %v710
        %v811 = vpack.c.b16 %v719, %v715
        %v812 = vpack.c.b16 %v720, %v716
        %v813 = vpack.c.b16 %v721, %v717
        %v814 = vpack.c.b16 %v722, %v718
        %v815 = vpack.c.b16 %v727, %v723
        %v816 = vpack.c.b16 %v728, %v724
        %v817 = vpack.c.b16 %v729, %v725
        %v818 = vpack.c.b16 %v730, %v726
        %v819 = vpack.c.b16 %v735, %v731
        %v820 = vpack.c.b16 %v736, %v732
        %v821 = vpack.c.b16 %v737, %v733
        %v822 = vpack.c.b16 %v738, %v734
        %v823 = vpack.c.b16 %v743, %v739
        %v824 = vpack.c.b16 %v744, %v740
        %v825 = vpack.c.b16 %v745, %v741
        %v826 = vpack.c.b16 %v746, %v742
        %v827 = vpack.c.b16 %v751, %v747
        %v828 = vpack.c.b16 %v752, %v748
        %v829 = vpack.c.b16 %v753, %v749
        %v830 = vpack.c.b16 %v754, %v750
        %v831 = vpack.c.b16 %v759, %v755
        %v832 = vpack.c.b16 %v760, %v756
        %v833 = vpack.c.b16 %v761, %v757
        %v834 = vpack.c.b16 %v762, %v758
        %v835 = vpack.c.b16 %v767, %v763
        %v836 = vpack.c.b16 %v768, %v764
        %v837 = vpack.c.b16 %v769, %v765
        %v838 = vpack.c.b16 %v770, %v766
        %v839 = vpack.c.b16 %v775, %v771
        %v840 = vpack.c.b16 %v776, %v772
        %v841 = vpack.c.b16 %v777, %v773
        %v842 = vpack.c.b16 %v778, %v774
        %907 = vmatprep.subr.bf16.mxu0 %v780
        %908 = vmatpush1.bf16.msra.mxu0 %v779
        %909 = vmatprep.subr.bf16.mxu0 %v784
        %910 = vmatpush1.bf16.msra.mxu0 %v783
        %911 = vmatprep.subr.bf16.mxu0 %v788
        %912 = vmatpush1.bf16.msra.mxu0 %v787
        %913 = vmatprep.subr.bf16.mxu0 %v792
        %914 = vmatpush1.bf16.msra.mxu0 %v791
        %915 = vmatprep.subr.bf16.mxu0 %v796
        %916 = vmatpush1.bf16.msra.mxu0 %v795
        %917 = vmatprep.subr.bf16.mxu0 %v800
        %918 = vmatpush1.bf16.msra.mxu0 %v799
        %919 = vmatprep.subr.bf16.mxu0 %v804
        %920 = vmatpush1.bf16.msra.mxu0 %v803
        %921 = vmatprep.subr.bf16.mxu0 %v808
        %922 = vmatpush1.bf16.msra.mxu0 %v807
        %923 = vmatprep.subr.bf16.mxu0 %v812
        %924 = vmatpush1.bf16.msra.mxu0 %v811
        %925 = vmatprep.subr.bf16.mxu0 %v816
        %926 = vmatpush1.bf16.msra.mxu0 %v815
        %927 = vmatprep.subr.bf16.mxu0 %v820
        %928 = vmatpush1.bf16.msra.mxu0 %v819
        %929 = vmatprep.subr.bf16.mxu0 %v824
        %930 = vmatpush1.bf16.msra.mxu0 %v823
        %931 = vmatprep.subr.bf16.mxu0 %v828
        %932 = vmatpush1.bf16.msra.mxu0 %v827
        %933 = vmatprep.subr.bf16.mxu0 %v832
        %934 = vmatpush1.bf16.msra.mxu0 %v831
        %935 = vmatprep.subr.bf16.mxu0 %v836
        %936 = vmatpush1.bf16.msra.mxu0 %v835
        %937 = vmatprep.subr.bf16.mxu0 %v840
        %938 = vmatpush1.bf16.msra.mxu0 %v839
        %939 = vmatprep.mubr.bf16.mxu0 %v584
        %940 = vmatmul.mubr.bf16.gmra.mrb[0].mxu0 %v583
        %v941 = vpop.f32.mrb[0].mxu0
        %v942 = vadd.f32 0.0, %v941
        %v943 = vpop.f32.mrb[0].mxu0
        %v944 = vadd.f32 0.0, %v943
        %v945 = vpop.f32.mrb[0].mxu0
        %v946 = vpop.f32.mrb[0].mxu0
        %947 = vdwg.mxu0
        %948 = vmatprep.subr.bf16.mxu0 %v782
        %949 = vmatpush1.bf16.msra.mxu0 %v781
        %950 = vmatprep.subr.bf16.mxu0 %v786
        %951 = vmatpush1.bf16.msra.mxu0 %v785
        %952 = vmatprep.subr.bf16.mxu0 %v790
        %953 = vmatpush1.bf16.msra.mxu0 %v789
        %954 = vmatprep.subr.bf16.mxu0 %v794
        %955 = vmatpush1.bf16.msra.mxu0 %v793
        %956 = vmatprep.subr.bf16.mxu0 %v798
        %957 = vmatpush1.bf16.msra.mxu0 %v797
        %958 = vmatprep.subr.bf16.mxu0 %v802
        %959 = vmatpush1.bf16.msra.mxu0 %v801
        %960 = vmatprep.subr.bf16.mxu0 %v806
        %961 = vmatpush1.bf16.msra.mxu0 %v805
        %962 = vmatprep.subr.bf16.mxu0 %v810
        %963 = vmatpush1.bf16.msra.mxu0 %v809
        %964 = vmatprep.subr.bf16.mxu0 %v814
        %965 = vmatpush1.bf16.msra.mxu0 %v813
        %966 = vmatprep.subr.bf16.mxu0 %v818
        %967 = vmatpush1.bf16.msra.mxu0 %v817
        %968 = vmatprep.subr.bf16.mxu0 %v822
        %969 = vmatpush1.bf16.msra.mxu0 %v821
        %970 = vmatprep.subr.bf16.mxu0 %v826
        %971 = vmatpush1.bf16.msra.mxu0 %v825
        %972 = vmatprep.subr.bf16.mxu0 %v830
        %973 = vmatpush1.bf16.msra.mxu0 %v829
        %974 = vmatprep.subr.bf16.mxu0 %v834
        %975 = vmatpush1.bf16.msra.mxu0 %v833
        %976 = vmatprep.subr.bf16.mxu0 %v838
        %977 = vmatpush1.bf16.msra.mxu0 %v837
        %978 = vmatprep.subr.bf16.mxu0 %v842
        %979 = vmatpush1.bf16.msra.mxu0 %v841
        %980 = vmatprep.mubr.bf16.mxu0 %v584
        %981 = vmatmul.mubr.bf16.gmra.mrb[0].mxu0 %v583
        %v982 = vpop.f32.mrb[0].mxu0
        %v983 = vadd.f32 0.0, %v982
        %v984 = vpop.f32.mrb[0].mxu0
        %v985 = vadd.f32 0.0, %v984
        %v986 = vpop.f32.mrb[0].mxu0
        %v987 = vpop.f32.mrb[0].mxu0
        %988 = vdwg.mxu0
        %v989 = vadd.f32 %v511, %v942
        %v990 = vadd.f32 %v512, %v944
        %v991 = vadd.f32 %v513, %v983
        %v992 = vadd.f32 %v514, %v985
        %993 = vst [vmem:[#allocation2] sm:$0xff] %v989
        %994 = vst [vmem:[#allocation2 + $0x8] sm:$0xff] %v990
        %995 = vst [vmem:[#allocation2 + $0x10] sm:$0xff] %v991
        %996 = vst [vmem:[#allocation2 + $0x18] sm:$0xff] %v992
        %p997 = scmp.eq.s32.totalorder %s35, 2
        // Predicated region
        $region97: #{tpu_custom_call.1} parent=55 // pred_check
          %p998 = pneg %p997
        $region98: #{tpu_custom_call.1} parent=55 // pred_check_branch
          %1000 = sbr.rel (%p998) target = $region100
        $region99: #{tpu_custom_call.1} parent=55 // pred_region
          %v1001 = vld [vmem:[#allocation8] sm:$0xff]
          %v1002 = vld [vmem:[#allocation8 + $0x8] sm:$0xff]
          %v1003 = vld [vmem:[#allocation8 + $0x10] sm:$0xff]
          %v1004 = vld [vmem:[#allocation9] sm:$0xff]
          %v1005 = vld [vmem:[#allocation9 + $0x8] sm:$0xff]
          %v1006 = vld [vmem:[#allocation9 + $0x10] sm:$0xff]
          %v1007 = vld [vmem:[#allocation9 + $0x18] sm:$0xff]
          %v1008 = vld [vmem:[#allocation9 + $0x20] sm:$0xff]
          %v1009 = vld [vmem:[#allocation9 + $0x28] sm:$0xff]
          %v1010 = vld [vmem:[#allocation9 + $0x30] sm:$0xff]
          %v1011 = vld [vmem:[#allocation9 + $0x38] sm:$0xff]
          %v1012 = vld [vmem:[#allocation9 + $0x40] sm:$0xff]
          %v1013 = vld [vmem:[#allocation9 + $0x48] sm:$0xff]
          %v1014 = vld [vmem:[#allocation9 + $0x50] sm:$0xff]
          %v1015 = vld [vmem:[#allocation9 + $0x58] sm:$0xff]
          %v1016 = vld [vmem:[#allocation9 + $0x60] sm:$0xff]
          %v1017 = vld [vmem:[#allocation9 + $0x68] sm:$0xff]
          %v1018 = vld [vmem:[#allocation9 + $0x70] sm:$0xff]
          %v1019 = vld [vmem:[#allocation9 + $0x78] sm:$0xff]
          %v1020 = vld [vmem:[#allocation9 + $0x80] sm:$0xff]
          %v1021 = vld [vmem:[#allocation9 + $0x88] sm:$0xff]
          %v1022 = vld [vmem:[#allocation9 + $0x90] sm:$0xff]
          %v1023 = vld [vmem:[#allocation9 + $0x98] sm:$0xff]
          %v1024 = vld [vmem:[#allocation9 + $0xa0] sm:$0xff]
          %v1025 = vld [vmem:[#allocation9 + $0xa8] sm:$0xff]
          %v1026 = vld [vmem:[#allocation9 + $0xb0] sm:$0xff]
          %v1027 = vld [vmem:[#allocation9 + $0xb8] sm:$0xff]
          %v1028 = vld [vmem:[#allocation9 + $0xc0] sm:$0xff]
          %v1029 = vld [vmem:[#allocation9 + $0xc8] sm:$0xff]
          %v1030 = vld [vmem:[#allocation9 + $0xd0] sm:$0xff]
          %v1031 = vld [vmem:[#allocation9 + $0xd8] sm:$0xff]
          %v1032 = vld [vmem:[#allocation9 + $0xe0] sm:$0xff]
          %v1033 = vld [vmem:[#allocation9 + $0xe8] sm:$0xff]
          %v1034 = vld [vmem:[#allocation9 + $0xf0] sm:$0xff]
          %v1035 = vld [vmem:[#allocation9 + $0xf8] sm:$0xff]
          %v1036 = vld [vmem:[#allocation9 + $0x100] sm:$0xff]
          %v1037 = vld [vmem:[#allocation9 + $0x108] sm:$0xff]
          %v1038 = vld [vmem:[#allocation9 + $0x110] sm:$0xff]
          %v1039 = vld [vmem:[#allocation9 + $0x118] sm:$0xff]
          %v1040 = vld [vmem:[#allocation9 + $0x120] sm:$0xff]
          %v1041 = vld [vmem:[#allocation9 + $0x128] sm:$0xff]
          %v1042 = vld [vmem:[#allocation9 + $0x130] sm:$0xff]
          %v1043 = vld [vmem:[#allocation9 + $0x138] sm:$0xff]
          %v1044 = vld [vmem:[#allocation9 + $0x140] sm:$0xff]
          %v1045 = vld [vmem:[#allocation9 + $0x148] sm:$0xff]
          %v1046 = vld [vmem:[#allocation9 + $0x150] sm:$0xff]
          %v1047 = vld [vmem:[#allocation9 + $0x158] sm:$0xff]
          %v1048 = vld [vmem:[#allocation9 + $0x160] sm:$0xff]
          %v1049 = vld [vmem:[#allocation9 + $0x168] sm:$0xff]
          %v1050 = vld [vmem:[#allocation9 + $0x170] sm:$0xff]
          %v1051 = vld [vmem:[#allocation9 + $0x178] sm:$0xff]
          %v1052 = vld [vmem:[#allocation9 + $0x180] sm:$0xff]
          %v1053 = vld [vmem:[#allocation9 + $0x188] sm:$0xff]
          %v1054 = vld [vmem:[#allocation9 + $0x190] sm:$0xff]
          %v1055 = vld [vmem:[#allocation9 + $0x198] sm:$0xff]
          %v1056 = vld [vmem:[#allocation9 + $0x1a0] sm:$0xff]
          %v1057 = vld [vmem:[#allocation9 + $0x1a8] sm:$0xff]
          %v1058 = vld [vmem:[#allocation9 + $0x1b0] sm:$0xff]
          %v1059 = vld [vmem:[#allocation9 + $0x1b8] sm:$0xff]
          %v1060 = vld [vmem:[#allocation9 + $0x1c0] sm:$0xff]
          %v1061 = vld [vmem:[#allocation9 + $0x1c8] sm:$0xff]
          %v1062 = vld [vmem:[#allocation9 + $0x1d0] sm:$0xff]
          %v1063 = vld [vmem:[#allocation9 + $0x1d8] sm:$0xff]
          %v1064 = vld [vmem:[#allocation9 + $0x1e0] sm:$0xff]
          %v1065 = vld [vmem:[#allocation9 + $0x1e8] sm:$0xff]
          %v1066 = vld [vmem:[#allocation9 + $0x1f0] sm:$0xff]
          %v1067 = vld [vmem:[#allocation9 + $0x1f8] sm:$0xff]
          %v1068 = vld [vmem:[#allocation9 + $0x200] sm:$0xff]
          %v1069 = vld [vmem:[#allocation9 + $0x208] sm:$0xff]
          %v1070 = vld [vmem:[#allocation9 + $0x210] sm:$0xff]
          %v1071 = vld [vmem:[#allocation9 + $0x218] sm:$0xff]
          %v1072 = vld [vmem:[#allocation9 + $0x220] sm:$0xff]
          %v1073 = vld [vmem:[#allocation9 + $0x228] sm:$0xff]
          %v1074 = vld [vmem:[#allocation9 + $0x230] sm:$0xff]
          %v1075 = vld [vmem:[#allocation9 + $0x238] sm:$0xff]
          %v1076 = vld [vmem:[#allocation9 + $0x240] sm:$0xff]
          %v1077 = vld [vmem:[#allocation9 + $0x248] sm:$0xff]
          %v1078 = vld [vmem:[#allocation9 + $0x250] sm:$0xff]
          %v1079 = vld [vmem:[#allocation9 + $0x258] sm:$0xff]
          %v1080 = vld [vmem:[#allocation9 + $0x260] sm:$0xff]
          %v1081 = vld [vmem:[#allocation9 + $0x268] sm:$0xff]
          %v1082 = vld [vmem:[#allocation9 + $0x270] sm:$0xff]
          %v1083 = vld [vmem:[#allocation9 + $0x278] sm:$0xff]
          %v1084 = vld [vmem:[#allocation9 + $0x280] sm:$0xff]
          %v1085 = vld [vmem:[#allocation9 + $0x288] sm:$0xff]
          %v1086 = vld [vmem:[#allocation9 + $0x290] sm:$0xff]
          %v1087 = vld [vmem:[#allocation9 + $0x298] sm:$0xff]
          %v1088 = vld [vmem:[#allocation9 + $0x2a0] sm:$0xff]
          %v1089 = vld [vmem:[#allocation9 + $0x2a8] sm:$0xff]
          %v1090 = vld [vmem:[#allocation9 + $0x2b0] sm:$0xff]
          %v1091 = vld [vmem:[#allocation9 + $0x2b8] sm:$0xff]
          %v1092 = vld [vmem:[#allocation9 + $0x2c0] sm:$0xff]
          %v1093 = vld [vmem:[#allocation9 + $0x2c8] sm:$0xff]
          %v1094 = vld [vmem:[#allocation9 + $0x2d0] sm:$0xff]
          %v1095 = vld [vmem:[#allocation9 + $0x2d8] sm:$0xff]
          %v1096 = vld [vmem:[#allocation9 + $0x2e0] sm:$0xff]
          %v1097 = vld [vmem:[#allocation9 + $0x2e8] sm:$0xff]
          %v1098 = vld [vmem:[#allocation9 + $0x2f0] sm:$0xff]
          %v1099 = vld [vmem:[#allocation9 + $0x2f8] sm:$0xff]
          %v1100 = vld [vmem:[#allocation9 + $0x300] sm:$0xff]
          %v1101 = vld [vmem:[#allocation9 + $0x308] sm:$0xff]
          %v1102 = vld [vmem:[#allocation9 + $0x310] sm:$0xff]
          %v1103 = vld [vmem:[#allocation9 + $0x318] sm:$0xff]
          %v1104 = vld [vmem:[#allocation9 + $0x320] sm:$0xff]
          %v1105 = vld [vmem:[#allocation9 + $0x328] sm:$0xff]
          %v1106 = vld [vmem:[#allocation9 + $0x330] sm:$0xff]
          %v1107 = vld [vmem:[#allocation9 + $0x338] sm:$0xff]
          %v1108 = vld [vmem:[#allocation9 + $0x340] sm:$0xff]
          %v1109 = vld [vmem:[#allocation9 + $0x348] sm:$0xff]
          %v1110 = vld [vmem:[#allocation9 + $0x350] sm:$0xff]
          %v1111 = vld [vmem:[#allocation9 + $0x358] sm:$0xff]
          %v1112 = vld [vmem:[#allocation9 + $0x360] sm:$0xff]
          %v1113 = vld [vmem:[#allocation9 + $0x368] sm:$0xff]
          %v1114 = vld [vmem:[#allocation9 + $0x370] sm:$0xff]
          %v1115 = vld [vmem:[#allocation9 + $0x378] sm:$0xff]
          %v1116 = vld [vmem:[#allocation9 + $0x380] sm:$0xff]
          %v1117 = vld [vmem:[#allocation9 + $0x388] sm:$0xff]
          %v1118 = vld [vmem:[#allocation9 + $0x390] sm:$0xff]
          %v1119 = vld [vmem:[#allocation9 + $0x398] sm:$0xff]
          %v1120 = vld [vmem:[#allocation9 + $0x3a0] sm:$0xff]
          %v1121 = vld [vmem:[#allocation9 + $0x3a8] sm:$0xff]
          %v1122 = vld [vmem:[#allocation9 + $0x3b0] sm:$0xff]
          %v1123 = vld [vmem:[#allocation9 + $0x3b8] sm:$0xff]
          %v1124 = vld [vmem:[#allocation9 + $0x3c0] sm:$0xff]
          %v1125 = vld [vmem:[#allocation9 + $0x3c8] sm:$0xff]
          %v1126 = vld [vmem:[#allocation9 + $0x3d0] sm:$0xff]
          %v1127 = vld [vmem:[#allocation9 + $0x3d8] sm:$0xff]
          %v1128 = vld [vmem:[#allocation9 + $0x3e0] sm:$0xff]
          %v1129 = vld [vmem:[#allocation9 + $0x3e8] sm:$0xff]
          %v1130 = vld [vmem:[#allocation9 + $0x3f0] sm:$0xff]
          %v1131 = vld [vmem:[#allocation9 + $0x3f8] sm:$0xff]
          %v1132 = vld [vmem:[#allocation9 + $0x400] sm:$0xff]
          %v1133 = vld [vmem:[#allocation9 + $0x408] sm:$0xff]
          %v1134 = vld [vmem:[#allocation9 + $0x410] sm:$0xff]
          %v1135 = vld [vmem:[#allocation9 + $0x418] sm:$0xff]
          %v1136 = vld [vmem:[#allocation9 + $0x420] sm:$0xff]
          %v1137 = vld [vmem:[#allocation9 + $0x428] sm:$0xff]
          %v1138 = vld [vmem:[#allocation9 + $0x430] sm:$0xff]
          %v1139 = vld [vmem:[#allocation9 + $0x438] sm:$0xff]
          %v1140 = vld [vmem:[#allocation9 + $0x440] sm:$0xff]
          %v1141 = vld [vmem:[#allocation9 + $0x448] sm:$0xff]
          %v1142 = vld [vmem:[#allocation9 + $0x450] sm:$0xff]
          %v1143 = vld [vmem:[#allocation9 + $0x458] sm:$0xff]
          %v1144 = vld [vmem:[#allocation9 + $0x460] sm:$0xff]
          %v1145 = vld [vmem:[#allocation9 + $0x468] sm:$0xff]
          %v1146 = vld [vmem:[#allocation9 + $0x470] sm:$0xff]
          %v1147 = vld [vmem:[#allocation9 + $0x478] sm:$0xff]
          %v1148 = vld [vmem:[#allocation9 + $0x480] sm:$0xff]
          %v1149 = vld [vmem:[#allocation9 + $0x488] sm:$0xff]
          %v1150 = vld [vmem:[#allocation9 + $0x490] sm:$0xff]
          %v1151 = vld [vmem:[#allocation9 + $0x498] sm:$0xff]
          %v1152 = vld [vmem:[#allocation9 + $0x4a0] sm:$0xff]
          %v1153 = vld [vmem:[#allocation9 + $0x4a8] sm:$0xff]
          %v1154 = vld [vmem:[#allocation9 + $0x4b0] sm:$0xff]
          %v1155 = vld [vmem:[#allocation9 + $0x4b8] sm:$0xff]
          %v1156 = vld [vmem:[#allocation9 + $0x4c0] sm:$0xff]
          %v1157 = vld [vmem:[#allocation9 + $0x4c8] sm:$0xff]
          %v1158 = vld [vmem:[#allocation9 + $0x4d0] sm:$0xff]
          %v1159 = vld [vmem:[#allocation9 + $0x4d8] sm:$0xff]
          %v1160 = vld [vmem:[#allocation9 + $0x4e0] sm:$0xff]
          %v1161 = vld [vmem:[#allocation9 + $0x4e8] sm:$0xff]
          %v1162 = vld [vmem:[#allocation9 + $0x4f0] sm:$0xff]
          %v1163 = vld [vmem:[#allocation9 + $0x4f8] sm:$0xff]
          %v1164 = vld [vmem:[#allocation9 + $0x500] sm:$0xff]
          %v1165 = vld [vmem:[#allocation9 + $0x508] sm:$0xff]
          %v1166 = vld [vmem:[#allocation9 + $0x510] sm:$0xff]
          %v1167 = vld [vmem:[#allocation9 + $0x518] sm:$0xff]
          %v1168 = vld [vmem:[#allocation9 + $0x520] sm:$0xff]
          %v1169 = vld [vmem:[#allocation9 + $0x528] sm:$0xff]
          %v1170 = vld [vmem:[#allocation9 + $0x530] sm:$0xff]
          %v1171 = vld [vmem:[#allocation9 + $0x538] sm:$0xff]
          %v1172 = vld [vmem:[#allocation9 + $0x540] sm:$0xff]
          %v1173 = vld [vmem:[#allocation9 + $0x548] sm:$0xff]
          %v1174 = vld [vmem:[#allocation9 + $0x550] sm:$0xff]
          %v1175 = vld [vmem:[#allocation9 + $0x558] sm:$0xff]
          %v1176 = vld [vmem:[#allocation9 + $0x560] sm:$0xff]
          %v1177 = vld [vmem:[#allocation9 + $0x568] sm:$0xff]
          %v1178 = vld [vmem:[#allocation9 + $0x570] sm:$0xff]
          %v1179 = vld [vmem:[#allocation9 + $0x578] sm:$0xff]
          %v1180 = vld [vmem:[#allocation9 + $0x580] sm:$0xff]
          %v1181 = vld [vmem:[#allocation9 + $0x588] sm:$0xff]
          %v1182 = vld [vmem:[#allocation9 + $0x590] sm:$0xff]
          %v1183 = vld [vmem:[#allocation9 + $0x598] sm:$0xff]
          %v1184 = vld [vmem:[#allocation9 + $0x5a0] sm:$0xff]
          %v1185 = vld [vmem:[#allocation9 + $0x5a8] sm:$0xff]
          %v1186 = vld [vmem:[#allocation9 + $0x5b0] sm:$0xff]
          %v1187 = vld [vmem:[#allocation9 + $0x5b8] sm:$0xff]
          %v1188 = vld [vmem:[#allocation9 + $0x5c0] sm:$0xff]
          %v1189 = vld [vmem:[#allocation9 + $0x5c8] sm:$0xff]
          %v1190 = vld [vmem:[#allocation9 + $0x5d0] sm:$0xff]
          %v1191 = vld [vmem:[#allocation9 + $0x5d8] sm:$0xff]
          %v1192 = vld [vmem:[#allocation9 + $0x5e0] sm:$0xff]
          %v1193 = vld [vmem:[#allocation9 + $0x5e8] sm:$0xff]
          %v1194 = vld [vmem:[#allocation9 + $0x5f0] sm:$0xff]
          %v1195 = vld [vmem:[#allocation9 + $0x5f8] sm:$0xff]
          %v1196 = vld [vmem:[#allocation9 + $0x600] sm:$0xff]
          %v1197 = vld [vmem:[#allocation9 + $0x608] sm:$0xff]
          %v1198 = vld [vmem:[#allocation9 + $0x610] sm:$0xff]
          %v1199 = vld [vmem:[#allocation9 + $0x618] sm:$0xff]
          %v1200 = vld [vmem:[#allocation9 + $0x620] sm:$0xff]
          %v1201 = vld [vmem:[#allocation9 + $0x628] sm:$0xff]
          %v1202 = vld [vmem:[#allocation9 + $0x630] sm:$0xff]
          %v1203 = vld [vmem:[#allocation9 + $0x638] sm:$0xff]
          %v1204 = vld [vmem:[#allocation9 + $0x640] sm:$0xff]
          %v1205 = vld [vmem:[#allocation9 + $0x648] sm:$0xff]
          %v1206 = vld [vmem:[#allocation9 + $0x650] sm:$0xff]
          %v1207 = vld [vmem:[#allocation9 + $0x658] sm:$0xff]
          %v1208 = vld [vmem:[#allocation9 + $0x660] sm:$0xff]
          %v1209 = vld [vmem:[#allocation9 + $0x668] sm:$0xff]
          %v1210 = vld [vmem:[#allocation9 + $0x670] sm:$0xff]
          %v1211 = vld [vmem:[#allocation9 + $0x678] sm:$0xff]
          %v1212 = vld [vmem:[#allocation9 + $0x680] sm:$0xff]
          %v1213 = vld [vmem:[#allocation9 + $0x688] sm:$0xff]
          %v1214 = vld [vmem:[#allocation9 + $0x690] sm:$0xff]
          %v1215 = vld [vmem:[#allocation9 + $0x698] sm:$0xff]
          %v1216 = vld [vmem:[#allocation9 + $0x6a0] sm:$0xff]
          %v1217 = vld [vmem:[#allocation9 + $0x6a8] sm:$0xff]
          %v1218 = vld [vmem:[#allocation9 + $0x6b0] sm:$0xff]
          %v1219 = vld [vmem:[#allocation9 + $0x6b8] sm:$0xff]
          %v1220 = vld [vmem:[#allocation9 + $0x6c0] sm:$0xff]
          %v1221 = vld [vmem:[#allocation9 + $0x6c8] sm:$0xff]
          %v1222 = vld [vmem:[#allocation9 + $0x6d0] sm:$0xff]
          %v1223 = vld [vmem:[#allocation9 + $0x6d8] sm:$0xff]
          %v1224 = vld [vmem:[#allocation9 + $0x6e0] sm:$0xff]
          %v1225 = vld [vmem:[#allocation9 + $0x6e8] sm:$0xff]
          %v1226 = vld [vmem:[#allocation9 + $0x6f0] sm:$0xff]
          %v1227 = vld [vmem:[#allocation9 + $0x6f8] sm:$0xff]
          %v1228 = vld [vmem:[#allocation9 + $0x700] sm:$0xff]
          %v1229 = vld [vmem:[#allocation9 + $0x708] sm:$0xff]
          %v1230 = vld [vmem:[#allocation9 + $0x710] sm:$0xff]
          %v1231 = vld [vmem:[#allocation9 + $0x718] sm:$0xff]
          %v1232 = vld [vmem:[#allocation9 + $0x720] sm:$0xff]
          %v1233 = vld [vmem:[#allocation9 + $0x728] sm:$0xff]
          %v1234 = vld [vmem:[#allocation9 + $0x730] sm:$0xff]
          %v1235 = vld [vmem:[#allocation9 + $0x738] sm:$0xff]
          %v1236 = vld [vmem:[#allocation9 + $0x740] sm:$0xff]
          %v1237 = vld [vmem:[#allocation9 + $0x748] sm:$0xff]
          %v1238 = vld [vmem:[#allocation9 + $0x750] sm:$0xff]
          %v1239 = vld [vmem:[#allocation9 + $0x758] sm:$0xff]
          %v1240 = vld [vmem:[#allocation9 + $0x760] sm:$0xff]
          %v1241 = vld [vmem:[#allocation9 + $0x768] sm:$0xff]
          %v1242 = vld [vmem:[#allocation9 + $0x770] sm:$0xff]
          %v1243 = vld [vmem:[#allocation9 + $0x778] sm:$0xff]
          %v1244 = vld [vmem:[#allocation9 + $0x780] sm:$0xff]
          %v1245 = vld [vmem:[#allocation9 + $0x788] sm:$0xff]
          %v1246 = vld [vmem:[#allocation9 + $0x790] sm:$0xff]
          %v1247 = vld [vmem:[#allocation9 + $0x798] sm:$0xff]
          %v1248 = vld [vmem:[#allocation9 + $0x7a0] sm:$0xff]
          %v1249 = vld [vmem:[#allocation9 + $0x7a8] sm:$0xff]
          %v1250 = vld [vmem:[#allocation9 + $0x7b0] sm:$0xff]
          %v1251 = vld [vmem:[#allocation9 + $0x7b8] sm:$0xff]
          %v1252 = vld [vmem:[#allocation9 + $0x7c0] sm:$0xff]
          %v1253 = vld [vmem:[#allocation9 + $0x7c8] sm:$0xff]
          %v1254 = vld [vmem:[#allocation9 + $0x7d0] sm:$0xff]
          %v1255 = vld [vmem:[#allocation9 + $0x7d8] sm:$0xff]
          %v1256 = vld [vmem:[#allocation9 + $0x7e0] sm:$0xff]
          %v1257 = vld [vmem:[#allocation9 + $0x7e8] sm:$0xff]
          %v1258 = vld [vmem:[#allocation9 + $0x7f0] sm:$0xff]
          %v1259 = vld [vmem:[#allocation9 + $0x7f8] sm:$0xff]
          %v1260 = vld [vmem:[#allocation9 + $0x800] sm:$0xff]
          %v1261 = vld [vmem:[#allocation9 + $0x808] sm:$0xff]
          %v1262 = vld [vmem:[#allocation9 + $0x810] sm:$0xff]
          %v1263 = vld [vmem:[#allocation9 + $0x818] sm:$0xff]
          %v1264 = vld [vmem:[#allocation9 + $0x820] sm:$0xff]
          %v1265 = vld [vmem:[#allocation9 + $0x828] sm:$0xff]
          %v1266 = vld [vmem:[#allocation9 + $0x830] sm:$0xff]
          %v1267 = vld [vmem:[#allocation9 + $0x838] sm:$0xff]
          %v1268 = vld [vmem:[#allocation9 + $0x840] sm:$0xff]
          %v1269 = vld [vmem:[#allocation9 + $0x848] sm:$0xff]
          %v1270 = vld [vmem:[#allocation9 + $0x850] sm:$0xff]
          %v1271 = vld [vmem:[#allocation9 + $0x858] sm:$0xff]
          %v1272 = vld [vmem:[#allocation9 + $0x860] sm:$0xff]
          %v1273 = vld [vmem:[#allocation9 + $0x868] sm:$0xff]
          %v1274 = vld [vmem:[#allocation9 + $0x870] sm:$0xff]
          %v1275 = vld [vmem:[#allocation9 + $0x878] sm:$0xff]
          %v1276 = vld [vmem:[#allocation9 + $0x880] sm:$0xff]
          %v1277 = vld [vmem:[#allocation9 + $0x888] sm:$0xff]
          %v1278 = vld [vmem:[#allocation9 + $0x890] sm:$0xff]
          %v1279 = vld [vmem:[#allocation9 + $0x898] sm:$0xff]
          %v1280 = vld [vmem:[#allocation9 + $0x8a0] sm:$0xff]
          %v1281 = vld [vmem:[#allocation9 + $0x8a8] sm:$0xff]
          %v1282 = vld [vmem:[#allocation9 + $0x8b0] sm:$0xff]
          %v1283 = vld [vmem:[#allocation9 + $0x8b8] sm:$0xff]
          %v1284 = vld [vmem:[#allocation9 + $0x8c0] sm:$0xff]
          %v1285 = vld [vmem:[#allocation9 + $0x8c8] sm:$0xff]
          %v1286 = vld [vmem:[#allocation9 + $0x8d0] sm:$0xff]
          %v1287 = vld [vmem:[#allocation9 + $0x8d8] sm:$0xff]
          %v1288 = vld [vmem:[#allocation9 + $0x8e0] sm:$0xff]
          %v1289 = vld [vmem:[#allocation9 + $0x8e8] sm:$0xff]
          %v1290 = vld [vmem:[#allocation9 + $0x8f0] sm:$0xff]
          %v1291 = vld [vmem:[#allocation9 + $0x8f8] sm:$0xff]
          %v1292 = vld [vmem:[#allocation11] sm:$0x3f]
          %v1294 = vlaneseq
          %v1295 = vshrl.u32 %v1294, 7
          %v1296 = vsub.s32 0, %v1295
          %v1297 = vrot.slane %v1292, %v1296
          %v1298 = vlaneseq
          %v1299 = vshrl.u32 %v1298, 7
          %v1300 = vsub.s32 1, %v1299
          %v1301 = vrot.slane %v1292, %v1300
          %v1302 = vlaneseq
          %v1303 = vshrl.u32 %v1302, 7
          %v1304 = vsub.s32 2, %v1303
          %v1305 = vrot.slane %v1292, %v1304
          %v1306 = vlaneseq
          %v1307 = vshrl.u32 %v1306, 7
          %v1308 = vsub.s32 3, %v1307
          %v1309 = vrot.slane %v1292, %v1308
          %v1310 = vlaneseq
          %v1311 = vshrl.u32 %v1310, 7
          %v1312 = vsub.s32 4, %v1311
          %v1313 = vrot.slane %v1292, %v1312
          %v1314 = vlaneseq
          %v1315 = vshrl.u32 %v1314, 7
          %v1316 = vsub.s32 5, %v1315
          %v1317 = vrot.slane %v1292, %v1316
          %v1327 = vunpack.c.l.b16 %v1001
          %v1328 = vunpack.c.h.b16 %v1001
          %v1329 = vunpack.c.l.b16 %v1002
          %v1330 = vunpack.c.h.b16 %v1002
          %v1331 = vunpack.c.l.b16 %v1003
          %v1332 = vunpack.c.h.b16 %v1003
          %v1333 = vpack.c.b16 %v1327, %v1327
          %v1334 = vpack.c.b16 %v1328, %v1328
          %v1335 = vpack.c.b16 %v1329, %v1329
          %v1336 = vpack.c.b16 %v1330, %v1330
          %v1337 = vpack.c.b16 %v1331, %v1331
          %v1338 = vpack.c.b16 %v1332, %v1332
          %v1633 = vunpack.c.l.b16 %v1004
          %v1634 = vunpack.c.h.b16 %v1004
          %v1635 = vunpack.c.l.b16 %v1005
          %v1636 = vunpack.c.h.b16 %v1005
          %v1637 = vunpack.c.l.b16 %v1006
          %v1638 = vunpack.c.h.b16 %v1006
          %v1639 = vunpack.c.l.b16 %v1007
          %v1640 = vunpack.c.h.b16 %v1007
          %v1641 = vunpack.c.l.b16 %v1008
          %v1642 = vunpack.c.h.b16 %v1008
          %v1643 = vunpack.c.l.b16 %v1009
          %v1644 = vunpack.c.h.b16 %v1009
          %v1645 = vunpack.c.l.b16 %v1010
          %v1646 = vunpack.c.h.b16 %v1010
          %v1647 = vunpack.c.l.b16 %v1011
          %v1648 = vunpack.c.h.b16 %v1011
          %v1649 = vunpack.c.l.b16 %v1012
          %v1650 = vunpack.c.h.b16 %v1012
          %v1651 = vunpack.c.l.b16 %v1013
          %v1652 = vunpack.c.h.b16 %v1013
          %v1653 = vunpack.c.l.b16 %v1014
          %v1654 = vunpack.c.h.b16 %v1014
          %v1655 = vunpack.c.l.b16 %v1015
          %v1656 = vunpack.c.h.b16 %v1015
          %v1657 = vunpack.c.l.b16 %v1016
          %v1658 = vunpack.c.h.b16 %v1016
          %v1659 = vunpack.c.l.b16 %v1017
          %v1660 = vunpack.c.h.b16 %v1017
          %v1661 = vunpack.c.l.b16 %v1018
          %v1662 = vunpack.c.h.b16 %v1018
          %v1663 = vunpack.c.l.b16 %v1019
          %v1664 = vunpack.c.h.b16 %v1019
          %v1665 = vunpack.c.l.b16 %v1020
          %v1666 = vunpack.c.h.b16 %v1020
          %v1667 = vunpack.c.l.b16 %v1021
          %v1668 = vunpack.c.h.b16 %v1021
          %v1669 = vunpack.c.l.b16 %v1022
          %v1670 = vunpack.c.h.b16 %v1022
          %v1671 = vunpack.c.l.b16 %v1023
          %v1672 = vunpack.c.h.b16 %v1023
          %v1673 = vunpack.c.l.b16 %v1024
          %v1674 = vunpack.c.h.b16 %v1024
          %v1675 = vunpack.c.l.b16 %v1025
          %v1676 = vunpack.c.h.b16 %v1025
          %v1677 = vunpack.c.l.b16 %v1026
          %v1678 = vunpack.c.h.b16 %v1026
          %v1679 = vunpack.c.l.b16 %v1027
          %v1680 = vunpack.c.h.b16 %v1027
          %v1681 = vunpack.c.l.b16 %v1028
          %v1682 = vunpack.c.h.b16 %v1028
          %v1683 = vunpack.c.l.b16 %v1029
          %v1684 = vunpack.c.h.b16 %v1029
          %v1685 = vunpack.c.l.b16 %v1030
          %v1686 = vunpack.c.h.b16 %v1030
          %v1687 = vunpack.c.l.b16 %v1031
          %v1688 = vunpack.c.h.b16 %v1031
          %v1689 = vunpack.c.l.b16 %v1032
          %v1690 = vunpack.c.h.b16 %v1032
          %v1691 = vunpack.c.l.b16 %v1033
          %v1692 = vunpack.c.h.b16 %v1033
          %v1693 = vunpack.c.l.b16 %v1034
          %v1694 = vunpack.c.h.b16 %v1034
          %v1695 = vunpack.c.l.b16 %v1035
          %v1696 = vunpack.c.h.b16 %v1035
          %v1697 = vunpack.c.l.b16 %v1036
          %v1698 = vunpack.c.h.b16 %v1036
          %v1699 = vunpack.c.l.b16 %v1037
          %v1700 = vunpack.c.h.b16 %v1037
          %v1701 = vunpack.c.l.b16 %v1038
          %v1702 = vunpack.c.h.b16 %v1038
          %v1703 = vunpack.c.l.b16 %v1039
          %v1704 = vunpack.c.h.b16 %v1039
          %v1705 = vunpack.c.l.b16 %v1040
          %v1706 = vunpack.c.h.b16 %v1040
          %v1707 = vunpack.c.l.b16 %v1041
          %v1708 = vunpack.c.h.b16 %v1041
          %v1709 = vunpack.c.l.b16 %v1042
          %v1710 = vunpack.c.h.b16 %v1042
          %v1711 = vunpack.c.l.b16 %v1043
          %v1712 = vunpack.c.h.b16 %v1043
          %v1713 = vunpack.c.l.b16 %v1044
          %v1714 = vunpack.c.h.b16 %v1044
          %v1715 = vunpack.c.l.b16 %v1045
          %v1716 = vunpack.c.h.b16 %v1045
          %v1717 = vunpack.c.l.b16 %v1046
          %v1718 = vunpack.c.h.b16 %v1046
          %v1719 = vunpack.c.l.b16 %v1047
          %v1720 = vunpack.c.h.b16 %v1047
          %v1721 = vunpack.c.l.b16 %v1048
          %v1722 = vunpack.c.h.b16 %v1048
          %v1723 = vunpack.c.l.b16 %v1049
          %v1724 = vunpack.c.h.b16 %v1049
          %v1725 = vunpack.c.l.b16 %v1050
          %v1726 = vunpack.c.h.b16 %v1050
          %v1727 = vunpack.c.l.b16 %v1051
          %v1728 = vunpack.c.h.b16 %v1051
          %v1729 = vunpack.c.l.b16 %v1052
          %v1730 = vunpack.c.h.b16 %v1052
          %v1731 = vunpack.c.l.b16 %v1053
          %v1732 = vunpack.c.h.b16 %v1053
          %v1733 = vunpack.c.l.b16 %v1054
          %v1734 = vunpack.c.h.b16 %v1054
          %v1735 = vunpack.c.l.b16 %v1055
          %v1736 = vunpack.c.h.b16 %v1055
          %v1737 = vunpack.c.l.b16 %v1056
          %v1738 = vunpack.c.h.b16 %v1056
          %v1739 = vunpack.c.l.b16 %v1057
          %v1740 = vunpack.c.h.b16 %v1057
          %v1741 = vunpack.c.l.b16 %v1058
          %v1742 = vunpack.c.h.b16 %v1058
          %v1743 = vunpack.c.l.b16 %v1059
          %v1744 = vunpack.c.h.b16 %v1059
          %v1745 = vunpack.c.l.b16 %v1060
          %v1746 = vunpack.c.h.b16 %v1060
          %v1747 = vunpack.c.l.b16 %v1061
          %v1748 = vunpack.c.h.b16 %v1061
          %v1749 = vunpack.c.l.b16 %v1062
          %v1750 = vunpack.c.h.b16 %v1062
          %v1751 = vunpack.c.l.b16 %v1063
          %v1752 = vunpack.c.h.b16 %v1063
          %v1753 = vunpack.c.l.b16 %v1064
          %v1754 = vunpack.c.h.b16 %v1064
          %v1755 = vunpack.c.l.b16 %v1065
          %v1756 = vunpack.c.h.b16 %v1065
          %v1757 = vunpack.c.l.b16 %v1066
          %v1758 = vunpack.c.h.b16 %v1066
          %v1759 = vunpack.c.l.b16 %v1067
          %v1760 = vunpack.c.h.b16 %v1067
          %v1761 = vunpack.c.l.b16 %v1068
          %v1762 = vunpack.c.h.b16 %v1068
          %v1763 = vunpack.c.l.b16 %v1069
          %v1764 = vunpack.c.h.b16 %v1069
          %v1765 = vunpack.c.l.b16 %v1070
          %v1766 = vunpack.c.h.b16 %v1070
          %v1767 = vunpack.c.l.b16 %v1071
          %v1768 = vunpack.c.h.b16 %v1071
          %v1769 = vunpack.c.l.b16 %v1072
          %v1770 = vunpack.c.h.b16 %v1072
          %v1771 = vunpack.c.l.b16 %v1073
          %v1772 = vunpack.c.h.b16 %v1073
          %v1773 = vunpack.c.l.b16 %v1074
          %v1774 = vunpack.c.h.b16 %v1074
          %v1775 = vunpack.c.l.b16 %v1075
          %v1776 = vunpack.c.h.b16 %v1075
          %v1777 = vunpack.c.l.b16 %v1076
          %v1778 = vunpack.c.h.b16 %v1076
          %v1779 = vunpack.c.l.b16 %v1077
          %v1780 = vunpack.c.h.b16 %v1077
          %v1781 = vunpack.c.l.b16 %v1078
          %v1782 = vunpack.c.h.b16 %v1078
          %v1783 = vunpack.c.l.b16 %v1079
          %v1784 = vunpack.c.h.b16 %v1079
          %v1785 = vunpack.c.l.b16 %v1080
          %v1786 = vunpack.c.h.b16 %v1080
          %v1787 = vunpack.c.l.b16 %v1081
          %v1788 = vunpack.c.h.b16 %v1081
          %v1789 = vunpack.c.l.b16 %v1082
          %v1790 = vunpack.c.h.b16 %v1082
          %v1791 = vunpack.c.l.b16 %v1083
          %v1792 = vunpack.c.h.b16 %v1083
          %v1793 = vunpack.c.l.b16 %v1084
          %v1794 = vunpack.c.h.b16 %v1084
          %v1795 = vunpack.c.l.b16 %v1085
          %v1796 = vunpack.c.h.b16 %v1085
          %v1797 = vunpack.c.l.b16 %v1086
          %v1798 = vunpack.c.h.b16 %v1086
          %v1799 = vunpack.c.l.b16 %v1087
          %v1800 = vunpack.c.h.b16 %v1087
          %v1801 = vunpack.c.l.b16 %v1088
          %v1802 = vunpack.c.h.b16 %v1088
          %v1803 = vunpack.c.l.b16 %v1089
          %v1804 = vunpack.c.h.b16 %v1089
          %v1805 = vunpack.c.l.b16 %v1090
          %v1806 = vunpack.c.h.b16 %v1090
          %v1807 = vunpack.c.l.b16 %v1091
          %v1808 = vunpack.c.h.b16 %v1091
          %v1809 = vunpack.c.l.b16 %v1092
          %v1810 = vunpack.c.h.b16 %v1092
          %v1811 = vunpack.c.l.b16 %v1093
          %v1812 = vunpack.c.h.b16 %v1093
          %v1813 = vunpack.c.l.b16 %v1094
          %v1814 = vunpack.c.h.b16 %v1094
          %v1815 = vunpack.c.l.b16 %v1095
          %v1816 = vunpack.c.h.b16 %v1095
          %v1817 = vunpack.c.l.b16 %v1096
          %v1818 = vunpack.c.h.b16 %v1096
          %v1819 = vunpack.c.l.b16 %v1097
          %v1820 = vunpack.c.h.b16 %v1097
          %v1821 = vunpack.c.l.b16 %v1098
          %v1822 = vunpack.c.h.b16 %v1098
          %v1823 = vunpack.c.l.b16 %v1099
          %v1824 = vunpack.c.h.b16 %v1099
          %v1825 = vunpack.c.l.b16 %v1100
          %v1826 = vunpack.c.h.b16 %v1100
          %v1827 = vunpack.c.l.b16 %v1101
          %v1828 = vunpack.c.h.b16 %v1101
          %v1829 = vunpack.c.l.b16 %v1102
          %v1830 = vunpack.c.h.b16 %v1102
          %v1831 = vunpack.c.l.b16 %v1103
          %v1832 = vunpack.c.h.b16 %v1103
          %v1833 = vunpack.c.l.b16 %v1104
          %v1834 = vunpack.c.h.b16 %v1104
          %v1835 = vunpack.c.l.b16 %v1105
          %v1836 = vunpack.c.h.b16 %v1105
          %v1837 = vunpack.c.l.b16 %v1106
          %v1838 = vunpack.c.h.b16 %v1106
          %v1839 = vunpack.c.l.b16 %v1107
          %v1840 = vunpack.c.h.b16 %v1107
          %v1841 = vunpack.c.l.b16 %v1108
          %v1842 = vunpack.c.h.b16 %v1108
          %v1843 = vunpack.c.l.b16 %v1109
          %v1844 = vunpack.c.h.b16 %v1109
          %v1845 = vunpack.c.l.b16 %v1110
          %v1846 = vunpack.c.h.b16 %v1110
          %v1847 = vunpack.c.l.b16 %v1111
          %v1848 = vunpack.c.h.b16 %v1111
          %v1849 = vunpack.c.l.b16 %v1112
          %v1850 = vunpack.c.h.b16 %v1112
          %v1851 = vunpack.c.l.b16 %v1113
          %v1852 = vunpack.c.h.b16 %v1113
          %v1853 = vunpack.c.l.b16 %v1114
          %v1854 = vunpack.c.h.b16 %v1114
          %v1855 = vunpack.c.l.b16 %v1115
          %v1856 = vunpack.c.h.b16 %v1115
          %v1857 = vunpack.c.l.b16 %v1116
          %v1858 = vunpack.c.h.b16 %v1116
          %v1859 = vunpack.c.l.b16 %v1117
          %v1860 = vunpack.c.h.b16 %v1117
          %v1861 = vunpack.c.l.b16 %v1118
          %v1862 = vunpack.c.h.b16 %v1118
          %v1863 = vunpack.c.l.b16 %v1119
          %v1864 = vunpack.c.h.b16 %v1119
          %v1865 = vunpack.c.l.b16 %v1120
          %v1866 = vunpack.c.h.b16 %v1120
          %v1867 = vunpack.c.l.b16 %v1121
          %v1868 = vunpack.c.h.b16 %v1121
          %v1869 = vunpack.c.l.b16 %v1122
          %v1870 = vunpack.c.h.b16 %v1122
          %v1871 = vunpack.c.l.b16 %v1123
          %v1872 = vunpack.c.h.b16 %v1123
          %v1873 = vunpack.c.l.b16 %v1124
          %v1874 = vunpack.c.h.b16 %v1124
          %v1875 = vunpack.c.l.b16 %v1125
          %v1876 = vunpack.c.h.b16 %v1125
          %v1877 = vunpack.c.l.b16 %v1126
          %v1878 = vunpack.c.h.b16 %v1126
          %v1879 = vunpack.c.l.b16 %v1127
          %v1880 = vunpack.c.h.b16 %v1127
          %v1881 = vunpack.c.l.b16 %v1128
          %v1882 = vunpack.c.h.b16 %v1128
          %v1883 = vunpack.c.l.b16 %v1129
          %v1884 = vunpack.c.h.b16 %v1129
          %v1885 = vunpack.c.l.b16 %v1130
          %v1886 = vunpack.c.h.b16 %v1130
          %v1887 = vunpack.c.l.b16 %v1131
          %v1888 = vunpack.c.h.b16 %v1131
          %v1889 = vunpack.c.l.b16 %v1132
          %v1890 = vunpack.c.h.b16 %v1132
          %v1891 = vunpack.c.l.b16 %v1133
          %v1892 = vunpack.c.h.b16 %v1133
          %v1893 = vunpack.c.l.b16 %v1134
          %v1894 = vunpack.c.h.b16 %v1134
          %v1895 = vunpack.c.l.b16 %v1135
          %v1896 = vunpack.c.h.b16 %v1135
          %v1897 = vunpack.c.l.b16 %v1136
          %v1898 = vunpack.c.h.b16 %v1136
          %v1899 = vunpack.c.l.b16 %v1137
          %v1900 = vunpack.c.h.b16 %v1137
          %v1901 = vunpack.c.l.b16 %v1138
          %v1902 = vunpack.c.h.b16 %v1138
          %v1903 = vunpack.c.l.b16 %v1139
          %v1904 = vunpack.c.h.b16 %v1139
          %v1905 = vunpack.c.l.b16 %v1140
          %v1906 = vunpack.c.h.b16 %v1140
          %v1907 = vunpack.c.l.b16 %v1141
          %v1908 = vunpack.c.h.b16 %v1141
          %v1909 = vunpack.c.l.b16 %v1142
          %v1910 = vunpack.c.h.b16 %v1142
          %v1911 = vunpack.c.l.b16 %v1143
          %v1912 = vunpack.c.h.b16 %v1143
          %v1913 = vunpack.c.l.b16 %v1144
          %v1914 = vunpack.c.h.b16 %v1144
          %v1915 = vunpack.c.l.b16 %v1145
          %v1916 = vunpack.c.h.b16 %v1145
          %v1917 = vunpack.c.l.b16 %v1146
          %v1918 = vunpack.c.h.b16 %v1146
          %v1919 = vunpack.c.l.b16 %v1147
          %v1920 = vunpack.c.h.b16 %v1147
          %v1921 = vunpack.c.l.b16 %v1148
          %v1922 = vunpack.c.h.b16 %v1148
          %v1923 = vunpack.c.l.b16 %v1149
          %v1924 = vunpack.c.h.b16 %v1149
          %v1925 = vunpack.c.l.b16 %v1150
          %v1926 = vunpack.c.h.b16 %v1150
          %v1927 = vunpack.c.l.b16 %v1151
          %v1928 = vunpack.c.h.b16 %v1151
          %v1929 = vunpack.c.l.b16 %v1152
          %v1930 = vunpack.c.h.b16 %v1152
          %v1931 = vunpack.c.l.b16 %v1153
          %v1932 = vunpack.c.h.b16 %v1153
          %v1933 = vunpack.c.l.b16 %v1154
          %v1934 = vunpack.c.h.b16 %v1154
          %v1935 = vunpack.c.l.b16 %v1155
          %v1936 = vunpack.c.h.b16 %v1155
          %v1937 = vunpack.c.l.b16 %v1156
          %v1938 = vunpack.c.h.b16 %v1156
          %v1939 = vunpack.c.l.b16 %v1157
          %v1940 = vunpack.c.h.b16 %v1157
          %v1941 = vunpack.c.l.b16 %v1158
          %v1942 = vunpack.c.h.b16 %v1158
          %v1943 = vunpack.c.l.b16 %v1159
          %v1944 = vunpack.c.h.b16 %v1159
          %v1945 = vunpack.c.l.b16 %v1160
          %v1946 = vunpack.c.h.b16 %v1160
          %v1947 = vunpack.c.l.b16 %v1161
          %v1948 = vunpack.c.h.b16 %v1161
          %v1949 = vunpack.c.l.b16 %v1162
          %v1950 = vunpack.c.h.b16 %v1162
          %v1951 = vunpack.c.l.b16 %v1163
          %v1952 = vunpack.c.h.b16 %v1163
          %v1953 = vunpack.c.l.b16 %v1164
          %v1954 = vunpack.c.h.b16 %v1164
          %v1955 = vunpack.c.l.b16 %v1165
          %v1956 = vunpack.c.h.b16 %v1165
          %v1957 = vunpack.c.l.b16 %v1166
          %v1958 = vunpack.c.h.b16 %v1166
          %v1959 = vunpack.c.l.b16 %v1167
          %v1960 = vunpack.c.h.b16 %v1167
          %v1961 = vunpack.c.l.b16 %v1168
          %v1962 = vunpack.c.h.b16 %v1168
          %v1963 = vunpack.c.l.b16 %v1169
          %v1964 = vunpack.c.h.b16 %v1169
          %v1965 = vunpack.c.l.b16 %v1170
          %v1966 = vunpack.c.h.b16 %v1170
          %v1967 = vunpack.c.l.b16 %v1171
          %v1968 = vunpack.c.h.b16 %v1171
          %v1969 = vunpack.c.l.b16 %v1172
          %v1970 = vunpack.c.h.b16 %v1172
          %v1971 = vunpack.c.l.b16 %v1173
          %v1972 = vunpack.c.h.b16 %v1173
          %v1973 = vunpack.c.l.b16 %v1174
          %v1974 = vunpack.c.h.b16 %v1174
          %v1975 = vunpack.c.l.b16 %v1175
          %v1976 = vunpack.c.h.b16 %v1175
          %v1977 = vunpack.c.l.b16 %v1176
          %v1978 = vunpack.c.h.b16 %v1176
          %v1979 = vunpack.c.l.b16 %v1177
          %v1980 = vunpack.c.h.b16 %v1177
          %v1981 = vunpack.c.l.b16 %v1178
          %v1982 = vunpack.c.h.b16 %v1178
          %v1983 = vunpack.c.l.b16 %v1179
          %v1984 = vunpack.c.h.b16 %v1179
          %v1985 = vunpack.c.l.b16 %v1180
          %v1986 = vunpack.c.h.b16 %v1180
          %v1987 = vunpack.c.l.b16 %v1181
          %v1988 = vunpack.c.h.b16 %v1181
          %v1989 = vunpack.c.l.b16 %v1182
          %v1990 = vunpack.c.h.b16 %v1182
          %v1991 = vunpack.c.l.b16 %v1183
          %v1992 = vunpack.c.h.b16 %v1183
          %v1993 = vunpack.c.l.b16 %v1184
          %v1994 = vunpack.c.h.b16 %v1184
          %v1995 = vunpack.c.l.b16 %v1185
          %v1996 = vunpack.c.h.b16 %v1185
          %v1997 = vunpack.c.l.b16 %v1186
          %v1998 = vunpack.c.h.b16 %v1186
          %v1999 = vunpack.c.l.b16 %v1187
          %v2000 = vunpack.c.h.b16 %v1187
          %v2001 = vunpack.c.l.b16 %v1188
          %v2002 = vunpack.c.h.b16 %v1188
          %v2003 = vunpack.c.l.b16 %v1189
          %v2004 = vunpack.c.h.b16 %v1189
          %v2005 = vunpack.c.l.b16 %v1190
          %v2006 = vunpack.c.h.b16 %v1190
          %v2007 = vunpack.c.l.b16 %v1191
          %v2008 = vunpack.c.h.b16 %v1191
          %v2009 = vunpack.c.l.b16 %v1192
          %v2010 = vunpack.c.h.b16 %v1192
          %v2011 = vunpack.c.l.b16 %v1193
          %v2012 = vunpack.c.h.b16 %v1193
          %v2013 = vunpack.c.l.b16 %v1194
          %v2014 = vunpack.c.h.b16 %v1194
          %v2015 = vunpack.c.l.b16 %v1195
          %v2016 = vunpack.c.h.b16 %v1195
          %v2017 = vunpack.c.l.b16 %v1196
          %v2018 = vunpack.c.h.b16 %v1196
          %v2019 = vunpack.c.l.b16 %v1197
          %v2020 = vunpack.c.h.b16 %v1197
          %v2021 = vunpack.c.l.b16 %v1198
          %v2022 = vunpack.c.h.b16 %v1198
          %v2023 = vunpack.c.l.b16 %v1199
          %v2024 = vunpack.c.h.b16 %v1199
          %v2025 = vunpack.c.l.b16 %v1200
          %v2026 = vunpack.c.h.b16 %v1200
          %v2027 = vunpack.c.l.b16 %v1201
          %v2028 = vunpack.c.h.b16 %v1201
          %v2029 = vunpack.c.l.b16 %v1202
          %v2030 = vunpack.c.h.b16 %v1202
          %v2031 = vunpack.c.l.b16 %v1203
          %v2032 = vunpack.c.h.b16 %v1203
          %v2033 = vunpack.c.l.b16 %v1204
          %v2034 = vunpack.c.h.b16 %v1204
          %v2035 = vunpack.c.l.b16 %v1205
          %v2036 = vunpack.c.h.b16 %v1205
          %v2037 = vunpack.c.l.b16 %v1206
          %v2038 = vunpack.c.h.b16 %v1206
          %v2039 = vunpack.c.l.b16 %v1207
          %v2040 = vunpack.c.h.b16 %v1207
          %v2041 = vunpack.c.l.b16 %v1208
          %v2042 = vunpack.c.h.b16 %v1208
          %v2043 = vunpack.c.l.b16 %v1209
          %v2044 = vunpack.c.h.b16 %v1209
          %v2045 = vunpack.c.l.b16 %v1210
          %v2046 = vunpack.c.h.b16 %v1210
          %v2047 = vunpack.c.l.b16 %v1211
          %v2048 = vunpack.c.h.b16 %v1211
          %v2049 = vunpack.c.l.b16 %v1212
          %v2050 = vunpack.c.h.b16 %v1212
          %v2051 = vunpack.c.l.b16 %v1213
          %v2052 = vunpack.c.h.b16 %v1213
          %v2053 = vunpack.c.l.b16 %v1214
          %v2054 = vunpack.c.h.b16 %v1214
          %v2055 = vunpack.c.l.b16 %v1215
          %v2056 = vunpack.c.h.b16 %v1215
          %v2057 = vunpack.c.l.b16 %v1216
          %v2058 = vunpack.c.h.b16 %v1216
          %v2059 = vunpack.c.l.b16 %v1217
          %v2060 = vunpack.c.h.b16 %v1217
          %v2061 = vunpack.c.l.b16 %v1218
          %v2062 = vunpack.c.h.b16 %v1218
          %v2063 = vunpack.c.l.b16 %v1219
          %v2064 = vunpack.c.h.b16 %v1219
          %v2065 = vunpack.c.l.b16 %v1220
          %v2066 = vunpack.c.h.b16 %v1220
          %v2067 = vunpack.c.l.b16 %v1221
          %v2068 = vunpack.c.h.b16 %v1221
          %v2069 = vunpack.c.l.b16 %v1222
          %v2070 = vunpack.c.h.b16 %v1222
          %v2071 = vunpack.c.l.b16 %v1223
          %v2072 = vunpack.c.h.b16 %v1223
          %v2073 = vunpack.c.l.b16 %v1224
          %v2074 = vunpack.c.h.b16 %v1224
          %v2075 = vunpack.c.l.b16 %v1225
          %v2076 = vunpack.c.h.b16 %v1225
          %v2077 = vunpack.c.l.b16 %v1226
          %v2078 = vunpack.c.h.b16 %v1226
          %v2079 = vunpack.c.l.b16 %v1227
          %v2080 = vunpack.c.h.b16 %v1227
          %v2081 = vunpack.c.l.b16 %v1228
          %v2082 = vunpack.c.h.b16 %v1228
          %v2083 = vunpack.c.l.b16 %v1229
          %v2084 = vunpack.c.h.b16 %v1229
          %v2085 = vunpack.c.l.b16 %v1230
          %v2086 = vunpack.c.h.b16 %v1230
          %v2087 = vunpack.c.l.b16 %v1231
          %v2088 = vunpack.c.h.b16 %v1231
          %v2089 = vunpack.c.l.b16 %v1232
          %v2090 = vunpack.c.h.b16 %v1232
          %v2091 = vunpack.c.l.b16 %v1233
          %v2092 = vunpack.c.h.b16 %v1233
          %v2093 = vunpack.c.l.b16 %v1234
          %v2094 = vunpack.c.h.b16 %v1234
          %v2095 = vunpack.c.l.b16 %v1235
          %v2096 = vunpack.c.h.b16 %v1235
          %v2097 = vunpack.c.l.b16 %v1236
          %v2098 = vunpack.c.h.b16 %v1236
          %v2099 = vunpack.c.l.b16 %v1237
          %v2100 = vunpack.c.h.b16 %v1237
          %v2101 = vunpack.c.l.b16 %v1238
          %v2102 = vunpack.c.h.b16 %v1238
          %v2103 = vunpack.c.l.b16 %v1239
          %v2104 = vunpack.c.h.b16 %v1239
          %v2105 = vunpack.c.l.b16 %v1240
          %v2106 = vunpack.c.h.b16 %v1240
          %v2107 = vunpack.c.l.b16 %v1241
          %v2108 = vunpack.c.h.b16 %v1241
          %v2109 = vunpack.c.l.b16 %v1242
          %v2110 = vunpack.c.h.b16 %v1242
          %v2111 = vunpack.c.l.b16 %v1243
          %v2112 = vunpack.c.h.b16 %v1243
          %v2113 = vunpack.c.l.b16 %v1244
          %v2114 = vunpack.c.h.b16 %v1244
          %v2115 = vunpack.c.l.b16 %v1245
          %v2116 = vunpack.c.h.b16 %v1245
          %v2117 = vunpack.c.l.b16 %v1246
          %v2118 = vunpack.c.h.b16 %v1246
          %v2119 = vunpack.c.l.b16 %v1247
          %v2120 = vunpack.c.h.b16 %v1247
          %v2121 = vunpack.c.l.b16 %v1248
          %v2122 = vunpack.c.h.b16 %v1248
          %v2123 = vunpack.c.l.b16 %v1249
          %v2124 = vunpack.c.h.b16 %v1249
          %v2125 = vunpack.c.l.b16 %v1250
          %v2126 = vunpack.c.h.b16 %v1250
          %v2127 = vunpack.c.l.b16 %v1251
          %v2128 = vunpack.c.h.b16 %v1251
          %v2129 = vunpack.c.l.b16 %v1252
          %v2130 = vunpack.c.h.b16 %v1252
          %v2131 = vunpack.c.l.b16 %v1253
          %v2132 = vunpack.c.h.b16 %v1253
          %v2133 = vunpack.c.l.b16 %v1254
          %v2134 = vunpack.c.h.b16 %v1254
          %v2135 = vunpack.c.l.b16 %v1255
          %v2136 = vunpack.c.h.b16 %v1255
          %v2137 = vunpack.c.l.b16 %v1256
          %v2138 = vunpack.c.h.b16 %v1256
          %v2139 = vunpack.c.l.b16 %v1257
          %v2140 = vunpack.c.h.b16 %v1257
          %v2141 = vunpack.c.l.b16 %v1258
          %v2142 = vunpack.c.h.b16 %v1258
          %v2143 = vunpack.c.l.b16 %v1259
          %v2144 = vunpack.c.h.b16 %v1259
          %v2145 = vunpack.c.l.b16 %v1260
          %v2146 = vunpack.c.h.b16 %v1260
          %v2147 = vunpack.c.l.b16 %v1261
          %v2148 = vunpack.c.h.b16 %v1261
          %v2149 = vunpack.c.l.b16 %v1262
          %v2150 = vunpack.c.h.b16 %v1262
          %v2151 = vunpack.c.l.b16 %v1263
          %v2152 = vunpack.c.h.b16 %v1263
          %v2153 = vunpack.c.l.b16 %v1264
          %v2154 = vunpack.c.h.b16 %v1264
          %v2155 = vunpack.c.l.b16 %v1265
          %v2156 = vunpack.c.h.b16 %v1265
          %v2157 = vunpack.c.l.b16 %v1266
          %v2158 = vunpack.c.h.b16 %v1266
          %v2159 = vunpack.c.l.b16 %v1267
          %v2160 = vunpack.c.h.b16 %v1267
          %v2161 = vunpack.c.l.b16 %v1268
          %v2162 = vunpack.c.h.b16 %v1268
          %v2163 = vunpack.c.l.b16 %v1269
          %v2164 = vunpack.c.h.b16 %v1269
          %v2165 = vunpack.c.l.b16 %v1270
          %v2166 = vunpack.c.h.b16 %v1270
          %v2167 = vunpack.c.l.b16 %v1271
          %v2168 = vunpack.c.h.b16 %v1271
          %v2169 = vunpack.c.l.b16 %v1272
          %v2170 = vunpack.c.h.b16 %v1272
          %v2171 = vunpack.c.l.b16 %v1273
          %v2172 = vunpack.c.h.b16 %v1273
          %v2173 = vunpack.c.l.b16 %v1274
          %v2174 = vunpack.c.h.b16 %v1274
          %v2175 = vunpack.c.l.b16 %v1275
          %v2176 = vunpack.c.h.b16 %v1275
          %v2177 = vunpack.c.l.b16 %v1276
          %v2178 = vunpack.c.h.b16 %v1276
          %v2179 = vunpack.c.l.b16 %v1277
          %v2180 = vunpack.c.h.b16 %v1277
          %v2181 = vunpack.c.l.b16 %v1278
          %v2182 = vunpack.c.h.b16 %v1278
          %v2183 = vunpack.c.l.b16 %v1279
          %v2184 = vunpack.c.h.b16 %v1279
          %v2185 = vunpack.c.l.b16 %v1280
          %v2186 = vunpack.c.h.b16 %v1280
          %v2187 = vunpack.c.l.b16 %v1281
          %v2188 = vunpack.c.h.b16 %v1281
          %v2189 = vunpack.c.l.b16 %v1282
          %v2190 = vunpack.c.h.b16 %v1282
          %v2191 = vunpack.c.l.b16 %v1283
          %v2192 = vunpack.c.h.b16 %v1283
          %v2193 = vunpack.c.l.b16 %v1284
          %v2194 = vunpack.c.h.b16 %v1284
          %v2195 = vunpack.c.l.b16 %v1285
          %v2196 = vunpack.c.h.b16 %v1285
          %v2197 = vunpack.c.l.b16 %v1286
          %v2198 = vunpack.c.h.b16 %v1286
          %v2199 = vunpack.c.l.b16 %v1287
          %v2200 = vunpack.c.h.b16 %v1287
          %v2201 = vunpack.c.l.b16 %v1288
          %v2202 = vunpack.c.h.b16 %v1288
          %v2203 = vunpack.c.l.b16 %v1289
          %v2204 = vunpack.c.h.b16 %v1289
          %v2205 = vunpack.c.l.b16 %v1290
          %v2206 = vunpack.c.h.b16 %v1290
          %v2207 = vunpack.c.l.b16 %v1291
          %v2208 = vunpack.c.h.b16 %v1291
          %v2209 = vpack.c.b16 %v1639, %v1633
          %v2210 = vpack.c.b16 %v1640, %v1634
          %v2211 = vpack.c.b16 %v1641, %v1635
          %v2212 = vpack.c.b16 %v1642, %v1636
          %v2213 = vpack.c.b16 %v1643, %v1637
          %v2214 = vpack.c.b16 %v1644, %v1638
          %v2215 = vpack.c.b16 %v1651, %v1645
          %v2216 = vpack.c.b16 %v1652, %v1646
          %v2217 = vpack.c.b16 %v1653, %v1647
          %v2218 = vpack.c.b16 %v1654, %v1648
          %v2219 = vpack.c.b16 %v1655, %v1649
          %v2220 = vpack.c.b16 %v1656, %v1650
          %v2221 = vpack.c.b16 %v1663, %v1657
          %v2222 = vpack.c.b16 %v1664, %v1658
          %v2223 = vpack.c.b16 %v1665, %v1659
          %v2224 = vpack.c.b16 %v1666, %v1660
          %v2225 = vpack.c.b16 %v1667, %v1661
          %v2226 = vpack.c.b16 %v1668, %v1662
          %v2227 = vpack.c.b16 %v1675, %v1669
          %v2228 = vpack.c.b16 %v1676, %v1670
          %v2229 = vpack.c.b16 %v1677, %v1671
          %v2230 = vpack.c.b16 %v1678, %v1672
          %v2231 = vpack.c.b16 %v1679, %v1673
          %v2232 = vpack.c.b16 %v1680, %v1674
          %v2233 = vpack.c.b16 %v1687, %v1681
          %v2234 = vpack.c.b16 %v1688, %v1682
          %v2235 = vpack.c.b16 %v1689, %v1683
          %v2236 = vpack.c.b16 %v1690, %v1684
          %v2237 = vpack.c.b16 %v1691, %v1685
          %v2238 = vpack.c.b16 %v1692, %v1686
          %v2239 = vpack.c.b16 %v1699, %v1693
          %v2240 = vpack.c.b16 %v1700, %v1694
          %v2241 = vpack.c.b16 %v1701, %v1695
          %v2242 = vpack.c.b16 %v1702, %v1696
          %v2243 = vpack.c.b16 %v1703, %v1697
          %v2244 = vpack.c.b16 %v1704, %v1698
          %v2245 = vpack.c.b16 %v1711, %v1705
          %v2246 = vpack.c.b16 %v1712, %v1706
          %v2247 = vpack.c.b16 %v1713, %v1707
          %v2248 = vpack.c.b16 %v1714, %v1708
          %v2249 = vpack.c.b16 %v1715, %v1709
          %v2250 = vpack.c.b16 %v1716, %v1710
          %v2251 = vpack.c.b16 %v1723, %v1717
          %v2252 = vpack.c.b16 %v1724, %v1718
          %v2253 = vpack.c.b16 %v1725, %v1719
          %v2254 = vpack.c.b16 %v1726, %v1720
          %v2255 = vpack.c.b16 %v1727, %v1721
          %v2256 = vpack.c.b16 %v1728, %v1722
          %v2257 = vpack.c.b16 %v1735, %v1729
          %v2258 = vpack.c.b16 %v1736, %v1730
          %v2259 = vpack.c.b16 %v1737, %v1731
          %v2260 = vpack.c.b16 %v1738, %v1732
          %v2261 = vpack.c.b16 %v1739, %v1733
          %v2262 = vpack.c.b16 %v1740, %v1734
          %v2263 = vpack.c.b16 %v1747, %v1741
          %v2264 = vpack.c.b16 %v1748, %v1742
          %v2265 = vpack.c.b16 %v1749, %v1743
          %v2266 = vpack.c.b16 %v1750, %v1744
          %v2267 = vpack.c.b16 %v1751, %v1745
          %v2268 = vpack.c.b16 %v1752, %v1746
          %v2269 = vpack.c.b16 %v1759, %v1753
          %v2270 = vpack.c.b16 %v1760, %v1754
          %v2271 = vpack.c.b16 %v1761, %v1755
          %v2272 = vpack.c.b16 %v1762, %v1756
          %v2273 = vpack.c.b16 %v1763, %v1757
          %v2274 = vpack.c.b16 %v1764, %v1758
          %v2275 = vpack.c.b16 %v1771, %v1765
          %v2276 = vpack.c.b16 %v1772, %v1766
          %v2277 = vpack.c.b16 %v1773, %v1767
          %v2278 = vpack.c.b16 %v1774, %v1768
          %v2279 = vpack.c.b16 %v1775, %v1769
          %v2280 = vpack.c.b16 %v1776, %v1770
          %v2281 = vpack.c.b16 %v1783, %v1777
          %v2282 = vpack.c.b16 %v1784, %v1778
          %v2283 = vpack.c.b16 %v1785, %v1779
          %v2284 = vpack.c.b16 %v1786, %v1780
          %v2285 = vpack.c.b16 %v1787, %v1781
          %v2286 = vpack.c.b16 %v1788, %v1782
          %v2287 = vpack.c.b16 %v1795, %v1789
          %v2288 = vpack.c.b16 %v1796, %v1790
          %v2289 = vpack.c.b16 %v1797, %v1791
          %v2290 = vpack.c.b16 %v1798, %v1792
          %v2291 = vpack.c.b16 %v1799, %v1793
          %v2292 = vpack.c.b16 %v1800, %v1794
          %v2293 = vpack.c.b16 %v1807, %v1801
          %v2294 = vpack.c.b16 %v1808, %v1802
          %v2295 = vpack.c.b16 %v1809, %v1803
          %v2296 = vpack.c.b16 %v1810, %v1804
          %v2297 = vpack.c.b16 %v1811, %v1805
          %v2298 = vpack.c.b16 %v1812, %v1806
          %v2299 = vpack.c.b16 %v1819, %v1813
          %v2300 = vpack.c.b16 %v1820, %v1814
          %v2301 = vpack.c.b16 %v1821, %v1815
          %v2302 = vpack.c.b16 %v1822, %v1816
          %v2303 = vpack.c.b16 %v1823, %v1817
          %v2304 = vpack.c.b16 %v1824, %v1818
          %v2305 = vpack.c.b16 %v1831, %v1825
          %v2306 = vpack.c.b16 %v1832, %v1826
          %v2307 = vpack.c.b16 %v1833, %v1827
          %v2308 = vpack.c.b16 %v1834, %v1828
          %v2309 = vpack.c.b16 %v1835, %v1829
          %v2310 = vpack.c.b16 %v1836, %v1830
          %v2311 = vpack.c.b16 %v1843, %v1837
          %v2312 = vpack.c.b16 %v1844, %v1838
          %v2313 = vpack.c.b16 %v1845, %v1839
          %v2314 = vpack.c.b16 %v1846, %v1840
          %v2315 = vpack.c.b16 %v1847, %v1841
          %v2316 = vpack.c.b16 %v1848, %v1842
          %v2317 = vpack.c.b16 %v1855, %v1849
          %v2318 = vpack.c.b16 %v1856, %v1850
          %v2319 = vpack.c.b16 %v1857, %v1851
          %v2320 = vpack.c.b16 %v1858, %v1852
          %v2321 = vpack.c.b16 %v1859, %v1853
          %v2322 = vpack.c.b16 %v1860, %v1854
          %v2323 = vpack.c.b16 %v1867, %v1861
          %v2324 = vpack.c.b16 %v1868, %v1862
          %v2325 = vpack.c.b16 %v1869, %v1863
          %v2326 = vpack.c.b16 %v1870, %v1864
          %v2327 = vpack.c.b16 %v1871, %v1865
          %v2328 = vpack.c.b16 %v1872, %v1866
          %v2329 = vpack.c.b16 %v1879, %v1873
          %v2330 = vpack.c.b16 %v1880, %v1874
          %v2331 = vpack.c.b16 %v1881, %v1875
          %v2332 = vpack.c.b16 %v1882, %v1876
          %v2333 = vpack.c.b16 %v1883, %v1877
          %v2334 = vpack.c.b16 %v1884, %v1878
          %v2335 = vpack.c.b16 %v1891, %v1885
          %v2336 = vpack.c.b16 %v1892, %v1886
          %v2337 = vpack.c.b16 %v1893, %v1887
          %v2338 = vpack.c.b16 %v1894, %v1888
          %v2339 = vpack.c.b16 %v1895, %v1889
          %v2340 = vpack.c.b16 %v1896, %v1890
          %v2341 = vpack.c.b16 %v1903, %v1897
          %v2342 = vpack.c.b16 %v1904, %v1898
          %v2343 = vpack.c.b16 %v1905, %v1899
          %v2344 = vpack.c.b16 %v1906, %v1900
          %v2345 = vpack.c.b16 %v1907, %v1901
          %v2346 = vpack.c.b16 %v1908, %v1902
          %v2347 = vpack.c.b16 %v1915, %v1909
          %v2348 = vpack.c.b16 %v1916, %v1910
          %v2349 = vpack.c.b16 %v1917, %v1911
          %v2350 = vpack.c.b16 %v1918, %v1912
          %v2351 = vpack.c.b16 %v1919, %v1913
          %v2352 = vpack.c.b16 %v1920, %v1914
          %v2353 = vpack.c.b16 %v1927, %v1921
          %v2354 = vpack.c.b16 %v1928, %v1922
          %v2355 = vpack.c.b16 %v1929, %v1923
          %v2356 = vpack.c.b16 %v1930, %v1924
          %v2357 = vpack.c.b16 %v1931, %v1925
          %v2358 = vpack.c.b16 %v1932, %v1926
          %v2359 = vpack.c.b16 %v1939, %v1933
          %v2360 = vpack.c.b16 %v1940, %v1934
          %v2361 = vpack.c.b16 %v1941, %v1935
          %v2362 = vpack.c.b16 %v1942, %v1936
          %v2363 = vpack.c.b16 %v1943, %v1937
          %v2364 = vpack.c.b16 %v1944, %v1938
          %v2365 = vpack.c.b16 %v1951, %v1945
          %v2366 = vpack.c.b16 %v1952, %v1946
          %v2367 = vpack.c.b16 %v1953, %v1947
          %v2368 = vpack.c.b16 %v1954, %v1948
          %v2369 = vpack.c.b16 %v1955, %v1949
          %v2370 = vpack.c.b16 %v1956, %v1950
          %v2371 = vpack.c.b16 %v1963, %v1957
          %v2372 = vpack.c.b16 %v1964, %v1958
          %v2373 = vpack.c.b16 %v1965, %v1959
          %v2374 = vpack.c.b16 %v1966, %v1960
          %v2375 = vpack.c.b16 %v1967, %v1961
          %v2376 = vpack.c.b16 %v1968, %v1962
          %v2377 = vpack.c.b16 %v1975, %v1969
          %v2378 = vpack.c.b16 %v1976, %v1970
          %v2379 = vpack.c.b16 %v1977, %v1971
          %v2380 = vpack.c.b16 %v1978, %v1972
          %v2381 = vpack.c.b16 %v1979, %v1973
          %v2382 = vpack.c.b16 %v1980, %v1974
          %v2383 = vpack.c.b16 %v1987, %v1981
          %v2384 = vpack.c.b16 %v1988, %v1982
          %v2385 = vpack.c.b16 %v1989, %v1983
          %v2386 = vpack.c.b16 %v1990, %v1984
          %v2387 = vpack.c.b16 %v1991, %v1985
          %v2388 = vpack.c.b16 %v1992, %v1986
          %v2389 = vpack.c.b16 %v1999, %v1993
          %v2390 = vpack.c.b16 %v2000, %v1994
          %v2391 = vpack.c.b16 %v2001, %v1995
          %v2392 = vpack.c.b16 %v2002, %v1996
          %v2393 = vpack.c.b16 %v2003, %v1997
          %v2394 = vpack.c.b16 %v2004, %v1998
          %v2395 = vpack.c.b16 %v2011, %v2005
          %v2396 = vpack.c.b16 %v2012, %v2006
          %v2397 = vpack.c.b16 %v2013, %v2007
          %v2398 = vpack.c.b16 %v2014, %v2008
          %v2399 = vpack.c.b16 %v2015, %v2009
          %v2400 = vpack.c.b16 %v2016, %v2010
          %v2401 = vpack.c.b16 %v2023, %v2017
          %v2402 = vpack.c.b16 %v2024, %v2018
          %v2403 = vpack.c.b16 %v2025, %v2019
          %v2404 = vpack.c.b16 %v2026, %v2020
          %v2405 = vpack.c.b16 %v2027, %v2021
          %v2406 = vpack.c.b16 %v2028, %v2022
          %v2407 = vpack.c.b16 %v2035, %v2029
          %v2408 = vpack.c.b16 %v2036, %v2030
          %v2409 = vpack.c.b16 %v2037, %v2031
          %v2410 = vpack.c.b16 %v2038, %v2032
          %v2411 = vpack.c.b16 %v2039, %v2033
          %v2412 = vpack.c.b16 %v2040, %v2034
          %v2413 = vpack.c.b16 %v2047, %v2041
          %v2414 = vpack.c.b16 %v2048, %v2042
          %v2415 = vpack.c.b16 %v2049, %v2043
          %v2416 = vpack.c.b16 %v2050, %v2044
          %v2417 = vpack.c.b16 %v2051, %v2045
          %v2418 = vpack.c.b16 %v2052, %v2046
          %v2419 = vpack.c.b16 %v2059, %v2053
          %v2420 = vpack.c.b16 %v2060, %v2054
          %v2421 = vpack.c.b16 %v2061, %v2055
          %v2422 = vpack.c.b16 %v2062, %v2056
          %v2423 = vpack.c.b16 %v2063, %v2057
          %v2424 = vpack.c.b16 %v2064, %v2058
          %v2425 = vpack.c.b16 %v2071, %v2065
          %v2426 = vpack.c.b16 %v2072, %v2066
          %v2427 = vpack.c.b16 %v2073, %v2067
          %v2428 = vpack.c.b16 %v2074, %v2068
          %v2429 = vpack.c.b16 %v2075, %v2069
          %v2430 = vpack.c.b16 %v2076, %v2070
          %v2431 = vpack.c.b16 %v2083, %v2077
          %v2432 = vpack.c.b16 %v2084, %v2078
          %v2433 = vpack.c.b16 %v2085, %v2079
          %v2434 = vpack.c.b16 %v2086, %v2080
          %v2435 = vpack.c.b16 %v2087, %v2081
          %v2436 = vpack.c.b16 %v2088, %v2082
          %v2437 = vpack.c.b16 %v2095, %v2089
          %v2438 = vpack.c.b16 %v2096, %v2090
          %v2439 = vpack.c.b16 %v2097, %v2091
          %v2440 = vpack.c.b16 %v2098, %v2092
          %v2441 = vpack.c.b16 %v2099, %v2093
          %v2442 = vpack.c.b16 %v2100, %v2094
          %v2443 = vpack.c.b16 %v2107, %v2101
          %v2444 = vpack.c.b16 %v2108, %v2102
          %v2445 = vpack.c.b16 %v2109, %v2103
          %v2446 = vpack.c.b16 %v2110, %v2104
          %v2447 = vpack.c.b16 %v2111, %v2105
          %v2448 = vpack.c.b16 %v2112, %v2106
          %v2449 = vpack.c.b16 %v2119, %v2113
          %v2450 = vpack.c.b16 %v2120, %v2114
          %v2451 = vpack.c.b16 %v2121, %v2115
          %v2452 = vpack.c.b16 %v2122, %v2116
          %v2453 = vpack.c.b16 %v2123, %v2117
          %v2454 = vpack.c.b16 %v2124, %v2118
          %v2455 = vpack.c.b16 %v2131, %v2125
          %v2456 = vpack.c.b16 %v2132, %v2126
          %v2457 = vpack.c.b16 %v2133, %v2127
          %v2458 = vpack.c.b16 %v2134, %v2128
          %v2459 = vpack.c.b16 %v2135, %v2129
          %v2460 = vpack.c.b16 %v2136, %v2130
          %v2461 = vpack.c.b16 %v2143, %v2137
          %v2462 = vpack.c.b16 %v2144, %v2138
          %v2463 = vpack.c.b16 %v2145, %v2139
          %v2464 = vpack.c.b16 %v2146, %v2140
          %v2465 = vpack.c.b16 %v2147, %v2141
          %v2466 = vpack.c.b16 %v2148, %v2142
          %v2467 = vpack.c.b16 %v2155, %v2149
          %v2468 = vpack.c.b16 %v2156, %v2150
          %v2469 = vpack.c.b16 %v2157, %v2151
          %v2470 = vpack.c.b16 %v2158, %v2152
          %v2471 = vpack.c.b16 %v2159, %v2153
          %v2472 = vpack.c.b16 %v2160, %v2154
          %v2473 = vpack.c.b16 %v2167, %v2161
          %v2474 = vpack.c.b16 %v2168, %v2162
          %v2475 = vpack.c.b16 %v2169, %v2163
          %v2476 = vpack.c.b16 %v2170, %v2164
          %v2477 = vpack.c.b16 %v2171, %v2165
          %v2478 = vpack.c.b16 %v2172, %v2166
          %v2479 = vpack.c.b16 %v2179, %v2173
          %v2480 = vpack.c.b16 %v2180, %v2174
          %v2481 = vpack.c.b16 %v2181, %v2175
          %v2482 = vpack.c.b16 %v2182, %v2176
          %v2483 = vpack.c.b16 %v2183, %v2177
          %v2484 = vpack.c.b16 %v2184, %v2178
          %v2485 = vpack.c.b16 %v2191, %v2185
          %v2486 = vpack.c.b16 %v2192, %v2186
          %v2487 = vpack.c.b16 %v2193, %v2187
          %v2488 = vpack.c.b16 %v2194, %v2188
          %v2489 = vpack.c.b16 %v2195, %v2189
          %v2490 = vpack.c.b16 %v2196, %v2190
          %v2491 = vpack.c.b16 %v2203, %v2197
          %v2492 = vpack.c.b16 %v2204, %v2198
          %v2493 = vpack.c.b16 %v2205, %v2199
          %v2494 = vpack.c.b16 %v2206, %v2200
          %v2495 = vpack.c.b16 %v2207, %v2201
          %v2496 = vpack.c.b16 %v2208, %v2202
          %2785 = vmatprep.subr.bf16.mxu0 %v2210
          %2786 = vmatpush1.bf16.msra.mxu0 %v2209
          %2787 = vmatprep.subr.bf16.mxu0 %v2216
          %2788 = vmatpush1.bf16.msra.mxu0 %v2215
          %2789 = vmatprep.subr.bf16.mxu0 %v2222
          %2790 = vmatpush1.bf16.msra.mxu0 %v2221
          %2791 = vmatprep.subr.bf16.mxu0 %v2228
          %2792 = vmatpush1.bf16.msra.mxu0 %v2227
          %2793 = vmatprep.subr.bf16.mxu0 %v2234
          %2794 = vmatpush1.bf16.msra.mxu0 %v2233
          %2795 = vmatprep.subr.bf16.mxu0 %v2240
          %2796 = vmatpush1.bf16.msra.mxu0 %v2239
          %2797 = vmatprep.subr.bf16.mxu0 %v2246
          %2798 = vmatpush1.bf16.msra.mxu0 %v2245
          %2799 = vmatprep.subr.bf16.mxu0 %v2252
          %2800 = vmatpush1.bf16.msra.mxu0 %v2251
          %2801 = vmatprep.subr.bf16.mxu0 %v2258
          %2802 = vmatpush1.bf16.msra.mxu0 %v2257
          %2803 = vmatprep.subr.bf16.mxu0 %v2264
          %2804 = vmatpush1.bf16.msra.mxu0 %v2263
          %2805 = vmatprep.subr.bf16.mxu0 %v2270
          %2806 = vmatpush1.bf16.msra.mxu0 %v2269
          %2807 = vmatprep.subr.bf16.mxu0 %v2276
          %2808 = vmatpush1.bf16.msra.mxu0 %v2275
          %2809 = vmatprep.subr.bf16.mxu0 %v2282
          %2810 = vmatpush1.bf16.msra.mxu0 %v2281
          %2811 = vmatprep.subr.bf16.mxu0 %v2288
          %2812 = vmatpush1.bf16.msra.mxu0 %v2287
          %2813 = vmatprep.subr.bf16.mxu0 %v2294
          %2814 = vmatpush1.bf16.msra.mxu0 %v2293
          %2815 = vmatprep.subr.bf16.mxu0 %v2300
          %2816 = vmatpush1.bf16.msra.mxu0 %v2299
          %2817 = vmatprep.mubr.bf16.mxu0 %v1334
          %2818 = vmatmul.mubr.bf16.gmra.mrb[0].mxu0 %v1333
          %v2819 = vpop.f32.mrb[0].mxu0
          %v2820 = vadd.f32 %v1297, %v2819
          %v2821 = vpop.f32.mrb[0].mxu0
          %v2822 = vadd.f32 %v1301, %v2821
          %v2823 = vpop.f32.mrb[0].mxu0
          %v2824 = vpop.f32.mrb[0].mxu0
          %2825 = vdwg.mxu0
          %2826 = vmatprep.subr.bf16.mxu0 %v2306
          %2827 = vmatpush1.bf16.msra.mxu0 %v2305
          %2828 = vmatprep.subr.bf16.mxu0 %v2312
          %2829 = vmatpush1.bf16.msra.mxu0 %v2311
          %2830 = vmatprep.subr.bf16.mxu0 %v2318
          %2831 = vmatpush1.bf16.msra.mxu0 %v2317
          %2832 = vmatprep.subr.bf16.mxu0 %v2324
          %2833 = vmatpush1.bf16.msra.mxu0 %v2323
          %2834 = vmatprep.subr.bf16.mxu0 %v2330
          %2835 = vmatpush1.bf16.msra.mxu0 %v2329
          %2836 = vmatprep.subr.bf16.mxu0 %v2336
          %2837 = vmatpush1.bf16.msra.mxu0 %v2335
          %2838 = vmatprep.subr.bf16.mxu0 %v2342
          %2839 = vmatpush1.bf16.msra.mxu0 %v2341
          %2840 = vmatprep.subr.bf16.mxu0 %v2348
          %2841 = vmatpush1.bf16.msra.mxu0 %v2347
          %2842 = vmatprep.subr.bf16.mxu0 %v2354
          %2843 = vmatpush1.bf16.msra.mxu0 %v2353
          %2844 = vmatprep.subr.bf16.mxu0 %v2360
          %2845 = vmatpush1.bf16.msra.mxu0 %v2359
          %2846 = vmatprep.subr.bf16.mxu0 %v2366
          %2847 = vmatpush1.bf16.msra.mxu0 %v2365
          %2848 = vmatprep.subr.bf16.mxu0 %v2372
          %2849 = vmatpush1.bf16.msra.mxu0 %v2371
          %2850 = vmatprep.subr.bf16.mxu0 %v2378
          %2851 = vmatpush1.bf16.msra.mxu0 %v2377
          %2852 = vmatprep.subr.bf16.mxu0 %v2384
          %2853 = vmatpush1.bf16.msra.mxu0 %v2383
          %2854 = vmatprep.subr.bf16.mxu0 %v2390
          %2855 = vmatpush1.bf16.msra.mxu0 %v2389
          %2856 = vmatprep.subr.bf16.mxu0 %v2396
          %2857 = vmatpush1.bf16.msra.mxu0 %v2395
          %2858 = vmatprep.mubr.bf16.mxu0 %v1336
          %2859 = vmatmul.mubr.bf16.gmra.mrb[0].mxu0 %v1335
          %v2860 = vpop.f32.mrb[0].mxu0
          %v2861 = vadd.f32 %v2820, %v2860
          %v2862 = vpop.f32.mrb[0].mxu0
          %v2863 = vadd.f32 %v2822, %v2862
          %v2864 = vpop.f32.mrb[0].mxu0
          %v2865 = vpop.f32.mrb[0].mxu0
          %2866 = vdwg.mxu0
          %2867 = vmatprep.subr.bf16.mxu0 %v2402
          %2868 = vmatpush1.bf16.msra.mxu0 %v2401
          %2869 = vmatprep.subr.bf16.mxu0 %v2408
          %2870 = vmatpush1.bf16.msra.mxu0 %v2407
          %2871 = vmatprep.subr.bf16.mxu0 %v2414
          %2872 = vmatpush1.bf16.msra.mxu0 %v2413
          %2873 = vmatprep.subr.bf16.mxu0 %v2420
          %2874 = vmatpush1.bf16.msra.mxu0 %v2419
          %2875 = vmatprep.subr.bf16.mxu0 %v2426
          %2876 = vmatpush1.bf16.msra.mxu0 %v2425
          %2877 = vmatprep.subr.bf16.mxu0 %v2432
          %2878 = vmatpush1.bf16.msra.mxu0 %v2431
          %2879 = vmatprep.subr.bf16.mxu0 %v2438
          %2880 = vmatpush1.bf16.msra.mxu0 %v2437
          %2881 = vmatprep.subr.bf16.mxu0 %v2444
          %2882 = vmatpush1.bf16.msra.mxu0 %v2443
          %2883 = vmatprep.subr.bf16.mxu0 %v2450
          %2884 = vmatpush1.bf16.msra.mxu0 %v2449
          %2885 = vmatprep.subr.bf16.mxu0 %v2456
          %2886 = vmatpush1.bf16.msra.mxu0 %v2455
          %2887 = vmatprep.subr.bf16.mxu0 %v2462
          %2888 = vmatpush1.bf16.msra.mxu0 %v2461
          %2889 = vmatprep.subr.bf16.mxu0 %v2468
          %2890 = vmatpush1.bf16.msra.mxu0 %v2467
          %2891 = vmatprep.subr.bf16.mxu0 %v2474
          %2892 = vmatpush1.bf16.msra.mxu0 %v2473
          %2893 = vmatprep.subr.bf16.mxu0 %v2480
          %2894 = vmatpush1.bf16.msra.mxu0 %v2479
          %2895 = vmatprep.subr.bf16.mxu0 %v2486
          %2896 = vmatpush1.bf16.msra.mxu0 %v2485
          %2897 = vmatprep.subr.bf16.mxu0 %v2492
          %2898 = vmatpush1.bf16.msra.mxu0 %v2491
          %2899 = vmatprep.mubr.bf16.mxu0 %v1338
          %2900 = vmatmul.mubr.bf16.gmra.mrb[0].mxu0 %v1337
          %v2901 = vpop.f32.mrb[0].mxu0
          %v2902 = vadd.f32 %v2861, %v2901
          %v2903 = vpop.f32.mrb[0].mxu0
          %v2904 = vadd.f32 %v2863, %v2903
          %v2905 = vpop.f32.mrb[0].mxu0
          %v2906 = vpop.f32.mrb[0].mxu0
          %2907 = vdwg.mxu0
          %2908 = vmatprep.subr.bf16.mxu0 %v2212
          %2909 = vmatpush1.bf16.msra.mxu0 %v2211
          %2910 = vmatprep.subr.bf16.mxu0 %v2218
          %2911 = vmatpush1.bf16.msra.mxu0 %v2217
          %2912 = vmatprep.subr.bf16.mxu0 %v2224
          %2913 = vmatpush1.bf16.msra.mxu0 %v2223
          %2914 = vmatprep.subr.bf16.mxu0 %v2230
          %2915 = vmatpush1.bf16.msra.mxu0 %v2229
          %2916 = vmatprep.subr.bf16.mxu0 %v2236
          %2917 = vmatpush1.bf16.msra.mxu0 %v2235
          %2918 = vmatprep.subr.bf16.mxu0 %v2242
          %2919 = vmatpush1.bf16.msra.mxu0 %v2241
          %2920 = vmatprep.subr.bf16.mxu0 %v2248
          %2921 = vmatpush1.bf16.msra.mxu0 %v2247
          %2922 = vmatprep.subr.bf16.mxu0 %v2254
          %2923 = vmatpush1.bf16.msra.mxu0 %v2253
          %2924 = vmatprep.subr.bf16.mxu0 %v2260
          %2925 = vmatpush1.bf16.msra.mxu0 %v2259
          %2926 = vmatprep.subr.bf16.mxu0 %v2266
          %2927 = vmatpush1.bf16.msra.mxu0 %v2265
          %2928 = vmatprep.subr.bf16.mxu0 %v2272
          %2929 = vmatpush1.bf16.msra.mxu0 %v2271
          %2930 = vmatprep.subr.bf16.mxu0 %v2278
          %2931 = vmatpush1.bf16.msra.mxu0 %v2277
          %2932 = vmatprep.subr.bf16.mxu0 %v2284
          %2933 = vmatpush1.bf16.msra.mxu0 %v2283
          %2934 = vmatprep.subr.bf16.mxu0 %v2290
          %2935 = vmatpush1.bf16.msra.mxu0 %v2289
          %2936 = vmatprep.subr.bf16.mxu0 %v2296
          %2937 = vmatpush1.bf16.msra.mxu0 %v2295
          %2938 = vmatprep.subr.bf16.mxu0 %v2302
          %2939 = vmatpush1.bf16.msra.mxu0 %v2301
          %2940 = vmatprep.mubr.bf16.mxu0 %v1334
          %2941 = vmatmul.mubr.bf16.gmra.mrb[0].mxu0 %v1333
          %v2942 = vpop.f32.mrb[0].mxu0
          %v2943 = vadd.f32 %v1305, %v2942
          %v2944 = vpop.f32.mrb[0].mxu0
          %v2945 = vadd.f32 %v1309, %v2944
          %v2946 = vpop.f32.mrb[0].mxu0
          %v2947 = vpop.f32.mrb[0].mxu0
          %2948 = vdwg.mxu0
          %2949 = vmatprep.subr.bf16.mxu0 %v2308
          %2950 = vmatpush1.bf16.msra.mxu0 %v2307
          %2951 = vmatprep.subr.bf16.mxu0 %v2314
          %2952 = vmatpush1.bf16.msra.mxu0 %v2313
          %2953 = vmatprep.subr.bf16.mxu0 %v2320
          %2954 = vmatpush1.bf16.msra.mxu0 %v2319
          %2955 = vmatprep.subr.bf16.mxu0 %v2326
          %2956 = vmatpush1.bf16.msra.mxu0 %v2325
          %2957 = vmatprep.subr.bf16.mxu0 %v2332
          %2958 = vmatpush1.bf16.msra.mxu0 %v2331
          %2959 = vmatprep.subr.bf16.mxu0 %v2338
          %2960 = vmatpush1.bf16.msra.mxu0 %v2337
          %2961 = vmatprep.subr.bf16.mxu0 %v2344
          %2962 = vmatpush1.bf16.msra.mxu0 %v2343
          %2963 = vmatprep.subr.bf16.mxu0 %v2350
          %2964 = vmatpush1.bf16.msra.mxu0 %v2349
          %2965 = vmatprep.subr.bf16.mxu0 %v2356
          %2966 = vmatpush1.bf16.msra.mxu0 %v2355
          %2967 = vmatprep.subr.bf16.mxu0 %v2362
          %2968 = vmatpush1.bf16.msra.mxu0 %v2361
          %2969 = vmatprep.subr.bf16.mxu0 %v2368
          %2970 = vmatpush1.bf16.msra.mxu0 %v2367
          %2971 = vmatprep.subr.bf16.mxu0 %v2374
          %2972 = vmatpush1.bf16.msra.mxu0 %v2373
          %2973 = vmatprep.subr.bf16.mxu0 %v2380
          %2974 = vmatpush1.bf16.msra.mxu0 %v2379
          %2975 = vmatprep.subr.bf16.mxu0 %v2386
          %2976 = vmatpush1.bf16.msra.mxu0 %v2385
          %2977 = vmatprep.subr.bf16.mxu0 %v2392
          %2978 = vmatpush1.bf16.msra.mxu0 %v2391
          %2979 = vmatprep.subr.bf16.mxu0 %v2398
          %2980 = vmatpush1.bf16.msra.mxu0 %v2397
          %2981 = vmatprep.mubr.bf16.mxu0 %v1336
          %2982 = vmatmul.mubr.bf16.gmra.mrb[0].mxu0 %v1335
          %v2983 = vpop.f32.mrb[0].mxu0
          %v2984 = vadd.f32 %v2943, %v2983
          %v2985 = vpop.f32.mrb[0].mxu0
          %v2986 = vadd.f32 %v2945, %v2985
          %v2987 = vpop.f32.mrb[0].mxu0
          %v2988 = vpop.f32.mrb[0].mxu0
          %2989 = vdwg.mxu0
          %2990 = vmatprep.subr.bf16.mxu0 %v2404
          %2991 = vmatpush1.bf16.msra.mxu0 %v2403
          %2992 = vmatprep.subr.bf16.mxu0 %v2410
          %2993 = vmatpush1.bf16.msra.mxu0 %v2409
          %2994 = vmatprep.subr.bf16.mxu0 %v2416
          %2995 = vmatpush1.bf16.msra.mxu0 %v2415
          %2996 = vmatprep.subr.bf16.mxu0 %v2422
          %2997 = vmatpush1.bf16.msra.mxu0 %v2421
          %2998 = vmatprep.subr.bf16.mxu0 %v2428
          %2999 = vmatpush1.bf16.msra.mxu0 %v2427
          %3000 = vmatprep.subr.bf16.mxu0 %v2434
          %3001 = vmatpush1.bf16.msra.mxu0 %v2433
          %3002 = vmatprep.subr.bf16.mxu0 %v2440
          %3003 = vmatpush1.bf16.msra.mxu0 %v2439
          %3004 = vmatprep.subr.bf16.mxu0 %v2446
          %3005 = vmatpush1.bf16.msra.mxu0 %v2445
          %3006 = vmatprep.subr.bf16.mxu0 %v2452
          %3007 = vmatpush1.bf16.msra.mxu0 %v2451
          %3008 = vmatprep.subr.bf16.mxu0 %v2458
          %3009 = vmatpush1.bf16.msra.mxu0 %v2457
          %3010 = vmatprep.subr.bf16.mxu0 %v2464
          %3011 = vmatpush1.bf16.msra.mxu0 %v2463
          %3012 = vmatprep.subr.bf16.mxu0 %v2470
          %3013 = vmatpush1.bf16.msra.mxu0 %v2469
          %3014 = vmatprep.subr.bf16.mxu0 %v2476
          %3015 = vmatpush1.bf16.msra.mxu0 %v2475
          %3016 = vmatprep.subr.bf16.mxu0 %v2482
          %3017 = vmatpush1.bf16.msra.mxu0 %v2481
          %3018 = vmatprep.subr.bf16.mxu0 %v2488
          %3019 = vmatpush1.bf16.msra.mxu0 %v2487
          %3020 = vmatprep.subr.bf16.mxu0 %v2494
          %3021 = vmatpush1.bf16.msra.mxu0 %v2493
          %3022 = vmatprep.mubr.bf16.mxu0 %v1338
          %3023 = vmatmul.mubr.bf16.gmra.mrb[0].mxu0 %v1337
          %v3024 = vpop.f32.mrb[0].mxu0
          %v3025 = vadd.f32 %v2984, %v3024
          %v3026 = vpop.f32.mrb[0].mxu0
          %v3027 = vadd.f32 %v2986, %v3026
          %v3028 = vpop.f32.mrb[0].mxu0
          %v3029 = vpop.f32.mrb[0].mxu0
          %3030 = vdwg.mxu0
          %3031 = vmatprep.subr.bf16.mxu0 %v2214
          %3032 = vmatpush1.bf16.msra.mxu0 %v2213
          %3033 = vmatprep.subr.bf16.mxu0 %v2220
          %3034 = vmatpush1.bf16.msra.mxu0 %v2219
          %3035 = vmatprep.subr.bf16.mxu0 %v2226
          %3036 = vmatpush1.bf16.msra.mxu0 %v2225
          %3037 = vmatprep.subr.bf16.mxu0 %v2232
          %3038 = vmatpush1.bf16.msra.mxu0 %v2231
          %3039 = vmatprep.subr.bf16.mxu0 %v2238
          %3040 = vmatpush1.bf16.msra.mxu0 %v2237
          %3041 = vmatprep.subr.bf16.mxu0 %v2244
          %3042 = vmatpush1.bf16.msra.mxu0 %v2243
          %3043 = vmatprep.subr.bf16.mxu0 %v2250
          %3044 = vmatpush1.bf16.msra.mxu0 %v2249
          %3045 = vmatprep.subr.bf16.mxu0 %v2256
          %3046 = vmatpush1.bf16.msra.mxu0 %v2255
          %3047 = vmatprep.subr.bf16.mxu0 %v2262
          %3048 = vmatpush1.bf16.msra.mxu0 %v2261
          %3049 = vmatprep.subr.bf16.mxu0 %v2268
          %3050 = vmatpush1.bf16.msra.mxu0 %v2267
          %3051 = vmatprep.subr.bf16.mxu0 %v2274
          %3052 = vmatpush1.bf16.msra.mxu0 %v2273
          %3053 = vmatprep.subr.bf16.mxu0 %v2280
          %3054 = vmatpush1.bf16.msra.mxu0 %v2279
          %3055 = vmatprep.subr.bf16.mxu0 %v2286
          %3056 = vmatpush1.bf16.msra.mxu0 %v2285
          %3057 = vmatprep.subr.bf16.mxu0 %v2292
          %3058 = vmatpush1.bf16.msra.mxu0 %v2291
          %3059 = vmatprep.subr.bf16.mxu0 %v2298
          %3060 = vmatpush1.bf16.msra.mxu0 %v2297
          %3061 = vmatprep.subr.bf16.mxu0 %v2304
          %3062 = vmatpush1.bf16.msra.mxu0 %v2303
          %3063 = vmatprep.mubr.bf16.mxu0 %v1334
          %3064 = vmatmul.mubr.bf16.gmra.mrb[0].mxu0 %v1333
          %v3065 = vpop.f32.mrb[0].mxu0
          %v3066 = vadd.f32 %v1313, %v3065
          %v3067 = vpop.f32.mrb[0].mxu0
          %v3068 = vadd.f32 %v1317, %v3067
          %v3069 = vpop.f32.mrb[0].mxu0
          %v3070 = vpop.f32.mrb[0].mxu0
          %3071 = vdwg.mxu0
          %3072 = vmatprep.subr.bf16.mxu0 %v2310
          %3073 = vmatpush1.bf16.msra.mxu0 %v2309
          %3074 = vmatprep.subr.bf16.mxu0 %v2316
          %3075 = vmatpush1.bf16.msra.mxu0 %v2315
          %3076 = vmatprep.subr.bf16.mxu0 %v2322
          %3077 = vmatpush1.bf16.msra.mxu0 %v2321
          %3078 = vmatprep.subr.bf16.mxu0 %v2328
          %3079 = vmatpush1.bf16.msra.mxu0 %v2327
          %3080 = vmatprep.subr.bf16.mxu0 %v2334
          %3081 = vmatpush1.bf16.msra.mxu0 %v2333
          %3082 = vmatprep.subr.bf16.mxu0 %v2340
          %3083 = vmatpush1.bf16.msra.mxu0 %v2339
          %3084 = vmatprep.subr.bf16.mxu0 %v2346
          %3085 = vmatpush1.bf16.msra.mxu0 %v2345
          %3086 = vmatprep.subr.bf16.mxu0 %v2352
          %3087 = vmatpush1.bf16.msra.mxu0 %v2351
          %3088 = vmatprep.subr.bf16.mxu0 %v2358
          %3089 = vmatpush1.bf16.msra.mxu0 %v2357
          %3090 = vmatprep.subr.bf16.mxu0 %v2364
          %3091 = vmatpush1.bf16.msra.mxu0 %v2363
          %3092 = vmatprep.subr.bf16.mxu0 %v2370
          %3093 = vmatpush1.bf16.msra.mxu0 %v2369
          %3094 = vmatprep.subr.bf16.mxu0 %v2376
          %3095 = vmatpush1.bf16.msra.mxu0 %v2375
          %3096 = vmatprep.subr.bf16.mxu0 %v2382
          %3097 = vmatpush1.bf16.msra.mxu0 %v2381
          %3098 = vmatprep.subr.bf16.mxu0 %v2388
          %3099 = vmatpush1.bf16.msra.mxu0 %v2387
          %3100 = vmatprep.subr.bf16.mxu0 %v2394
          %3101 = vmatpush1.bf16.msra.mxu0 %v2393
          %3102 = vmatprep.subr.bf16.mxu0 %v2400
          %3103 = vmatpush1.bf16.msra.mxu0 %v2399
          %3104 = vmatprep.mubr.bf16.mxu0 %v1336
          %3105 = vmatmul.mubr.bf16.gmra.mrb[0].mxu0 %v1335
          %v3106 = vpop.f32.mrb[0].mxu0
          %v3107 = vadd.f32 %v3066, %v3106
          %v3108 = vpop.f32.mrb[0].mxu0
          %v3109 = vadd.f32 %v3068, %v3108
          %v3110 = vpop.f32.mrb[0].mxu0
          %v3111 = vpop.f32.mrb[0].mxu0
          %3112 = vdwg.mxu0
          %3113 = vmatprep.subr.bf16.mxu0 %v2406
          %3114 = vmatpush1.bf16.msra.mxu0 %v2405
          %3115 = vmatprep.subr.bf16.mxu0 %v2412
          %3116 = vmatpush1.bf16.msra.mxu0 %v2411
          %3117 = vmatprep.subr.bf16.mxu0 %v2418
          %3118 = vmatpush1.bf16.msra.mxu0 %v2417
          %3119 = vmatprep.subr.bf16.mxu0 %v2424
          %3120 = vmatpush1.bf16.msra.mxu0 %v2423
          %3121 = vmatprep.subr.bf16.mxu0 %v2430
          %3122 = vmatpush1.bf16.msra.mxu0 %v2429
          %3123 = vmatprep.subr.bf16.mxu0 %v2436
          %3124 = vmatpush1.bf16.msra.mxu0 %v2435
          %3125 = vmatprep.subr.bf16.mxu0 %v2442
          %3126 = vmatpush1.bf16.msra.mxu0 %v2441
          %3127 = vmatprep.subr.bf16.mxu0 %v2448
          %3128 = vmatpush1.bf16.msra.mxu0 %v2447
          %3129 = vmatprep.subr.bf16.mxu0 %v2454
          %3130 = vmatpush1.bf16.msra.mxu0 %v2453
          %3131 = vmatprep.subr.bf16.mxu0 %v2460
          %3132 = vmatpush1.bf16.msra.mxu0 %v2459
          %3133 = vmatprep.subr.bf16.mxu0 %v2466
          %3134 = vmatpush1.bf16.msra.mxu0 %v2465
          %3135 = vmatprep.subr.bf16.mxu0 %v2472
          %3136 = vmatpush1.bf16.msra.mxu0 %v2471
          %3137 = vmatprep.subr.bf16.mxu0 %v2478
          %3138 = vmatpush1.bf16.msra.mxu0 %v2477
          %3139 = vmatprep.subr.bf16.mxu0 %v2484
          %3140 = vmatpush1.bf16.msra.mxu0 %v2483
          %3141 = vmatprep.subr.bf16.mxu0 %v2490
          %3142 = vmatpush1.bf16.msra.mxu0 %v2489
          %3143 = vmatprep.subr.bf16.mxu0 %v2496
          %3144 = vmatpush1.bf16.msra.mxu0 %v2495
          %3145 = vmatprep.mubr.bf16.mxu0 %v1338
          %3146 = vmatmul.mubr.bf16.gmra.mrb[0].mxu0 %v1337
          %v3147 = vpop.f32.mrb[0].mxu0
          %v3148 = vadd.f32 %v3107, %v3147
          %v3149 = vpop.f32.mrb[0].mxu0
          %v3150 = vadd.f32 %v3109, %v3149
          %v3151 = vpop.f32.mrb[0].mxu0
          %v3152 = vpop.f32.mrb[0].mxu0
          %3153 = vdwg.mxu0
          %v3154 = vtanh.pop %v2902
          %v3155 = vtanh.pop %v2904
          %v3156 = vtanh.pop %v3025
          %v3157 = vtanh.pop %v3027
          %v3158 = vtanh.pop %v3148
          %v3159 = vtanh.pop %v3150
          %v3160 = vld [vmem:[#allocation2] sm:$0xff]
          %v3161 = vld [vmem:[#allocation2 + $0x8] sm:$0xff]
          %v3162 = vld [vmem:[#allocation2 + $0x10] sm:$0xff]
          %v3163 = vld [vmem:[#allocation2 + $0x18] sm:$0xff]
          %v3164 = vpack.c.bf16 %v3154, %v3154
          %v3165 = vpack.c.bf16 %v3155, %v3155
          %v3166 = vpack.c.bf16 %v3156, %v3156
          %v3167 = vpack.c.bf16 %v3157, %v3157
          %v3168 = vpack.c.bf16 %v3158, %v3158
          %v3169 = vpack.c.bf16 %v3159, %v3159
          %v3170 = vld [vmem:[#allocation12] sm:$0xff]
          %v3171 = vld [vmem:[#allocation12 + $0x8] sm:$0xff]
          %v3172 = vld [vmem:[#allocation12 + $0x10] sm:$0xff]
          %v3173 = vld [vmem:[#allocation12 + $0x18] sm:$0xff]
          %v3174 = vld [vmem:[#allocation12 + $0x20] sm:$0xff]
          %v3175 = vld [vmem:[#allocation12 + $0x28] sm:$0xff]
          %v3176 = vld [vmem:[#allocation12 + $0x30] sm:$0xff]
          %v3177 = vld [vmem:[#allocation12 + $0x38] sm:$0xff]
          %v3178 = vld [vmem:[#allocation12 + $0x40] sm:$0xff]
          %v3179 = vld [vmem:[#allocation12 + $0x48] sm:$0xff]
          %v3180 = vld [vmem:[#allocation12 + $0x50] sm:$0xff]
          %v3181 = vld [vmem:[#allocation12 + $0x58] sm:$0xff]
          %v3182 = vld [vmem:[#allocation12 + $0x60] sm:$0xff]
          %v3183 = vld [vmem:[#allocation12 + $0x68] sm:$0xff]
          %v3184 = vld [vmem:[#allocation12 + $0x70] sm:$0xff]
          %v3185 = vld [vmem:[#allocation12 + $0x78] sm:$0xff]
          %v3186 = vld [vmem:[#allocation12 + $0x80] sm:$0xff]
          %v3187 = vld [vmem:[#allocation12 + $0x88] sm:$0xff]
          %v3188 = vld [vmem:[#allocation12 + $0x90] sm:$0xff]
          %v3189 = vld [vmem:[#allocation12 + $0x98] sm:$0xff]
          %v3190 = vld [vmem:[#allocation12 + $0xa0] sm:$0xff]
          %v3191 = vld [vmem:[#allocation12 + $0xa8] sm:$0xff]
          %v3192 = vld [vmem:[#allocation12 + $0xb0] sm:$0xff]
          %v3193 = vld [vmem:[#allocation12 + $0xb8] sm:$0xff]
          %v3194 = vld [vmem:[#allocation12 + $0xc0] sm:$0xff]
          %v3195 = vld [vmem:[#allocation12 + $0xc8] sm:$0xff]
          %v3196 = vld [vmem:[#allocation12 + $0xd0] sm:$0xff]
          %v3197 = vld [vmem:[#allocation12 + $0xd8] sm:$0xff]
          %v3198 = vld [vmem:[#allocation12 + $0xe0] sm:$0xff]
          %v3199 = vld [vmem:[#allocation12 + $0xe8] sm:$0xff]
          %v3200 = vld [vmem:[#allocation12 + $0xf0] sm:$0xff]
          %v3201 = vld [vmem:[#allocation12 + $0xf8] sm:$0xff]
          %v3202 = vld [vmem:[#allocation12 + $0x100] sm:$0xff]
          %v3203 = vld [vmem:[#allocation12 + $0x108] sm:$0xff]
          %v3204 = vld [vmem:[#allocation12 + $0x110] sm:$0xff]
          %v3205 = vld [vmem:[#allocation12 + $0x118] sm:$0xff]
          %v3206 = vld [vmem:[#allocation12 + $0x120] sm:$0xff]
          %v3207 = vld [vmem:[#allocation12 + $0x128] sm:$0xff]
          %v3208 = vld [vmem:[#allocation12 + $0x130] sm:$0xff]
          %v3209 = vld [vmem:[#allocation12 + $0x138] sm:$0xff]
          %v3210 = vld [vmem:[#allocation12 + $0x140] sm:$0xff]
          %v3211 = vld [vmem:[#allocation12 + $0x148] sm:$0xff]
          %v3212 = vld [vmem:[#allocation12 + $0x150] sm:$0xff]
          %v3213 = vld [vmem:[#allocation12 + $0x158] sm:$0xff]
          %v3214 = vld [vmem:[#allocation12 + $0x160] sm:$0xff]
          %v3215 = vld [vmem:[#allocation12 + $0x168] sm:$0xff]
          %v3216 = vld [vmem:[#allocation12 + $0x170] sm:$0xff]
          %v3217 = vld [vmem:[#allocation12 + $0x178] sm:$0xff]
          %v3218 = vld [vmem:[#allocation12 + $0x180] sm:$0xff]
          %v3219 = vld [vmem:[#allocation12 + $0x188] sm:$0xff]
          %v3220 = vld [vmem:[#allocation12 + $0x190] sm:$0xff]
          %v3221 = vld [vmem:[#allocation12 + $0x198] sm:$0xff]
          %v3222 = vld [vmem:[#allocation12 + $0x1a0] sm:$0xff]
          %v3223 = vld [vmem:[#allocation12 + $0x1a8] sm:$0xff]
          %v3224 = vld [vmem:[#allocation12 + $0x1b0] sm:$0xff]
          %v3225 = vld [vmem:[#allocation12 + $0x1b8] sm:$0xff]
          %v3226 = vld [vmem:[#allocation12 + $0x1c0] sm:$0xff]
          %v3227 = vld [vmem:[#allocation12 + $0x1c8] sm:$0xff]
          %v3228 = vld [vmem:[#allocation12 + $0x1d0] sm:$0xff]
          %v3229 = vld [vmem:[#allocation12 + $0x1d8] sm:$0xff]
          %v3230 = vld [vmem:[#allocation12 + $0x1e0] sm:$0xff]
          %v3231 = vld [vmem:[#allocation12 + $0x1e8] sm:$0xff]
          %v3232 = vld [vmem:[#allocation12 + $0x1f0] sm:$0xff]
          %v3233 = vld [vmem:[#allocation12 + $0x1f8] sm:$0xff]
          %v3234 = vld [vmem:[#allocation12 + $0x200] sm:$0xff]
          %v3235 = vld [vmem:[#allocation12 + $0x208] sm:$0xff]
          %v3236 = vld [vmem:[#allocation12 + $0x210] sm:$0xff]
          %v3237 = vld [vmem:[#allocation12 + $0x218] sm:$0xff]
          %v3238 = vld [vmem:[#allocation12 + $0x220] sm:$0xff]
          %v3239 = vld [vmem:[#allocation12 + $0x228] sm:$0xff]
          %v3240 = vld [vmem:[#allocation12 + $0x230] sm:$0xff]
          %v3241 = vld [vmem:[#allocation12 + $0x238] sm:$0xff]
          %v3242 = vld [vmem:[#allocation12 + $0x240] sm:$0xff]
          %v3243 = vld [vmem:[#allocation12 + $0x248] sm:$0xff]
          %v3244 = vld [vmem:[#allocation12 + $0x250] sm:$0xff]
          %v3245 = vld [vmem:[#allocation12 + $0x258] sm:$0xff]
          %v3246 = vld [vmem:[#allocation12 + $0x260] sm:$0xff]
          %v3247 = vld [vmem:[#allocation12 + $0x268] sm:$0xff]
          %v3248 = vld [vmem:[#allocation12 + $0x270] sm:$0xff]
          %v3249 = vld [vmem:[#allocation12 + $0x278] sm:$0xff]
          %v3250 = vld [vmem:[#allocation12 + $0x280] sm:$0xff]
          %v3251 = vld [vmem:[#allocation12 + $0x288] sm:$0xff]
          %v3252 = vld [vmem:[#allocation12 + $0x290] sm:$0xff]
          %v3253 = vld [vmem:[#allocation12 + $0x298] sm:$0xff]
          %v3254 = vld [vmem:[#allocation12 + $0x2a0] sm:$0xff]
          %v3255 = vld [vmem:[#allocation12 + $0x2a8] sm:$0xff]
          %v3256 = vld [vmem:[#allocation12 + $0x2b0] sm:$0xff]
          %v3257 = vld [vmem:[#allocation12 + $0x2b8] sm:$0xff]
          %v3258 = vld [vmem:[#allocation12 + $0x2c0] sm:$0xff]
          %v3259 = vld [vmem:[#allocation12 + $0x2c8] sm:$0xff]
          %v3260 = vld [vmem:[#allocation12 + $0x2d0] sm:$0xff]
          %v3261 = vld [vmem:[#allocation12 + $0x2d8] sm:$0xff]
          %v3262 = vld [vmem:[#allocation12 + $0x2e0] sm:$0xff]
          %v3263 = vld [vmem:[#allocation12 + $0x2e8] sm:$0xff]
          %v3264 = vld [vmem:[#allocation12 + $0x2f0] sm:$0xff]
          %v3265 = vld [vmem:[#allocation12 + $0x2f8] sm:$0xff]
          %v3266 = vld [vmem:[#allocation12 + $0x300] sm:$0xff]
          %v3267 = vld [vmem:[#allocation12 + $0x308] sm:$0xff]
          %v3268 = vld [vmem:[#allocation12 + $0x310] sm:$0xff]
          %v3269 = vld [vmem:[#allocation12 + $0x318] sm:$0xff]
          %v3270 = vld [vmem:[#allocation12 + $0x320] sm:$0xff]
          %v3271 = vld [vmem:[#allocation12 + $0x328] sm:$0xff]
          %v3272 = vld [vmem:[#allocation12 + $0x330] sm:$0xff]
          %v3273 = vld [vmem:[#allocation12 + $0x338] sm:$0xff]
          %v3274 = vld [vmem:[#allocation12 + $0x340] sm:$0xff]
          %v3275 = vld [vmem:[#allocation12 + $0x348] sm:$0xff]
          %v3276 = vld [vmem:[#allocation12 + $0x350] sm:$0xff]
          %v3277 = vld [vmem:[#allocation12 + $0x358] sm:$0xff]
          %v3278 = vld [vmem:[#allocation12 + $0x360] sm:$0xff]
          %v3279 = vld [vmem:[#allocation12 + $0x368] sm:$0xff]
          %v3280 = vld [vmem:[#allocation12 + $0x370] sm:$0xff]
          %v3281 = vld [vmem:[#allocation12 + $0x378] sm:$0xff]
          %v3282 = vld [vmem:[#allocation12 + $0x380] sm:$0xff]
          %v3283 = vld [vmem:[#allocation12 + $0x388] sm:$0xff]
          %v3284 = vld [vmem:[#allocation12 + $0x390] sm:$0xff]
          %v3285 = vld [vmem:[#allocation12 + $0x398] sm:$0xff]
          %v3286 = vld [vmem:[#allocation12 + $0x3a0] sm:$0xff]
          %v3287 = vld [vmem:[#allocation12 + $0x3a8] sm:$0xff]
          %v3288 = vld [vmem:[#allocation12 + $0x3b0] sm:$0xff]
          %v3289 = vld [vmem:[#allocation12 + $0x3b8] sm:$0xff]
          %v3290 = vld [vmem:[#allocation12 + $0x3c0] sm:$0xff]
          %v3291 = vld [vmem:[#allocation12 + $0x3c8] sm:$0xff]
          %v3292 = vld [vmem:[#allocation12 + $0x3d0] sm:$0xff]
          %v3293 = vld [vmem:[#allocation12 + $0x3d8] sm:$0xff]
          %v3294 = vld [vmem:[#allocation12 + $0x3e0] sm:$0xff]
          %v3295 = vld [vmem:[#allocation12 + $0x3e8] sm:$0xff]
          %v3296 = vld [vmem:[#allocation12 + $0x3f0] sm:$0xff]
          %v3297 = vld [vmem:[#allocation12 + $0x3f8] sm:$0xff]
          %v3298 = vld [vmem:[#allocation12 + $0x400] sm:$0xff]
          %v3299 = vld [vmem:[#allocation12 + $0x408] sm:$0xff]
          %v3300 = vld [vmem:[#allocation12 + $0x410] sm:$0xff]
          %v3301 = vld [vmem:[#allocation12 + $0x418] sm:$0xff]
          %v3302 = vld [vmem:[#allocation12 + $0x420] sm:$0xff]
          %v3303 = vld [vmem:[#allocation12 + $0x428] sm:$0xff]
          %v3304 = vld [vmem:[#allocation12 + $0x430] sm:$0xff]
          %v3305 = vld [vmem:[#allocation12 + $0x438] sm:$0xff]
          %v3306 = vld [vmem:[#allocation12 + $0x440] sm:$0xff]
          %v3307 = vld [vmem:[#allocation12 + $0x448] sm:$0xff]
          %v3308 = vld [vmem:[#allocation12 + $0x450] sm:$0xff]
          %v3309 = vld [vmem:[#allocation12 + $0x458] sm:$0xff]
          %v3310 = vld [vmem:[#allocation12 + $0x460] sm:$0xff]
          %v3311 = vld [vmem:[#allocation12 + $0x468] sm:$0xff]
          %v3312 = vld [vmem:[#allocation12 + $0x470] sm:$0xff]
          %v3313 = vld [vmem:[#allocation12 + $0x478] sm:$0xff]
          %v3314 = vld [vmem:[#allocation12 + $0x480] sm:$0xff]
          %v3315 = vld [vmem:[#allocation12 + $0x488] sm:$0xff]
          %v3316 = vld [vmem:[#allocation12 + $0x490] sm:$0xff]
          %v3317 = vld [vmem:[#allocation12 + $0x498] sm:$0xff]
          %v3318 = vld [vmem:[#allocation12 + $0x4a0] sm:$0xff]
          %v3319 = vld [vmem:[#allocation12 + $0x4a8] sm:$0xff]
          %v3320 = vld [vmem:[#allocation12 + $0x4b0] sm:$0xff]
          %v3321 = vld [vmem:[#allocation12 + $0x4b8] sm:$0xff]
          %v3322 = vld [vmem:[#allocation12 + $0x4c0] sm:$0xff]
          %v3323 = vld [vmem:[#allocation12 + $0x4c8] sm:$0xff]
          %v3324 = vld [vmem:[#allocation12 + $0x4d0] sm:$0xff]
          %v3325 = vld [vmem:[#allocation12 + $0x4d8] sm:$0xff]
          %v3326 = vld [vmem:[#allocation12 + $0x4e0] sm:$0xff]
          %v3327 = vld [vmem:[#allocation12 + $0x4e8] sm:$0xff]
          %v3328 = vld [vmem:[#allocation12 + $0x4f0] sm:$0xff]
          %v3329 = vld [vmem:[#allocation12 + $0x4f8] sm:$0xff]
          %v3330 = vld [vmem:[#allocation12 + $0x500] sm:$0xff]
          %v3331 = vld [vmem:[#allocation12 + $0x508] sm:$0xff]
          %v3332 = vld [vmem:[#allocation12 + $0x510] sm:$0xff]
          %v3333 = vld [vmem:[#allocation12 + $0x518] sm:$0xff]
          %v3334 = vld [vmem:[#allocation12 + $0x520] sm:$0xff]
          %v3335 = vld [vmem:[#allocation12 + $0x528] sm:$0xff]
          %v3336 = vld [vmem:[#allocation12 + $0x530] sm:$0xff]
          %v3337 = vld [vmem:[#allocation12 + $0x538] sm:$0xff]
          %v3338 = vld [vmem:[#allocation12 + $0x540] sm:$0xff]
          %v3339 = vld [vmem:[#allocation12 + $0x548] sm:$0xff]
          %v3340 = vld [vmem:[#allocation12 + $0x550] sm:$0xff]
          %v3341 = vld [vmem:[#allocation12 + $0x558] sm:$0xff]
          %v3342 = vld [vmem:[#allocation12 + $0x560] sm:$0xff]
          %v3343 = vld [vmem:[#allocation12 + $0x568] sm:$0xff]
          %v3344 = vld [vmem:[#allocation12 + $0x570] sm:$0xff]
          %v3345 = vld [vmem:[#allocation12 + $0x578] sm:$0xff]
          %v3346 = vld [vmem:[#allocation12 + $0x580] sm:$0xff]
          %v3347 = vld [vmem:[#allocation12 + $0x588] sm:$0xff]
          %v3348 = vld [vmem:[#allocation12 + $0x590] sm:$0xff]
          %v3349 = vld [vmem:[#allocation12 + $0x598] sm:$0xff]
          %v3350 = vld [vmem:[#allocation12 + $0x5a0] sm:$0xff]
          %v3351 = vld [vmem:[#allocation12 + $0x5a8] sm:$0xff]
          %v3352 = vld [vmem:[#allocation12 + $0x5b0] sm:$0xff]
          %v3353 = vld [vmem:[#allocation12 + $0x5b8] sm:$0xff]
          %v3354 = vld [vmem:[#allocation12 + $0x5c0] sm:$0xff]
          %v3355 = vld [vmem:[#allocation12 + $0x5c8] sm:$0xff]
          %v3356 = vld [vmem:[#allocation12 + $0x5d0] sm:$0xff]
          %v3357 = vld [vmem:[#allocation12 + $0x5d8] sm:$0xff]
          %v3358 = vld [vmem:[#allocation12 + $0x5e0] sm:$0xff]
          %v3359 = vld [vmem:[#allocation12 + $0x5e8] sm:$0xff]
          %v3360 = vld [vmem:[#allocation12 + $0x5f0] sm:$0xff]
          %v3361 = vld [vmem:[#allocation12 + $0x5f8] sm:$0xff]
          %v3554 = vunpack.c.l.b16 %v3170
          %v3555 = vunpack.c.h.b16 %v3170
          %v3556 = vunpack.c.l.b16 %v3171
          %v3557 = vunpack.c.h.b16 %v3171
          %v3558 = vunpack.c.l.b16 %v3172
          %v3559 = vunpack.c.h.b16 %v3172
          %v3560 = vunpack.c.l.b16 %v3173
          %v3561 = vunpack.c.h.b16 %v3173
          %v3562 = vunpack.c.l.b16 %v3174
          %v3563 = vunpack.c.h.b16 %v3174
          %v3564 = vunpack.c.l.b16 %v3175
          %v3565 = vunpack.c.h.b16 %v3175
          %v3566 = vunpack.c.l.b16 %v3176
          %v3567 = vunpack.c.h.b16 %v3176
          %v3568 = vunpack.c.l.b16 %v3177
          %v3569 = vunpack.c.h.b16 %v3177
          %v3570 = vunpack.c.l.b16 %v3178
          %v3571 = vunpack.c.h.b16 %v3178
          %v3572 = vunpack.c.l.b16 %v3179
          %v3573 = vunpack.c.h.b16 %v3179
          %v3574 = vunpack.c.l.b16 %v3180
          %v3575 = vunpack.c.h.b16 %v3180
          %v3576 = vunpack.c.l.b16 %v3181
          %v3577 = vunpack.c.h.b16 %v3181
          %v3578 = vunpack.c.l.b16 %v3182
          %v3579 = vunpack.c.h.b16 %v3182
          %v3580 = vunpack.c.l.b16 %v3183
          %v3581 = vunpack.c.h.b16 %v3183
          %v3582 = vunpack.c.l.b16 %v3184
          %v3583 = vunpack.c.h.b16 %v3184
          %v3584 = vunpack.c.l.b16 %v3185
          %v3585 = vunpack.c.h.b16 %v3185
          %v3586 = vunpack.c.l.b16 %v3186
          %v3587 = vunpack.c.h.b16 %v3186
          %v3588 = vunpack.c.l.b16 %v3187
          %v3589 = vunpack.c.h.b16 %v3187
          %v3590 = vunpack.c.l.b16 %v3188
          %v3591 = vunpack.c.h.b16 %v3188
          %v3592 = vunpack.c.l.b16 %v3189
          %v3593 = vunpack.c.h.b16 %v3189
          %v3594 = vunpack.c.l.b16 %v3190
          %v3595 = vunpack.c.h.b16 %v3190
          %v3596 = vunpack.c.l.b16 %v3191
          %v3597 = vunpack.c.h.b16 %v3191
          %v3598 = vunpack.c.l.b16 %v3192
          %v3599 = vunpack.c.h.b16 %v3192
          %v3600 = vunpack.c.l.b16 %v3193
          %v3601 = vunpack.c.h.b16 %v3193
          %v3602 = vunpack.c.l.b16 %v3194
          %v3603 = vunpack.c.h.b16 %v3194
          %v3604 = vunpack.c.l.b16 %v3195
          %v3605 = vunpack.c.h.b16 %v3195
          %v3606 = vunpack.c.l.b16 %v3196
          %v3607 = vunpack.c.h.b16 %v3196
          %v3608 = vunpack.c.l.b16 %v3197
          %v3609 = vunpack.c.h.b16 %v3197
          %v3610 = vunpack.c.l.b16 %v3198
          %v3611 = vunpack.c.h.b16 %v3198
          %v3612 = vunpack.c.l.b16 %v3199
          %v3613 = vunpack.c.h.b16 %v3199
          %v3614 = vunpack.c.l.b16 %v3200
          %v3615 = vunpack.c.h.b16 %v3200
          %v3616 = vunpack.c.l.b16 %v3201
          %v3617 = vunpack.c.h.b16 %v3201
          %v3618 = vunpack.c.l.b16 %v3202
          %v3619 = vunpack.c.h.b16 %v3202
          %v3620 = vunpack.c.l.b16 %v3203
          %v3621 = vunpack.c.h.b16 %v3203
          %v3622 = vunpack.c.l.b16 %v3204
          %v3623 = vunpack.c.h.b16 %v3204
          %v3624 = vunpack.c.l.b16 %v3205
          %v3625 = vunpack.c.h.b16 %v3205
          %v3626 = vunpack.c.l.b16 %v3206
          %v3627 = vunpack.c.h.b16 %v3206
          %v3628 = vunpack.c.l.b16 %v3207
          %v3629 = vunpack.c.h.b16 %v3207
          %v3630 = vunpack.c.l.b16 %v3208
          %v3631 = vunpack.c.h.b16 %v3208
          %v3632 = vunpack.c.l.b16 %v3209
          %v3633 = vunpack.c.h.b16 %v3209
          %v3634 = vunpack.c.l.b16 %v3210
          %v3635 = vunpack.c.h.b16 %v3210
          %v3636 = vunpack.c.l.b16 %v3211
          %v3637 = vunpack.c.h.b16 %v3211
          %v3638 = vunpack.c.l.b16 %v3212
          %v3639 = vunpack.c.h.b16 %v3212
          %v3640 = vunpack.c.l.b16 %v3213
          %v3641 = vunpack.c.h.b16 %v3213
          %v3642 = vunpack.c.l.b16 %v3214
          %v3643 = vunpack.c.h.b16 %v3214
          %v3644 = vunpack.c.l.b16 %v3215
          %v3645 = vunpack.c.h.b16 %v3215
          %v3646 = vunpack.c.l.b16 %v3216
          %v3647 = vunpack.c.h.b16 %v3216
          %v3648 = vunpack.c.l.b16 %v3217
          %v3649 = vunpack.c.h.b16 %v3217
          %v3650 = vunpack.c.l.b16 %v3218
          %v3651 = vunpack.c.h.b16 %v3218
          %v3652 = vunpack.c.l.b16 %v3219
          %v3653 = vunpack.c.h.b16 %v3219
          %v3654 = vunpack.c.l.b16 %v3220
          %v3655 = vunpack.c.h.b16 %v3220
          %v3656 = vunpack.c.l.b16 %v3221
          %v3657 = vunpack.c.h.b16 %v3221
          %v3658 = vunpack.c.l.b16 %v3222
          %v3659 = vunpack.c.h.b16 %v3222
          %v3660 = vunpack.c.l.b16 %v3223
          %v3661 = vunpack.c.h.b16 %v3223
          %v3662 = vunpack.c.l.b16 %v3224
          %v3663 = vunpack.c.h.b16 %v3224
          %v3664 = vunpack.c.l.b16 %v3225
          %v3665 = vunpack.c.h.b16 %v3225
          %v3666 = vunpack.c.l.b16 %v3226
          %v3667 = vunpack.c.h.b16 %v3226
          %v3668 = vunpack.c.l.b16 %v3227
          %v3669 = vunpack.c.h.b16 %v3227
          %v3670 = vunpack.c.l.b16 %v3228
          %v3671 = vunpack.c.h.b16 %v3228
          %v3672 = vunpack.c.l.b16 %v3229
          %v3673 = vunpack.c.h.b16 %v3229
          %v3674 = vunpack.c.l.b16 %v3230
          %v3675 = vunpack.c.h.b16 %v3230
          %v3676 = vunpack.c.l.b16 %v3231
          %v3677 = vunpack.c.h.b16 %v3231
          %v3678 = vunpack.c.l.b16 %v3232
          %v3679 = vunpack.c.h.b16 %v3232
          %v3680 = vunpack.c.l.b16 %v3233
          %v3681 = vunpack.c.h.b16 %v3233
          %v3682 = vunpack.c.l.b16 %v3234
          %v3683 = vunpack.c.h.b16 %v3234
          %v3684 = vunpack.c.l.b16 %v3235
          %v3685 = vunpack.c.h.b16 %v3235
          %v3686 = vunpack.c.l.b16 %v3236
          %v3687 = vunpack.c.h.b16 %v3236
          %v3688 = vunpack.c.l.b16 %v3237
          %v3689 = vunpack.c.h.b16 %v3237
          %v3690 = vunpack.c.l.b16 %v3238
          %v3691 = vunpack.c.h.b16 %v3238
          %v3692 = vunpack.c.l.b16 %v3239
          %v3693 = vunpack.c.h.b16 %v3239
          %v3694 = vunpack.c.l.b16 %v3240
          %v3695 = vunpack.c.h.b16 %v3240
          %v3696 = vunpack.c.l.b16 %v3241
          %v3697 = vunpack.c.h.b16 %v3241
          %v3698 = vunpack.c.l.b16 %v3242
          %v3699 = vunpack.c.h.b16 %v3242
          %v3700 = vunpack.c.l.b16 %v3243
          %v3701 = vunpack.c.h.b16 %v3243
          %v3702 = vunpack.c.l.b16 %v3244
          %v3703 = vunpack.c.h.b16 %v3244
          %v3704 = vunpack.c.l.b16 %v3245
          %v3705 = vunpack.c.h.b16 %v3245
          %v3706 = vunpack.c.l.b16 %v3246
          %v3707 = vunpack.c.h.b16 %v3246
          %v3708 = vunpack.c.l.b16 %v3247
          %v3709 = vunpack.c.h.b16 %v3247
          %v3710 = vunpack.c.l.b16 %v3248
          %v3711 = vunpack.c.h.b16 %v3248
          %v3712 = vunpack.c.l.b16 %v3249
          %v3713 = vunpack.c.h.b16 %v3249
          %v3714 = vunpack.c.l.b16 %v3250
          %v3715 = vunpack.c.h.b16 %v3250
          %v3716 = vunpack.c.l.b16 %v3251
          %v3717 = vunpack.c.h.b16 %v3251
          %v3718 = vunpack.c.l.b16 %v3252
          %v3719 = vunpack.c.h.b16 %v3252
          %v3720 = vunpack.c.l.b16 %v3253
          %v3721 = vunpack.c.h.b16 %v3253
          %v3722 = vunpack.c.l.b16 %v3254
          %v3723 = vunpack.c.h.b16 %v3254
          %v3724 = vunpack.c.l.b16 %v3255
          %v3725 = vunpack.c.h.b16 %v3255
          %v3726 = vunpack.c.l.b16 %v3256
          %v3727 = vunpack.c.h.b16 %v3256
          %v3728 = vunpack.c.l.b16 %v3257
          %v3729 = vunpack.c.h.b16 %v3257
          %v3730 = vunpack.c.l.b16 %v3258
          %v3731 = vunpack.c.h.b16 %v3258
          %v3732 = vunpack.c.l.b16 %v3259
          %v3733 = vunpack.c.h.b16 %v3259
          %v3734 = vunpack.c.l.b16 %v3260
          %v3735 = vunpack.c.h.b16 %v3260
          %v3736 = vunpack.c.l.b16 %v3261
          %v3737 = vunpack.c.h.b16 %v3261
          %v3738 = vunpack.c.l.b16 %v3262
          %v3739 = vunpack.c.h.b16 %v3262
          %v3740 = vunpack.c.l.b16 %v3263
          %v3741 = vunpack.c.h.b16 %v3263
          %v3742 = vunpack.c.l.b16 %v3264
          %v3743 = vunpack.c.h.b16 %v3264
          %v3744 = vunpack.c.l.b16 %v3265
          %v3745 = vunpack.c.h.b16 %v3265
          %v3746 = vunpack.c.l.b16 %v3266
          %v3747 = vunpack.c.h.b16 %v3266
          %v3748 = vunpack.c.l.b16 %v3267
          %v3749 = vunpack.c.h.b16 %v3267
          %v3750 = vunpack.c.l.b16 %v3268
          %v3751 = vunpack.c.h.b16 %v3268
          %v3752 = vunpack.c.l.b16 %v3269
          %v3753 = vunpack.c.h.b16 %v3269
          %v3754 = vunpack.c.l.b16 %v3270
          %v3755 = vunpack.c.h.b16 %v3270
          %v3756 = vunpack.c.l.b16 %v3271
          %v3757 = vunpack.c.h.b16 %v3271
          %v3758 = vunpack.c.l.b16 %v3272
          %v3759 = vunpack.c.h.b16 %v3272
          %v3760 = vunpack.c.l.b16 %v3273
          %v3761 = vunpack.c.h.b16 %v3273
          %v3762 = vunpack.c.l.b16 %v3274
          %v3763 = vunpack.c.h.b16 %v3274
          %v3764 = vunpack.c.l.b16 %v3275
          %v3765 = vunpack.c.h.b16 %v3275
          %v3766 = vunpack.c.l.b16 %v3276
          %v3767 = vunpack.c.h.b16 %v3276
          %v3768 = vunpack.c.l.b16 %v3277
          %v3769 = vunpack.c.h.b16 %v3277
          %v3770 = vunpack.c.l.b16 %v3278
          %v3771 = vunpack.c.h.b16 %v3278
          %v3772 = vunpack.c.l.b16 %v3279
          %v3773 = vunpack.c.h.b16 %v3279
          %v3774 = vunpack.c.l.b16 %v3280
          %v3775 = vunpack.c.h.b16 %v3280
          %v3776 = vunpack.c.l.b16 %v3281
          %v3777 = vunpack.c.h.b16 %v3281
          %v3778 = vunpack.c.l.b16 %v3282
          %v3779 = vunpack.c.h.b16 %v3282
          %v3780 = vunpack.c.l.b16 %v3283
          %v3781 = vunpack.c.h.b16 %v3283
          %v3782 = vunpack.c.l.b16 %v3284
          %v3783 = vunpack.c.h.b16 %v3284
          %v3784 = vunpack.c.l.b16 %v3285
          %v3785 = vunpack.c.h.b16 %v3285
          %v3786 = vunpack.c.l.b16 %v3286
          %v3787 = vunpack.c.h.b16 %v3286
          %v3788 = vunpack.c.l.b16 %v3287
          %v3789 = vunpack.c.h.b16 %v3287
          %v3790 = vunpack.c.l.b16 %v3288
          %v3791 = vunpack.c.h.b16 %v3288
          %v3792 = vunpack.c.l.b16 %v3289
          %v3793 = vunpack.c.h.b16 %v3289
          %v3794 = vunpack.c.l.b16 %v3290
          %v3795 = vunpack.c.h.b16 %v3290
          %v3796 = vunpack.c.l.b16 %v3291
          %v3797 = vunpack.c.h.b16 %v3291
          %v3798 = vunpack.c.l.b16 %v3292
          %v3799 = vunpack.c.h.b16 %v3292
          %v3800 = vunpack.c.l.b16 %v3293
          %v3801 = vunpack.c.h.b16 %v3293
          %v3802 = vunpack.c.l.b16 %v3294
          %v3803 = vunpack.c.h.b16 %v3294
          %v3804 = vunpack.c.l.b16 %v3295
          %v3805 = vunpack.c.h.b16 %v3295
          %v3806 = vunpack.c.l.b16 %v3296
          %v3807 = vunpack.c.h.b16 %v3296
          %v3808 = vunpack.c.l.b16 %v3297
          %v3809 = vunpack.c.h.b16 %v3297
          %v3810 = vunpack.c.l.b16 %v3298
          %v3811 = vunpack.c.h.b16 %v3298
          %v3812 = vunpack.c.l.b16 %v3299
          %v3813 = vunpack.c.h.b16 %v3299
          %v3814 = vunpack.c.l.b16 %v3300
          %v3815 = vunpack.c.h.b16 %v3300
          %v3816 = vunpack.c.l.b16 %v3301
          %v3817 = vunpack.c.h.b16 %v3301
          %v3818 = vunpack.c.l.b16 %v3302
          %v3819 = vunpack.c.h.b16 %v3302
          %v3820 = vunpack.c.l.b16 %v3303
          %v3821 = vunpack.c.h.b16 %v3303
          %v3822 = vunpack.c.l.b16 %v3304
          %v3823 = vunpack.c.h.b16 %v3304
          %v3824 = vunpack.c.l.b16 %v3305
          %v3825 = vunpack.c.h.b16 %v3305
          %v3826 = vunpack.c.l.b16 %v3306
          %v3827 = vunpack.c.h.b16 %v3306
          %v3828 = vunpack.c.l.b16 %v3307
          %v3829 = vunpack.c.h.b16 %v3307
          %v3830 = vunpack.c.l.b16 %v3308
          %v3831 = vunpack.c.h.b16 %v3308
          %v3832 = vunpack.c.l.b16 %v3309
          %v3833 = vunpack.c.h.b16 %v3309
          %v3834 = vunpack.c.l.b16 %v3310
          %v3835 = vunpack.c.h.b16 %v3310
          %v3836 = vunpack.c.l.b16 %v3311
          %v3837 = vunpack.c.h.b16 %v3311
          %v3838 = vunpack.c.l.b16 %v3312
          %v3839 = vunpack.c.h.b16 %v3312
          %v3840 = vunpack.c.l.b16 %v3313
          %v3841 = vunpack.c.h.b16 %v3313
          %v3842 = vunpack.c.l.b16 %v3314
          %v3843 = vunpack.c.h.b16 %v3314
          %v3844 = vunpack.c.l.b16 %v3315
          %v3845 = vunpack.c.h.b16 %v3315
          %v3846 = vunpack.c.l.b16 %v3316
          %v3847 = vunpack.c.h.b16 %v3316
          %v3848 = vunpack.c.l.b16 %v3317
          %v3849 = vunpack.c.h.b16 %v3317
          %v3850 = vunpack.c.l.b16 %v3318
          %v3851 = vunpack.c.h.b16 %v3318
          %v3852 = vunpack.c.l.b16 %v3319
          %v3853 = vunpack.c.h.b16 %v3319
          %v3854 = vunpack.c.l.b16 %v3320
          %v3855 = vunpack.c.h.b16 %v3320
          %v3856 = vunpack.c.l.b16 %v3321
          %v3857 = vunpack.c.h.b16 %v3321
          %v3858 = vunpack.c.l.b16 %v3322
          %v3859 = vunpack.c.h.b16 %v3322
          %v3860 = vunpack.c.l.b16 %v3323
          %v3861 = vunpack.c.h.b16 %v3323
          %v3862 = vunpack.c.l.b16 %v3324
          %v3863 = vunpack.c.h.b16 %v3324
          %v3864 = vunpack.c.l.b16 %v3325
          %v3865 = vunpack.c.h.b16 %v3325
          %v3866 = vunpack.c.l.b16 %v3326
          %v3867 = vunpack.c.h.b16 %v3326
          %v3868 = vunpack.c.l.b16 %v3327
          %v3869 = vunpack.c.h.b16 %v3327
          %v3870 = vunpack.c.l.b16 %v3328
          %v3871 = vunpack.c.h.b16 %v3328
          %v3872 = vunpack.c.l.b16 %v3329
          %v3873 = vunpack.c.h.b16 %v3329
          %v3874 = vunpack.c.l.b16 %v3330
          %v3875 = vunpack.c.h.b16 %v3330
          %v3876 = vunpack.c.l.b16 %v3331
          %v3877 = vunpack.c.h.b16 %v3331
          %v3878 = vunpack.c.l.b16 %v3332
          %v3879 = vunpack.c.h.b16 %v3332
          %v3880 = vunpack.c.l.b16 %v3333
          %v3881 = vunpack.c.h.b16 %v3333
          %v3882 = vunpack.c.l.b16 %v3334
          %v3883 = vunpack.c.h.b16 %v3334
          %v3884 = vunpack.c.l.b16 %v3335
          %v3885 = vunpack.c.h.b16 %v3335
          %v3886 = vunpack.c.l.b16 %v3336
          %v3887 = vunpack.c.h.b16 %v3336
          %v3888 = vunpack.c.l.b16 %v3337
          %v3889 = vunpack.c.h.b16 %v3337
          %v3890 = vunpack.c.l.b16 %v3338
          %v3891 = vunpack.c.h.b16 %v3338
          %v3892 = vunpack.c.l.b16 %v3339
          %v3893 = vunpack.c.h.b16 %v3339
          %v3894 = vunpack.c.l.b16 %v3340
          %v3895 = vunpack.c.h.b16 %v3340
          %v3896 = vunpack.c.l.b16 %v3341
          %v3897 = vunpack.c.h.b16 %v3341
          %v3898 = vunpack.c.l.b16 %v3342
          %v3899 = vunpack.c.h.b16 %v3342
          %v3900 = vunpack.c.l.b16 %v3343
          %v3901 = vunpack.c.h.b16 %v3343
          %v3902 = vunpack.c.l.b16 %v3344
          %v3903 = vunpack.c.h.b16 %v3344
          %v3904 = vunpack.c.l.b16 %v3345
          %v3905 = vunpack.c.h.b16 %v3345
          %v3906 = vunpack.c.l.b16 %v3346
          %v3907 = vunpack.c.h.b16 %v3346
          %v3908 = vunpack.c.l.b16 %v3347
          %v3909 = vunpack.c.h.b16 %v3347
          %v3910 = vunpack.c.l.b16 %v3348
          %v3911 = vunpack.c.h.b16 %v3348
          %v3912 = vunpack.c.l.b16 %v3349
          %v3913 = vunpack.c.h.b16 %v3349
          %v3914 = vunpack.c.l.b16 %v3350
          %v3915 = vunpack.c.h.b16 %v3350
          %v3916 = vunpack.c.l.b16 %v3351
          %v3917 = vunpack.c.h.b16 %v3351
          %v3918 = vunpack.c.l.b16 %v3352
          %v3919 = vunpack.c.h.b16 %v3352
          %v3920 = vunpack.c.l.b16 %v3353
          %v3921 = vunpack.c.h.b16 %v3353
          %v3922 = vunpack.c.l.b16 %v3354
          %v3923 = vunpack.c.h.b16 %v3354
          %v3924 = vunpack.c.l.b16 %v3355
          %v3925 = vunpack.c.h.b16 %v3355
          %v3926 = vunpack.c.l.b16 %v3356
          %v3927 = vunpack.c.h.b16 %v3356
          %v3928 = vunpack.c.l.b16 %v3357
          %v3929 = vunpack.c.h.b16 %v3357
          %v3930 = vunpack.c.l.b16 %v3358
          %v3931 = vunpack.c.h.b16 %v3358
          %v3932 = vunpack.c.l.b16 %v3359
          %v3933 = vunpack.c.h.b16 %v3359
          %v3934 = vunpack.c.l.b16 %v3360
          %v3935 = vunpack.c.h.b16 %v3360
          %v3936 = vunpack.c.l.b16 %v3361
          %v3937 = vunpack.c.h.b16 %v3361
          %v3938 = vpack.c.b16 %v3558, %v3554
          %v3939 = vpack.c.b16 %v3559, %v3555
          %v3940 = vpack.c.b16 %v3560, %v3556
          %v3941 = vpack.c.b16 %v3561, %v3557
          %v3942 = vpack.c.b16 %v3566, %v3562
          %v3943 = vpack.c.b16 %v3567, %v3563
          %v3944 = vpack.c.b16 %v3568, %v3564
          %v3945 = vpack.c.b16 %v3569, %v3565
          %v3946 = vpack.c.b16 %v3574, %v3570
          %v3947 = vpack.c.b16 %v3575, %v3571
          %v3948 = vpack.c.b16 %v3576, %v3572
          %v3949 = vpack.c.b16 %v3577, %v3573
          %v3950 = vpack.c.b16 %v3582, %v3578
          %v3951 = vpack.c.b16 %v3583, %v3579
          %v3952 = vpack.c.b16 %v3584, %v3580
          %v3953 = vpack.c.b16 %v3585, %v3581
          %v3954 = vpack.c.b16 %v3590, %v3586
          %v3955 = vpack.c.b16 %v3591, %v3587
          %v3956 = vpack.c.b16 %v3592, %v3588
          %v3957 = vpack.c.b16 %v3593, %v3589
          %v3958 = vpack.c.b16 %v3598, %v3594
          %v3959 = vpack.c.b16 %v3599, %v3595
          %v3960 = vpack.c.b16 %v3600, %v3596
          %v3961 = vpack.c.b16 %v3601, %v3597
          %v3962 = vpack.c.b16 %v3606, %v3602
          %v3963 = vpack.c.b16 %v3607, %v3603
          %v3964 = vpack.c.b16 %v3608, %v3604
          %v3965 = vpack.c.b16 %v3609, %v3605
          %v3966 = vpack.c.b16 %v3614, %v3610
          %v3967 = vpack.c.b16 %v3615, %v3611
          %v3968 = vpack.c.b16 %v3616, %v3612
          %v3969 = vpack.c.b16 %v3617, %v3613
          %v3970 = vpack.c.b16 %v3622, %v3618
          %v3971 = vpack.c.b16 %v3623, %v3619
          %v3972 = vpack.c.b16 %v3624, %v3620
          %v3973 = vpack.c.b16 %v3625, %v3621
          %v3974 = vpack.c.b16 %v3630, %v3626
          %v3975 = vpack.c.b16 %v3631, %v3627
          %v3976 = vpack.c.b16 %v3632, %v3628
          %v3977 = vpack.c.b16 %v3633, %v3629
          %v3978 = vpack.c.b16 %v3638, %v3634
          %v3979 = vpack.c.b16 %v3639, %v3635
          %v3980 = vpack.c.b16 %v3640, %v3636
          %v3981 = vpack.c.b16 %v3641, %v3637
          %v3982 = vpack.c.b16 %v3646, %v3642
          %v3983 = vpack.c.b16 %v3647, %v3643
          %v3984 = vpack.c.b16 %v3648, %v3644
          %v3985 = vpack.c.b16 %v3649, %v3645
          %v3986 = vpack.c.b16 %v3654, %v3650
          %v3987 = vpack.c.b16 %v3655, %v3651
          %v3988 = vpack.c.b16 %v3656, %v3652
          %v3989 = vpack.c.b16 %v3657, %v3653
          %v3990 = vpack.c.b16 %v3662, %v3658
          %v3991 = vpack.c.b16 %v3663, %v3659
          %v3992 = vpack.c.b16 %v3664, %v3660
          %v3993 = vpack.c.b16 %v3665, %v3661
          %v3994 = vpack.c.b16 %v3670, %v3666
          %v3995 = vpack.c.b16 %v3671, %v3667
          %v3996 = vpack.c.b16 %v3672, %v3668
          %v3997 = vpack.c.b16 %v3673, %v3669
          %v3998 = vpack.c.b16 %v3678, %v3674
          %v3999 = vpack.c.b16 %v3679, %v3675
          %v4000 = vpack.c.b16 %v3680, %v3676
          %v4001 = vpack.c.b16 %v3681, %v3677
          %v4002 = vpack.c.b16 %v3686, %v3682
          %v4003 = vpack.c.b16 %v3687, %v3683
          %v4004 = vpack.c.b16 %v3688, %v3684
          %v4005 = vpack.c.b16 %v3689, %v3685
          %v4006 = vpack.c.b16 %v3694, %v3690
          %v4007 = vpack.c.b16 %v3695, %v3691
          %v4008 = vpack.c.b16 %v3696, %v3692
          %v4009 = vpack.c.b16 %v3697, %v3693
          %v4010 = vpack.c.b16 %v3702, %v3698
          %v4011 = vpack.c.b16 %v3703, %v3699
          %v4012 = vpack.c.b16 %v3704, %v3700
          %v4013 = vpack.c.b16 %v3705, %v3701
          %v4014 = vpack.c.b16 %v3710, %v3706
          %v4015 = vpack.c.b16 %v3711, %v3707
          %v4016 = vpack.c.b16 %v3712, %v3708
          %v4017 = vpack.c.b16 %v3713, %v3709
          %v4018 = vpack.c.b16 %v3718, %v3714
          %v4019 = vpack.c.b16 %v3719, %v3715
          %v4020 = vpack.c.b16 %v3720, %v3716
          %v4021 = vpack.c.b16 %v3721, %v3717
          %v4022 = vpack.c.b16 %v3726, %v3722
          %v4023 = vpack.c.b16 %v3727, %v3723
          %v4024 = vpack.c.b16 %v3728, %v3724
          %v4025 = vpack.c.b16 %v3729, %v3725
          %v4026 = vpack.c.b16 %v3734, %v3730
          %v4027 = vpack.c.b16 %v3735, %v3731
          %v4028 = vpack.c.b16 %v3736, %v3732
          %v4029 = vpack.c.b16 %v3737, %v3733
          %v4030 = vpack.c.b16 %v3742, %v3738
          %v4031 = vpack.c.b16 %v3743, %v3739
          %v4032 = vpack.c.b16 %v3744, %v3740
          %v4033 = vpack.c.b16 %v3745, %v3741
          %v4034 = vpack.c.b16 %v3750, %v3746
          %v4035 = vpack.c.b16 %v3751, %v3747
          %v4036 = vpack.c.b16 %v3752, %v3748
          %v4037 = vpack.c.b16 %v3753, %v3749
          %v4038 = vpack.c.b16 %v3758, %v3754
          %v4039 = vpack.c.b16 %v3759, %v3755
          %v4040 = vpack.c.b16 %v3760, %v3756
          %v4041 = vpack.c.b16 %v3761, %v3757
          %v4042 = vpack.c.b16 %v3766, %v3762
          %v4043 = vpack.c.b16 %v3767, %v3763
          %v4044 = vpack.c.b16 %v3768, %v3764
          %v4045 = vpack.c.b16 %v3769, %v3765
          %v4046 = vpack.c.b16 %v3774, %v3770
          %v4047 = vpack.c.b16 %v3775, %v3771
          %v4048 = vpack.c.b16 %v3776, %v3772
          %v4049 = vpack.c.b16 %v3777, %v3773
          %v4050 = vpack.c.b16 %v3782, %v3778
          %v4051 = vpack.c.b16 %v3783, %v3779
          %v4052 = vpack.c.b16 %v3784, %v3780
          %v4053 = vpack.c.b16 %v3785, %v3781
          %v4054 = vpack.c.b16 %v3790, %v3786
          %v4055 = vpack.c.b16 %v3791, %v3787
          %v4056 = vpack.c.b16 %v3792, %v3788
          %v4057 = vpack.c.b16 %v3793, %v3789
          %v4058 = vpack.c.b16 %v3798, %v3794
          %v4059 = vpack.c.b16 %v3799, %v3795
          %v4060 = vpack.c.b16 %v3800, %v3796
          %v4061 = vpack.c.b16 %v3801, %v3797
          %v4062 = vpack.c.b16 %v3806, %v3802
          %v4063 = vpack.c.b16 %v3807, %v3803
          %v4064 = vpack.c.b16 %v3808, %v3804
          %v4065 = vpack.c.b16 %v3809, %v3805
          %v4066 = vpack.c.b16 %v3814, %v3810
          %v4067 = vpack.c.b16 %v3815, %v3811
          %v4068 = vpack.c.b16 %v3816, %v3812
          %v4069 = vpack.c.b16 %v3817, %v3813
          %v4070 = vpack.c.b16 %v3822, %v3818
          %v4071 = vpack.c.b16 %v3823, %v3819
          %v4072 = vpack.c.b16 %v3824, %v3820
          %v4073 = vpack.c.b16 %v3825, %v3821
          %v4074 = vpack.c.b16 %v3830, %v3826
          %v4075 = vpack.c.b16 %v3831, %v3827
          %v4076 = vpack.c.b16 %v3832, %v3828
          %v4077 = vpack.c.b16 %v3833, %v3829
          %v4078 = vpack.c.b16 %v3838, %v3834
          %v4079 = vpack.c.b16 %v3839, %v3835
          %v4080 = vpack.c.b16 %v3840, %v3836
          %v4081 = vpack.c.b16 %v3841, %v3837
          %v4082 = vpack.c.b16 %v3846, %v3842
          %v4083 = vpack.c.b16 %v3847, %v3843
          %v4084 = vpack.c.b16 %v3848, %v3844
          %v4085 = vpack.c.b16 %v3849, %v3845
          %v4086 = vpack.c.b16 %v3854, %v3850
          %v4087 = vpack.c.b16 %v3855, %v3851
          %v4088 = vpack.c.b16 %v3856, %v3852
          %v4089 = vpack.c.b16 %v3857, %v3853
          %v4090 = vpack.c.b16 %v3862, %v3858
          %v4091 = vpack.c.b16 %v3863, %v3859
          %v4092 = vpack.c.b16 %v3864, %v3860
          %v4093 = vpack.c.b16 %v3865, %v3861
          %v4094 = vpack.c.b16 %v3870, %v3866
          %v4095 = vpack.c.b16 %v3871, %v3867
          %v4096 = vpack.c.b16 %v3872, %v3868
          %v4097 = vpack.c.b16 %v3873, %v3869
          %v4098 = vpack.c.b16 %v3878, %v3874
          %v4099 = vpack.c.b16 %v3879, %v3875
          %v4100 = vpack.c.b16 %v3880, %v3876
          %v4101 = vpack.c.b16 %v3881, %v3877
          %v4102 = vpack.c.b16 %v3886, %v3882
          %v4103 = vpack.c.b16 %v3887, %v3883
          %v4104 = vpack.c.b16 %v3888, %v3884
          %v4105 = vpack.c.b16 %v3889, %v3885
          %v4106 = vpack.c.b16 %v3894, %v3890
          %v4107 = vpack.c.b16 %v3895, %v3891
          %v4108 = vpack.c.b16 %v3896, %v3892
          %v4109 = vpack.c.b16 %v3897, %v3893
          %v4110 = vpack.c.b16 %v3902, %v3898
          %v4111 = vpack.c.b16 %v3903, %v3899
          %v4112 = vpack.c.b16 %v3904, %v3900
          %v4113 = vpack.c.b16 %v3905, %v3901
          %v4114 = vpack.c.b16 %v3910, %v3906
          %v4115 = vpack.c.b16 %v3911, %v3907
          %v4116 = vpack.c.b16 %v3912, %v3908
          %v4117 = vpack.c.b16 %v3913, %v3909
          %v4118 = vpack.c.b16 %v3918, %v3914
          %v4119 = vpack.c.b16 %v3919, %v3915
          %v4120 = vpack.c.b16 %v3920, %v3916
          %v4121 = vpack.c.b16 %v3921, %v3917
          %v4122 = vpack.c.b16 %v3926, %v3922
          %v4123 = vpack.c.b16 %v3927, %v3923
          %v4124 = vpack.c.b16 %v3928, %v3924
          %v4125 = vpack.c.b16 %v3929, %v3925
          %v4126 = vpack.c.b16 %v3934, %v3930
          %v4127 = vpack.c.b16 %v3935, %v3931
          %v4128 = vpack.c.b16 %v3936, %v3932
          %v4129 = vpack.c.b16 %v3937, %v3933
          %4322 = vmatprep.subr.bf16.mxu0 %v3939
          %4323 = vmatpush1.bf16.msra.mxu0 %v3938
          %4324 = vmatprep.subr.bf16.mxu0 %v3943
          %4325 = vmatpush1.bf16.msra.mxu0 %v3942
          %4326 = vmatprep.subr.bf16.mxu0 %v3947
          %4327 = vmatpush1.bf16.msra.mxu0 %v3946
          %4328 = vmatprep.subr.bf16.mxu0 %v3951
          %4329 = vmatpush1.bf16.msra.mxu0 %v3950
          %4330 = vmatprep.subr.bf16.mxu0 %v3955
          %4331 = vmatpush1.bf16.msra.mxu0 %v3954
          %4332 = vmatprep.subr.bf16.mxu0 %v3959
          %4333 = vmatpush1.bf16.msra.mxu0 %v3958
          %4334 = vmatprep.subr.bf16.mxu0 %v3963
          %4335 = vmatpush1.bf16.msra.mxu0 %v3962
          %4336 = vmatprep.subr.bf16.mxu0 %v3967
          %4337 = vmatpush1.bf16.msra.mxu0 %v3966
          %4338 = vmatprep.subr.bf16.mxu0 %v3971
          %4339 = vmatpush1.bf16.msra.mxu0 %v3970
          %4340 = vmatprep.subr.bf16.mxu0 %v3975
          %4341 = vmatpush1.bf16.msra.mxu0 %v3974
          %4342 = vmatprep.subr.bf16.mxu0 %v3979
          %4343 = vmatpush1.bf16.msra.mxu0 %v3978
          %4344 = vmatprep.subr.bf16.mxu0 %v3983
          %4345 = vmatpush1.bf16.msra.mxu0 %v3982
          %4346 = vmatprep.subr.bf16.mxu0 %v3987
          %4347 = vmatpush1.bf16.msra.mxu0 %v3986
          %4348 = vmatprep.subr.bf16.mxu0 %v3991
          %4349 = vmatpush1.bf16.msra.mxu0 %v3990
          %4350 = vmatprep.subr.bf16.mxu0 %v3995
          %4351 = vmatpush1.bf16.msra.mxu0 %v3994
          %4352 = vmatprep.subr.bf16.mxu0 %v3999
          %4353 = vmatpush1.bf16.msra.mxu0 %v3998
          %4354 = vmatprep.mubr.bf16.mxu0 %v3165
          %4355 = vmatmul.mubr.bf16.gmra.mrb[0].mxu0 %v3164
          %v4356 = vpop.f32.mrb[0].mxu0
          %v4357 = vadd.f32 0.0, %v4356
          %v4358 = vpop.f32.mrb[0].mxu0
          %v4359 = vadd.f32 0.0, %v4358
          %v4360 = vpop.f32.mrb[0].mxu0
          %v4361 = vpop.f32.mrb[0].mxu0
          %4362 = vdwg.mxu0
          %4363 = vmatprep.subr.bf16.mxu0 %v4003
          %4364 = vmatpush1.bf16.msra.mxu0 %v4002
          %4365 = vmatprep.subr.bf16.mxu0 %v4007
          %4366 = vmatpush1.bf16.msra.mxu0 %v4006
          %4367 = vmatprep.subr.bf16.mxu0 %v4011
          %4368 = vmatpush1.bf16.msra.mxu0 %v4010
          %4369 = vmatprep.subr.bf16.mxu0 %v4015
          %4370 = vmatpush1.bf16.msra.mxu0 %v4014
          %4371 = vmatprep.subr.bf16.mxu0 %v4019
          %4372 = vmatpush1.bf16.msra.mxu0 %v4018
          %4373 = vmatprep.subr.bf16.mxu0 %v4023
          %4374 = vmatpush1.bf16.msra.mxu0 %v4022
          %4375 = vmatprep.subr.bf16.mxu0 %v4027
          %4376 = vmatpush1.bf16.msra.mxu0 %v4026
          %4377 = vmatprep.subr.bf16.mxu0 %v4031
          %4378 = vmatpush1.bf16.msra.mxu0 %v4030
          %4379 = vmatprep.subr.bf16.mxu0 %v4035
          %4380 = vmatpush1.bf16.msra.mxu0 %v4034
          %4381 = vmatprep.subr.bf16.mxu0 %v4039
          %4382 = vmatpush1.bf16.msra.mxu0 %v4038
          %4383 = vmatprep.subr.bf16.mxu0 %v4043
          %4384 = vmatpush1.bf16.msra.mxu0 %v4042
          %4385 = vmatprep.subr.bf16.mxu0 %v4047
          %4386 = vmatpush1.bf16.msra.mxu0 %v4046
          %4387 = vmatprep.subr.bf16.mxu0 %v4051
          %4388 = vmatpush1.bf16.msra.mxu0 %v4050
          %4389 = vmatprep.subr.bf16.mxu0 %v4055
          %4390 = vmatpush1.bf16.msra.mxu0 %v4054
          %4391 = vmatprep.subr.bf16.mxu0 %v4059
          %4392 = vmatpush1.bf16.msra.mxu0 %v4058
          %4393 = vmatprep.subr.bf16.mxu0 %v4063
          %4394 = vmatpush1.bf16.msra.mxu0 %v4062
          %4395 = vmatprep.mubr.bf16.mxu0 %v3167
          %4396 = vmatmul.mubr.bf16.gmra.mrb[0].mxu0 %v3166
          %v4397 = vpop.f32.mrb[0].mxu0
          %v4398 = vadd.f32 %v4357, %v4397
          %v4399 = vpop.f32.mrb[0].mxu0
          %v4400 = vadd.f32 %v4359, %v4399
          %v4401 = vpop.f32.mrb[0].mxu0
          %v4402 = vpop.f32.mrb[0].mxu0
          %4403 = vdwg.mxu0
          %4404 = vmatprep.subr.bf16.mxu0 %v4067
          %4405 = vmatpush1.bf16.msra.mxu0 %v4066
          %4406 = vmatprep.subr.bf16.mxu0 %v4071
          %4407 = vmatpush1.bf16.msra.mxu0 %v4070
          %4408 = vmatprep.subr.bf16.mxu0 %v4075
          %4409 = vmatpush1.bf16.msra.mxu0 %v4074
          %4410 = vmatprep.subr.bf16.mxu0 %v4079
          %4411 = vmatpush1.bf16.msra.mxu0 %v4078
          %4412 = vmatprep.subr.bf16.mxu0 %v4083
          %4413 = vmatpush1.bf16.msra.mxu0 %v4082
          %4414 = vmatprep.subr.bf16.mxu0 %v4087
          %4415 = vmatpush1.bf16.msra.mxu0 %v4086
          %4416 = vmatprep.subr.bf16.mxu0 %v4091
          %4417 = vmatpush1.bf16.msra.mxu0 %v4090
          %4418 = vmatprep.subr.bf16.mxu0 %v4095
          %4419 = vmatpush1.bf16.msra.mxu0 %v4094
          %4420 = vmatprep.subr.bf16.mxu0 %v4099
          %4421 = vmatpush1.bf16.msra.mxu0 %v4098
          %4422 = vmatprep.subr.bf16.mxu0 %v4103
          %4423 = vmatpush1.bf16.msra.mxu0 %v4102
          %4424 = vmatprep.subr.bf16.mxu0 %v4107
          %4425 = vmatpush1.bf16.msra.mxu0 %v4106
          %4426 = vmatprep.subr.bf16.mxu0 %v4111
          %4427 = vmatpush1.bf16.msra.mxu0 %v4110
          %4428 = vmatprep.subr.bf16.mxu0 %v4115
          %4429 = vmatpush1.bf16.msra.mxu0 %v4114
          %4430 = vmatprep.subr.bf16.mxu0 %v4119
          %4431 = vmatpush1.bf16.msra.mxu0 %v4118
          %4432 = vmatprep.subr.bf16.mxu0 %v4123
          %4433 = vmatpush1.bf16.msra.mxu0 %v4122
          %4434 = vmatprep.subr.bf16.mxu0 %v4127
          %4435 = vmatpush1.bf16.msra.mxu0 %v4126
          %4436 = vmatprep.mubr.bf16.mxu0 %v3169
          %4437 = vmatmul.mubr.bf16.gmra.mrb[0].mxu0 %v3168
          %v4438 = vpop.f32.mrb[0].mxu0
          %v4439 = vadd.f32 %v4398, %v4438
          %v4440 = vpop.f32.mrb[0].mxu0
          %v4441 = vadd.f32 %v4400, %v4440
          %v4442 = vpop.f32.mrb[0].mxu0
          %v4443 = vpop.f32.mrb[0].mxu0
          %4444 = vdwg.mxu0
          %4445 = vmatprep.subr.bf16.mxu0 %v3941
          %4446 = vmatpush1.bf16.msra.mxu0 %v3940
          %4447 = vmatprep.subr.bf16.mxu0 %v3945
          %4448 = vmatpush1.bf16.msra.mxu0 %v3944
          %4449 = vmatprep.subr.bf16.mxu0 %v3949
          %4450 = vmatpush1.bf16.msra.mxu0 %v3948
          %4451 = vmatprep.subr.bf16.mxu0 %v3953
          %4452 = vmatpush1.bf16.msra.mxu0 %v3952
          %4453 = vmatprep.subr.bf16.mxu0 %v3957
          %4454 = vmatpush1.bf16.msra.mxu0 %v3956
          %4455 = vmatprep.subr.bf16.mxu0 %v3961
          %4456 = vmatpush1.bf16.msra.mxu0 %v3960
          %4457 = vmatprep.subr.bf16.mxu0 %v3965
          %4458 = vmatpush1.bf16.msra.mxu0 %v3964
          %4459 = vmatprep.subr.bf16.mxu0 %v3969
          %4460 = vmatpush1.bf16.msra.mxu0 %v3968
          %4461 = vmatprep.subr.bf16.mxu0 %v3973
          %4462 = vmatpush1.bf16.msra.mxu0 %v3972
          %4463 = vmatprep.subr.bf16.mxu0 %v3977
          %4464 = vmatpush1.bf16.msra.mxu0 %v3976
          %4465 = vmatprep.subr.bf16.mxu0 %v3981
          %4466 = vmatpush1.bf16.msra.mxu0 %v3980
          %4467 = vmatprep.subr.bf16.mxu0 %v3985
          %4468 = vmatpush1.bf16.msra.mxu0 %v3984
          %4469 = vmatprep.subr.bf16.mxu0 %v3989
          %4470 = vmatpush1.bf16.msra.mxu0 %v3988
          %4471 = vmatprep.subr.bf16.mxu0 %v3993
          %4472 = vmatpush1.bf16.msra.mxu0 %v3992
          %4473 = vmatprep.subr.bf16.mxu0 %v3997
          %4474 = vmatpush1.bf16.msra.mxu0 %v3996
          %4475 = vmatprep.subr.bf16.mxu0 %v4001
          %4476 = vmatpush1.bf16.msra.mxu0 %v4000
          %4477 = vmatprep.mubr.bf16.mxu0 %v3165
          %4478 = vmatmul.mubr.bf16.gmra.mrb[0].mxu0 %v3164
          %v4479 = vpop.f32.mrb[0].mxu0
          %v4480 = vadd.f32 0.0, %v4479
          %v4481 = vpop.f32.mrb[0].mxu0
          %v4482 = vadd.f32 0.0, %v4481
          %v4483 = vpop.f32.mrb[0].mxu0
          %v4484 = vpop.f32.mrb[0].mxu0
          %4485 = vdwg.mxu0
          %4486 = vmatprep.subr.bf16.mxu0 %v4005
          %4487 = vmatpush1.bf16.msra.mxu0 %v4004
          %4488 = vmatprep.subr.bf16.mxu0 %v4009
          %4489 = vmatpush1.bf16.msra.mxu0 %v4008
          %4490 = vmatprep.subr.bf16.mxu0 %v4013
          %4491 = vmatpush1.bf16.msra.mxu0 %v4012
          %4492 = vmatprep.subr.bf16.mxu0 %v4017
          %4493 = vmatpush1.bf16.msra.mxu0 %v4016
          %4494 = vmatprep.subr.bf16.mxu0 %v4021
          %4495 = vmatpush1.bf16.msra.mxu0 %v4020
          %4496 = vmatprep.subr.bf16.mxu0 %v4025
          %4497 = vmatpush1.bf16.msra.mxu0 %v4024
          %4498 = vmatprep.subr.bf16.mxu0 %v4029
          %4499 = vmatpush1.bf16.msra.mxu0 %v4028
          %4500 = vmatprep.subr.bf16.mxu0 %v4033
          %4501 = vmatpush1.bf16.msra.mxu0 %v4032
          %4502 = vmatprep.subr.bf16.mxu0 %v4037
          %4503 = vmatpush1.bf16.msra.mxu0 %v4036
          %4504 = vmatprep.subr.bf16.mxu0 %v4041
          %4505 = vmatpush1.bf16.msra.mxu0 %v4040
          %4506 = vmatprep.subr.bf16.mxu0 %v4045
          %4507 = vmatpush1.bf16.msra.mxu0 %v4044
          %4508 = vmatprep.subr.bf16.mxu0 %v4049
          %4509 = vmatpush1.bf16.msra.mxu0 %v4048
          %4510 = vmatprep.subr.bf16.mxu0 %v4053
          %4511 = vmatpush1.bf16.msra.mxu0 %v4052
          %4512 = vmatprep.subr.bf16.mxu0 %v4057
          %4513 = vmatpush1.bf16.msra.mxu0 %v4056
          %4514 = vmatprep.subr.bf16.mxu0 %v4061
          %4515 = vmatpush1.bf16.msra.mxu0 %v4060
          %4516 = vmatprep.subr.bf16.mxu0 %v4065
          %4517 = vmatpush1.bf16.msra.mxu0 %v4064
          %4518 = vmatprep.mubr.bf16.mxu0 %v3167
          %4519 = vmatmul.mubr.bf16.gmra.mrb[0].mxu0 %v3166
          %v4520 = vpop.f32.mrb[0].mxu0
          %v4521 = vadd.f32 %v4480, %v4520
          %v4522 = vpop.f32.mrb[0].mxu0
          %v4523 = vadd.f32 %v4482, %v4522
          %v4524 = vpop.f32.mrb[0].mxu0
          %v4525 = vpop.f32.mrb[0].mxu0
          %4526 = vdwg.mxu0
          %4527 = vmatprep.subr.bf16.mxu0 %v4069
          %4528 = vmatpush1.bf16.msra.mxu0 %v4068
          %4529 = vmatprep.subr.bf16.mxu0 %v4073
          %4530 = vmatpush1.bf16.msra.mxu0 %v4072
          %4531 = vmatprep.subr.bf16.mxu0 %v4077
          %4532 = vmatpush1.bf16.msra.mxu0 %v4076
          %4533 = vmatprep.subr.bf16.mxu0 %v4081
          %4534 = vmatpush1.bf16.msra.mxu0 %v4080
          %4535 = vmatprep.subr.bf16.mxu0 %v4085
          %4536 = vmatpush1.bf16.msra.mxu0 %v4084
          %4537 = vmatprep.subr.bf16.mxu0 %v4089
          %4538 = vmatpush1.bf16.msra.mxu0 %v4088
          %4539 = vmatprep.subr.bf16.mxu0 %v4093
          %4540 = vmatpush1.bf16.msra.mxu0 %v4092
          %4541 = vmatprep.subr.bf16.mxu0 %v4097
          %4542 = vmatpush1.bf16.msra.mxu0 %v4096
          %4543 = vmatprep.subr.bf16.mxu0 %v4101
          %4544 = vmatpush1.bf16.msra.mxu0 %v4100
          %4545 = vmatprep.subr.bf16.mxu0 %v4105
          %4546 = vmatpush1.bf16.msra.mxu0 %v4104
          %4547 = vmatprep.subr.bf16.mxu0 %v4109
          %4548 = vmatpush1.bf16.msra.mxu0 %v4108
          %4549 = vmatprep.subr.bf16.mxu0 %v4113
          %4550 = vmatpush1.bf16.msra.mxu0 %v4112
          %4551 = vmatprep.subr.bf16.mxu0 %v4117
          %4552 = vmatpush1.bf16.msra.mxu0 %v4116
          %4553 = vmatprep.subr.bf16.mxu0 %v4121
          %4554 = vmatpush1.bf16.msra.mxu0 %v4120
          %4555 = vmatprep.subr.bf16.mxu0 %v4125
          %4556 = vmatpush1.bf16.msra.mxu0 %v4124
          %4557 = vmatprep.subr.bf16.mxu0 %v4129
          %4558 = vmatpush1.bf16.msra.mxu0 %v4128
          %4559 = vmatprep.mubr.bf16.mxu0 %v3169
          %4560 = vmatmul.mubr.bf16.gmra.mrb[0].mxu0 %v3168
          %v4561 = vpop.f32.mrb[0].mxu0
          %v4562 = vadd.f32 %v4521, %v4561
          %v4563 = vpop.f32.mrb[0].mxu0
          %v4564 = vadd.f32 %v4523, %v4563
          %v4565 = vpop.f32.mrb[0].mxu0
          %v4566 = vpop.f32.mrb[0].mxu0
          %4567 = vdwg.mxu0
          %v4568 = vadd.f32 %v3160, %v4439
          %v4569 = vadd.f32 %v3161, %v4441
          %v4570 = vadd.f32 %v3162, %v4562
          %v4571 = vadd.f32 %v3163, %v4564
          %v4572 = vld [vmem:[#allocation14] sm:$0xf]
          %v4574 = vlaneseq
          %v4575 = vshrl.u32 %v4574, 7
          %v4576 = vsub.s32 0, %v4575
          %v4577 = vrot.slane %v4572, %v4576
          %v4578 = vlaneseq
          %v4579 = vshrl.u32 %v4578, 7
          %v4580 = vsub.s32 1, %v4579
          %v4581 = vrot.slane %v4572, %v4580
          %v4582 = vlaneseq
          %v4583 = vshrl.u32 %v4582, 7
          %v4584 = vsub.s32 2, %v4583
          %v4585 = vrot.slane %v4572, %v4584
          %v4586 = vlaneseq
          %v4587 = vshrl.u32 %v4586, 7
          %v4588 = vsub.s32 3, %v4587
          %v4589 = vrot.slane %v4572, %v4588
          %v4594 = vadd.f32 %v4568, %v4577
          %v4595 = vadd.f32 %v4569, %v4581
          %v4596 = vadd.f32 %v4570, %v4585
          %v4597 = vadd.f32 %v4571, %v4589
          %v4598 = vmax.f32 %v4594, 0.0
          %v4599 = vmax.f32 %v4595, 0.0
          %v4600 = vmax.f32 %v4596, 0.0
          %v4601 = vmax.f32 %v4597, 0.0
          %v4602 = vpack.c.bf16 %v4598, %v4598
          %v4603 = vpack.c.bf16 %v4599, %v4599
          %v4604 = vpack.c.bf16 %v4600, %v4600
          %v4605 = vpack.c.bf16 %v4601, %v4601
          %v4606 = vld [vmem:[#allocation15] sm:$0xf]
          %v4607 = vld [vmem:[#allocation15 + $0x4] sm:$0xf]
          %v4608 = vld [vmem:[#allocation15 + $0x8] sm:$0xf]
          %v4609 = vld [vmem:[#allocation15 + $0xc] sm:$0xf]
          %v4610 = vld [vmem:[#allocation15 + $0x10] sm:$0xf]
          %v4611 = vld [vmem:[#allocation15 + $0x14] sm:$0xf]
          %v4612 = vld [vmem:[#allocation15 + $0x18] sm:$0xf]
          %v4613 = vld [vmem:[#allocation15 + $0x1c] sm:$0xf]
          %v4614 = vld [vmem:[#allocation15 + $0x20] sm:$0xf]
          %v4615 = vld [vmem:[#allocation15 + $0x24] sm:$0xf]
          %v4616 = vld [vmem:[#allocation15 + $0x28] sm:$0xf]
          %v4617 = vld [vmem:[#allocation15 + $0x2c] sm:$0xf]
          %v4618 = vld [vmem:[#allocation15 + $0x30] sm:$0xf]
          %v4619 = vld [vmem:[#allocation15 + $0x34] sm:$0xf]
          %v4620 = vld [vmem:[#allocation15 + $0x38] sm:$0xf]
          %v4621 = vld [vmem:[#allocation15 + $0x3c] sm:$0xf]
          %v4622 = vld [vmem:[#allocation15 + $0x40] sm:$0xf]
          %v4623 = vld [vmem:[#allocation15 + $0x44] sm:$0xf]
          %v4624 = vld [vmem:[#allocation15 + $0x48] sm:$0xf]
          %v4625 = vld [vmem:[#allocation15 + $0x4c] sm:$0xf]
          %v4626 = vld [vmem:[#allocation15 + $0x50] sm:$0xf]
          %v4627 = vld [vmem:[#allocation15 + $0x54] sm:$0xf]
          %v4628 = vld [vmem:[#allocation15 + $0x58] sm:$0xf]
          %v4629 = vld [vmem:[#allocation15 + $0x5c] sm:$0xf]
          %v4630 = vld [vmem:[#allocation15 + $0x60] sm:$0xf]
          %v4631 = vld [vmem:[#allocation15 + $0x64] sm:$0xf]
          %v4632 = vld [vmem:[#allocation15 + $0x68] sm:$0xf]
          %v4633 = vld [vmem:[#allocation15 + $0x6c] sm:$0xf]
          %v4634 = vld [vmem:[#allocation15 + $0x70] sm:$0xf]
          %v4635 = vld [vmem:[#allocation15 + $0x74] sm:$0xf]
          %v4636 = vld [vmem:[#allocation15 + $0x78] sm:$0xf]
          %v4637 = vld [vmem:[#allocation15 + $0x7c] sm:$0xf]
          %v4638 = vld [vmem:[#allocation15 + $0x80] sm:$0xf]
          %v4639 = vld [vmem:[#allocation15 + $0x84] sm:$0xf]
          %v4640 = vld [vmem:[#allocation15 + $0x88] sm:$0xf]
          %v4641 = vld [vmem:[#allocation15 + $0x8c] sm:$0xf]
          %v4642 = vld [vmem:[#allocation15 + $0x90] sm:$0xf]
          %v4643 = vld [vmem:[#allocation15 + $0x94] sm:$0xf]
          %v4644 = vld [vmem:[#allocation15 + $0x98] sm:$0xf]
          %v4645 = vld [vmem:[#allocation15 + $0x9c] sm:$0xf]
          %v4646 = vld [vmem:[#allocation15 + $0xa0] sm:$0xf]
          %v4647 = vld [vmem:[#allocation15 + $0xa4] sm:$0xf]
          %v4648 = vld [vmem:[#allocation15 + $0xa8] sm:$0xf]
          %v4649 = vld [vmem:[#allocation15 + $0xac] sm:$0xf]
          %v4650 = vld [vmem:[#allocation15 + $0xb0] sm:$0xf]
          %v4651 = vld [vmem:[#allocation15 + $0xb4] sm:$0xf]
          %v4652 = vld [vmem:[#allocation15 + $0xb8] sm:$0xf]
          %v4653 = vld [vmem:[#allocation15 + $0xbc] sm:$0xf]
          %v4654 = vld [vmem:[#allocation15 + $0xc0] sm:$0xf]
          %v4655 = vld [vmem:[#allocation15 + $0xc4] sm:$0xf]
          %v4656 = vld [vmem:[#allocation15 + $0xc8] sm:$0xf]
          %v4657 = vld [vmem:[#allocation15 + $0xcc] sm:$0xf]
          %v4658 = vld [vmem:[#allocation15 + $0xd0] sm:$0xf]
          %v4659 = vld [vmem:[#allocation15 + $0xd4] sm:$0xf]
          %v4660 = vld [vmem:[#allocation15 + $0xd8] sm:$0xf]
          %v4661 = vld [vmem:[#allocation15 + $0xdc] sm:$0xf]
          %v4662 = vld [vmem:[#allocation15 + $0xe0] sm:$0xf]
          %v4663 = vld [vmem:[#allocation15 + $0xe4] sm:$0xf]
          %v4664 = vld [vmem:[#allocation15 + $0xe8] sm:$0xf]
          %v4665 = vld [vmem:[#allocation15 + $0xec] sm:$0xf]
          %v4666 = vld [vmem:[#allocation15 + $0xf0] sm:$0xf]
          %v4667 = vld [vmem:[#allocation15 + $0xf4] sm:$0xf]
          %v4668 = vld [vmem:[#allocation15 + $0xf8] sm:$0xf]
          %v4669 = vld [vmem:[#allocation15 + $0xfc] sm:$0xf]
          %v4670 = vld [vmem:[#allocation17] sm:$0x1]
          %v4672 = vlaneseq
          %v4673 = vshrl.u32 %v4672, 7
          %v4674 = vsub.s32 0, %v4673
          %v4675 = vrot.slane %v4670, %v4674
          %v4741 = vunpack.c.l.b16 %v4606
          %v4742 = vunpack.c.l.b16 %v4607
          %v4743 = vunpack.c.l.b16 %v4608
          %v4744 = vunpack.c.l.b16 %v4609
          %v4745 = vunpack.c.l.b16 %v4610
          %v4746 = vunpack.c.l.b16 %v4611
          %v4747 = vunpack.c.l.b16 %v4612
          %v4748 = vunpack.c.l.b16 %v4613
          %v4749 = vunpack.c.l.b16 %v4614
          %v4750 = vunpack.c.l.b16 %v4615
          %v4751 = vunpack.c.l.b16 %v4616
          %v4752 = vunpack.c.l.b16 %v4617
          %v4753 = vunpack.c.l.b16 %v4618
          %v4754 = vunpack.c.l.b16 %v4619
          %v4755 = vunpack.c.l.b16 %v4620
          %v4756 = vunpack.c.l.b16 %v4621
          %v4757 = vunpack.c.l.b16 %v4622
          %v4758 = vunpack.c.l.b16 %v4623
          %v4759 = vunpack.c.l.b16 %v4624
          %v4760 = vunpack.c.l.b16 %v4625
          %v4761 = vunpack.c.l.b16 %v4626
          %v4762 = vunpack.c.l.b16 %v4627
          %v4763 = vunpack.c.l.b16 %v4628
          %v4764 = vunpack.c.l.b16 %v4629
          %v4765 = vunpack.c.l.b16 %v4630
          %v4766 = vunpack.c.l.b16 %v4631
          %v4767 = vunpack.c.l.b16 %v4632
          %v4768 = vunpack.c.l.b16 %v4633
          %v4769 = vunpack.c.l.b16 %v4634
          %v4770 = vunpack.c.l.b16 %v4635
          %v4771 = vunpack.c.l.b16 %v4636
          %v4772 = vunpack.c.l.b16 %v4637
          %v4773 = vunpack.c.l.b16 %v4638
          %v4774 = vunpack.c.l.b16 %v4639
          %v4775 = vunpack.c.l.b16 %v4640
          %v4776 = vunpack.c.l.b16 %v4641
          %v4777 = vunpack.c.l.b16 %v4642
          %v4778 = vunpack.c.l.b16 %v4643
          %v4779 = vunpack.c.l.b16 %v4644
          %v4780 = vunpack.c.l.b16 %v4645
          %v4781 = vunpack.c.l.b16 %v4646
          %v4782 = vunpack.c.l.b16 %v4647
          %v4783 = vunpack.c.l.b16 %v4648
          %v4784 = vunpack.c.l.b16 %v4649
          %v4785 = vunpack.c.l.b16 %v4650
          %v4786 = vunpack.c.l.b16 %v4651
          %v4787 = vunpack.c.l.b16 %v4652
          %v4788 = vunpack.c.l.b16 %v4653
          %v4789 = vunpack.c.l.b16 %v4654
          %v4790 = vunpack.c.l.b16 %v4655
          %v4791 = vunpack.c.l.b16 %v4656
          %v4792 = vunpack.c.l.b16 %v4657
          %v4793 = vunpack.c.l.b16 %v4658
          %v4794 = vunpack.c.l.b16 %v4659
          %v4795 = vunpack.c.l.b16 %v4660
          %v4796 = vunpack.c.l.b16 %v4661
          %v4797 = vunpack.c.l.b16 %v4662
          %v4798 = vunpack.c.l.b16 %v4663
          %v4799 = vunpack.c.l.b16 %v4664
          %v4800 = vunpack.c.l.b16 %v4665
          %v4801 = vunpack.c.l.b16 %v4666
          %v4802 = vunpack.c.l.b16 %v4667
          %v4803 = vunpack.c.l.b16 %v4668
          %v4804 = vunpack.c.l.b16 %v4669
          %v4805 = vpack.c.b16 %v4742, %v4741
          %v4806 = vpack.c.b16 %v4744, %v4743
          %v4807 = vpack.c.b16 %v4746, %v4745
          %v4808 = vpack.c.b16 %v4748, %v4747
          %v4809 = vpack.c.b16 %v4750, %v4749
          %v4810 = vpack.c.b16 %v4752, %v4751
          %v4811 = vpack.c.b16 %v4754, %v4753
          %v4812 = vpack.c.b16 %v4756, %v4755
          %v4813 = vpack.c.b16 %v4758, %v4757
          %v4814 = vpack.c.b16 %v4760, %v4759
          %v4815 = vpack.c.b16 %v4762, %v4761
          %v4816 = vpack.c.b16 %v4764, %v4763
          %v4817 = vpack.c.b16 %v4766, %v4765
          %v4818 = vpack.c.b16 %v4768, %v4767
          %v4819 = vpack.c.b16 %v4770, %v4769
          %v4820 = vpack.c.b16 %v4772, %v4771
          %v4821 = vpack.c.b16 %v4774, %v4773
          %v4822 = vpack.c.b16 %v4776, %v4775
          %v4823 = vpack.c.b16 %v4778, %v4777
          %v4824 = vpack.c.b16 %v4780, %v4779
          %v4825 = vpack.c.b16 %v4782, %v4781
          %v4826 = vpack.c.b16 %v4784, %v4783
          %v4827 = vpack.c.b16 %v4786, %v4785
          %v4828 = vpack.c.b16 %v4788, %v4787
          %v4829 = vpack.c.b16 %v4790, %v4789
          %v4830 = vpack.c.b16 %v4792, %v4791
          %v4831 = vpack.c.b16 %v4794, %v4793
          %v4832 = vpack.c.b16 %v4796, %v4795
          %v4833 = vpack.c.b16 %v4798, %v4797
          %v4834 = vpack.c.b16 %v4800, %v4799
          %v4835 = vpack.c.b16 %v4802, %v4801
          %v4836 = vpack.c.b16 %v4804, %v4803
          %4869 = vmatprep.subr.bf16.mxu0 0
          %4870 = vmatpush1.bf16.msra.mxu0 %v4805
          %4871 = vmatprep.subr.bf16.mxu0 0
          %4872 = vmatpush1.bf16.msra.mxu0 %v4806
          %4873 = vmatprep.subr.bf16.mxu0 0
          %4874 = vmatpush1.bf16.msra.mxu0 %v4807
          %4875 = vmatprep.subr.bf16.mxu0 0
          %4876 = vmatpush1.bf16.msra.mxu0 %v4808
          %4877 = vmatprep.subr.bf16.mxu0 0
          %4878 = vmatpush1.bf16.msra.mxu0 %v4809
          %4879 = vmatprep.subr.bf16.mxu0 0
          %4880 = vmatpush1.bf16.msra.mxu0 %v4810
          %4881 = vmatprep.subr.bf16.mxu0 0
          %4882 = vmatpush1.bf16.msra.mxu0 %v4811
          %4883 = vmatprep.subr.bf16.mxu0 0
          %4884 = vmatpush1.bf16.msra.mxu0 %v4812
          %4885 = vmatprep.subr.bf16.mxu0 0
          %4886 = vmatpush1.bf16.msra.mxu0 %v4813
          %4887 = vmatprep.subr.bf16.mxu0 0
          %4888 = vmatpush1.bf16.msra.mxu0 %v4814
          %4889 = vmatprep.subr.bf16.mxu0 0
          %4890 = vmatpush1.bf16.msra.mxu0 %v4815
          %4891 = vmatprep.subr.bf16.mxu0 0
          %4892 = vmatpush1.bf16.msra.mxu0 %v4816
          %4893 = vmatprep.subr.bf16.mxu0 0
          %4894 = vmatpush1.bf16.msra.mxu0 %v4817
          %4895 = vmatprep.subr.bf16.mxu0 0
          %4896 = vmatpush1.bf16.msra.mxu0 %v4818
          %4897 = vmatprep.subr.bf16.mxu0 0
          %4898 = vmatpush1.bf16.msra.mxu0 %v4819
          %4899 = vmatprep.subr.bf16.mxu0 0
          %4900 = vmatpush1.bf16.msra.mxu0 %v4820
          %4901 = vmatprep.mubr.bf16.mxu0 %v4603
          %4902 = vmatmul.mubr.bf16.gmra.mrb[0].mxu0 %v4602
          %v4903 = vpop.f32.mrb[0].mxu0
          %v4904 = vadd.f32 %v4675, %v4903
          %v4905 = vpop.f32.mrb[0].mxu0
          %v4906 = vpop.f32.mrb[0].mxu0
          %v4907 = vpop.f32.mrb[0].mxu0
          %4908 = vdwg.mxu0
          %4909 = vmatprep.subr.bf16.mxu0 0
          %4910 = vmatpush1.bf16.msra.mxu0 %v4821
          %4911 = vmatprep.subr.bf16.mxu0 0
          %4912 = vmatpush1.bf16.msra.mxu0 %v4822
          %4913 = vmatprep.subr.bf16.mxu0 0
          %4914 = vmatpush1.bf16.msra.mxu0 %v4823
          %4915 = vmatprep.subr.bf16.mxu0 0
          %4916 = vmatpush1.bf16.msra.mxu0 %v4824
          %4917 = vmatprep.subr.bf16.mxu0 0
          %4918 = vmatpush1.bf16.msra.mxu0 %v4825
          %4919 = vmatprep.subr.bf16.mxu0 0
          %4920 = vmatpush1.bf16.msra.mxu0 %v4826
          %4921 = vmatprep.subr.bf16.mxu0 0
          %4922 = vmatpush1.bf16.msra.mxu0 %v4827
          %4923 = vmatprep.subr.bf16.mxu0 0
          %4924 = vmatpush1.bf16.msra.mxu0 %v4828
          %4925 = vmatprep.subr.bf16.mxu0 0
          %4926 = vmatpush1.bf16.msra.mxu0 %v4829
          %4927 = vmatprep.subr.bf16.mxu0 0
          %4928 = vmatpush1.bf16.msra.mxu0 %v4830
          %4929 = vmatprep.subr.bf16.mxu0 0
          %4930 = vmatpush1.bf16.msra.mxu0 %v4831
          %4931 = vmatprep.subr.bf16.mxu0 0
          %4932 = vmatpush1.bf16.msra.mxu0 %v4832
          %4933 = vmatprep.subr.bf16.mxu0 0
          %4934 = vmatpush1.bf16.msra.mxu0 %v4833
          %4935 = vmatprep.subr.bf16.mxu0 0
          %4936 = vmatpush1.bf16.msra.mxu0 %v4834
          %4937 = vmatprep.subr.bf16.mxu0 0
          %4938 = vmatpush1.bf16.msra.mxu0 %v4835
          %4939 = vmatprep.subr.bf16.mxu0 0
          %4940 = vmatpush1.bf16.msra.mxu0 %v4836
          %4941 = vmatprep.mubr.bf16.mxu0 %v4605
          %4942 = vmatmul.mubr.bf16.gmra.mrb[0].mxu0 %v4604
          %v4943 = vpop.f32.mrb[0].mxu0
          %v4944 = vadd.f32 %v4904, %v4943
          %v4945 = vpop.f32.mrb[0].mxu0
          %v4946 = vpop.f32.mrb[0].mxu0
          %v4947 = vpop.f32.mrb[0].mxu0
          %4948 = vdwg.mxu0
          %4949 = vst [vmem:[#allocation18] sm:$0xff] %v4944
        $region100: #{tpu_custom_call.1} parent=55 // pred_fallthru
          _
        // Predicated region
        $region101: #{tpu_custom_call.1} parent=55 // pred_check
          %p4950 = pneg %p266
        $region102: #{tpu_custom_call.1} parent=55 // pred_check_branch
          %4952 = sbr.rel (%p4950) target = $region104
        $region103: #{tpu_custom_call.1} parent=55 // pred_region
          %s4954 = ssub.s32 128, 128
          %4955 = vsyncadd [#allocation5], %s4954
          %s4956 = smul.addr %s34, 128
          %s4957 = scalar_lea.hbm %s9, %s4956
          %s4959 = sshll.u32 [#allocation18], 4
          %s4960 = int_to_ptr.vmem [resolvable:$true] %s4959
          %4962 = dma.vmem_to_hbm [thread:$0]  %s4960, 128, %s4957, [#allocation5]
        $region104: #{tpu_custom_call.1} parent=55 // pred_fallthru
          _
        // Predicated region
        $region105: #{tpu_custom_call.1} parent=55 // pred_check
          %p4963 = pneg %p266
        $region106: #{tpu_custom_call.1} parent=55 // pred_check_branch
          %4965 = sbr.rel (%p4963) target = $region108
        $region107: #{tpu_custom_call.1} parent=55 // pred_region
          %4966 = dma.done [#allocation5], 128
        $region108: #{tpu_custom_call.1} parent=55 // pred_fallthru
          _
      $region56: #{tpu_custom_call.1} parent=5 // pred_fallthru
        _
      %p4967 = scmp.le.s32.totalorder 2, %s25
      // Predicated region
      $region109: #{tpu_custom_call.1} parent=5 // pred_check
        %p4968 = pneg %p4967
      $region110: #{tpu_custom_call.1} parent=5 // pred_check_branch
        %4970 = sbr.rel (%p4968) target = $region112
      $region111: #{tpu_custom_call.1} parent=5 // pred_region
        %s4971 = ssub.s32 %s25, 2
      $region112: #{tpu_custom_call.1} parent=5 // pred_fallthru
        _
    $region6: #{tpu_custom_call.1} parent=1 // loop_footer
      %s29 = sadd.s32 1, %s25
    $region7: #{tpu_custom_call.1} parent=1 // loop_footer_branch
      %24 = sbr.rel target = $region3
    $region8: #{tpu_custom_call.1} parent=1 // loop_exit
      _
    %4972 = vsyncpa [#allocation4], 1
    %s4973 = scalar_lea.sflag [#allocation4], 1
    %4974 = vsyncpa %s4973, 1
    %4975 = vsyncpa [#allocation7], 1
    %s4976 = scalar_lea.sflag [#allocation7], 1
    %4977 = vsyncpa %s4976, 1
    %4978 = vsyncpa [#allocation10], 1
    %4979 = vsyncpa [#allocation13], 1
    %4980 = vsyncpa [#allocation16], 1
    %4981 = vsyncpa [#allocation5], 1
    %s4982 = scalar_lea.sflag [#allocation5], 1
    %4983 = vsyncpa %s4982, 1

</llo_original>
